<compile_context>
chip_gen: v6e
topology: v6e:2x2x1
jax: 0.10.0
libtpu: 0.0.40
codegen_flags: <defaults>
</compile_context>

<pallas_src>
import math
import numpy as np

import jax
import jax.numpy as jnp
from jax.experimental import pallas as pl
from jax.experimental.pallas import tpu as pltpu

NEG_INF = -1e9
LN_EPS = 1e-5


# --------------------------------------------------------------------------------------
# The fused DIET forward kernel (one grid step == one batch element)
# --------------------------------------------------------------------------------------

def _diet_kernel(word_ref, sent_ref, mask_ref, pe_ref,
                 wiw_ref, wib_ref, siw_ref, sib_ref,
                 wq_ref, bq_ref, wk_ref, bk_ref, wv_ref, bv_ref,
                 wo_ref, bo_ref, w1_ref, b1_ref, w2_ref, b2_ref,
                 ln1g_ref, ln1b_ref, ln2g_ref, ln2b_ref,
                 encg_ref, encb_ref,
                 sow_ref, sob_ref,
                 tw0_ref, tb0_ref, tw1_ref, tb1_ref,
                 intent_ref, ent_ref):
    f32 = jnp.float32
    bf16 = jnp.bfloat16

    L, H, D, Dh = wq_ref.shape          # layers, heads, d_model, head dim (static)
    S = word_ref.shape[1]               # sequence length (static)
    scale = 1.0 / math.sqrt(Dh)

    def leaky(y):                       # LeakyReLU(0.1), f32
        return jnp.where(y >= 0, y, 0.1 * y)

    def layer_norm(y, g, b):            # row-wise LN over features, f32
        mu = jnp.mean(y, axis=-1, keepdims=True)
        yc = y - mu
        var = jnp.mean(yc * yc, axis=-1, keepdims=True)
        return yc * jax.lax.rsqrt(var + LN_EPS) * g + b

    def mm(a, w):                       # bf16 MXU operands, f32 accumulation
        return jnp.dot(a.astype(bf16), w, preferred_element_type=f32)

    # ---- input MapperNNs (single Linear + LeakyReLU; dropout == identity) ----
    words = leaky(mm(word_ref[0], wiw_ref[...]) + wib_ref[...])     # (S, D)
    sent = leaky(mm(sent_ref[0], siw_ref[...]) + sib_ref[...])      # (1, D)

    # ---- merge: position 0 <- sentence stream, positions 1..S-1 <- word stream ----
    row = jax.lax.broadcasted_iota(jnp.int32, (S, D), 0)
    merged = jnp.where(row == 0, jnp.broadcast_to(sent, (S, D)), words)

    # ---- positional encoding (dropout == identity at inference) ----
    x = merged + pe_ref[...]                                        # (S, D) f32

    pad = mask_ref[0].astype(f32)                                   # (1, S); 1.0 => padded key
    # NOTE: a fully padded row would yield a uniform softmax here (PyTorch gives NaN);
    # not exercised by valid inputs.

    # ---- TransformerEncoder: L post-norm layers, fully VMEM-resident ----
    for l in range(L):
        xb = x.astype(bf16)
        attn = bo_ref[l]                                            # (1, D) output-proj bias
        for h in range(H):
            q = jnp.dot(xb, wq_ref[l, h], preferred_element_type=f32) + bq_ref[l, h]  # (S, Dh)
            k = jnp.dot(xb, wk_ref[l, h], preferred_element_type=f32) + bk_ref[l, h]
            v = jnp.dot(xb, wv_ref[l, h], preferred_element_type=f32) + bv_ref[l, h]
            # scores: contract last dims directly (no k transpose)
            s = jax.lax.dot_general(q.astype(bf16), k.astype(bf16),
                                    (((1,), (1,)), ((), ())),
                                    preferred_element_type=f32) * scale               # (S, S)
            s = s + pad * NEG_INF
            s = s - jnp.max(s, axis=-1, keepdims=True)
            e = jnp.exp(s)
            p = e * pl.reciprocal(jnp.sum(e, axis=-1, keepdims=True), approx=True)
            o = jnp.dot(p.astype(bf16), v.astype(bf16), preferred_element_type=f32)   # (S, Dh)
            # fused output projection: attn_cat @ Wo == sum_h o_h @ Wo[h]
            attn = attn + jnp.dot(o.astype(bf16), wo_ref[l, h], preferred_element_type=f32)

        h1 = layer_norm(x + attn, ln1g_ref[l], ln1b_ref[l])         # norm1(x + attn)
        ff = jnp.maximum(mm(h1, w1_ref[l]) + b1_ref[l], 0.0)        # ReLU FFN
        ff = mm(ff, w2_ref[l]) + b2_ref[l]
        x = layer_norm(h1 + ff, ln2g_ref[l], ln2b_ref[l])           # norm2(h1 + ffn)

    # ---- final encoder LayerNorm (nn.Transformer encoder norm) ----
    x = layer_norm(x, encg_ref[...], encb_ref[...])                 # (S, D)

    # ---- intent head: Linear + softmax on position 0 ----
    x0 = x[0:1, :]                                                  # (1, D)
    logits = mm(x0, sow_ref[...]) + sob_ref[...]                    # (1, n_intents)
    logits = logits - jnp.max(logits, axis=-1, keepdims=True)
    e = jnp.exp(logits)
    intent_ref[0] = (e / jnp.sum(e, axis=-1, keepdims=True)).astype(intent_ref.dtype)

    # ---- entity head: Linear(16) -> LeakyReLU -> Linear(n_tags) -> LeakyReLU ----
    t = leaky(mm(x, tw0_ref[...]) + tb0_ref[...])                   # (S, 16)
    t = leaky(mm(t, tw1_ref[...]) + tb1_ref[...])                   # (S, n_tags)
    ent_ref[0] = t.astype(ent_ref.dtype)


def _full_spec(a):
    zeros = (0,) * a.ndim
    return pl.BlockSpec(tuple(a.shape), lambda b, _z=zeros: _z)


def _batch_spec(a):
    blk = (1,) + tuple(a.shape[1:])
    tail = (0,) * (a.ndim - 1)
    return pl.BlockSpec(blk, lambda b, _t=tail: (b,) + _t)


def diet_forward(params, batch_mask, word_embed, sentence_embed):
    """batch_mask: (B, 1, S) float {0,1}, 1 => key ignored (src_key_padding_mask semantics)."""
    B, S, _ = word_embed.shape
    n_intents = params["so_w"].shape[-1]
    n_tags = params["t1_w"].shape[-1]

    pe = params["pe"][:S]                                 # (S, D)
    sent3 = sentence_embed[:, None, :]                    # (B, 1, Ds)
    mask3 = batch_mask.astype(jnp.float32)                # (B, 1, S)

    inputs = (word_embed, sent3, mask3, pe,
              params["w_in_w"], params["w_in_b"], params["s_in_w"], params["s_in_b"],
              params["wq"], params["bq"], params["wk"], params["bk"],
              params["wv"], params["bv"], params["wo"], params["bo"],
              params["w1"], params["b1"], params["w2"], params["b2"],
              params["ln1_g"], params["ln1_b"], params["ln2_g"], params["ln2_b"],
              params["enc_g"], params["enc_b"],
              params["so_w"], params["so_b"],
              params["t0_w"], params["t0_b"], params["t1_w"], params["t1_b"])

    in_specs = [(_batch_spec(a) if i < 3 else _full_spec(a)) for i, a in enumerate(inputs)]

    out_shape = (jax.ShapeDtypeStruct((B, 1, n_intents), jnp.float32),
                 jax.ShapeDtypeStruct((B, S, n_tags), jnp.float32))
    out_specs = (pl.BlockSpec((1, 1, n_intents), lambda b: (b, 0, 0)),
                 pl.BlockSpec((1, S, n_tags), lambda b: (b, 0, 0)))

    intent_full, ent_full = pl.pallas_call(
        _diet_kernel,
        grid=(B,),
        in_specs=in_specs,
        out_specs=out_specs,
        out_shape=out_shape,
        compiler_params=pltpu.CompilerParams(dimension_semantics=("parallel",)),
    )(*inputs)

    intent_logits = intent_full[:, 0, :]                  # (B, n_intents)
    entities_mapping = ent_full[:, 1:, :]                 # (B, S-1, n_tags)
    return intent_logits, entities_mapping


# --------------------------------------------------------------------------------------
# Parameter init (deterministic, synthetic) -- arrays only, so the pytree is jit-safe.
# --------------------------------------------------------------------------------------

def _lin(key, fi, fo, scale=0.05):
    k1, k2 = jax.random.split(key)
    return (jax.random.normal(k1, (fi, fo), jnp.float32) * scale,
            jax.random.normal(k2, (fo,), jnp.float32) * scale)


def positional_encoding(max_len, d_model):
    position = np.arange(max_len, dtype=np.float32)[:, None]
    div_term = np.exp(np.arange(0, d_model, 2, dtype=np.float32) * (-math.log(10000.0) / d_model))
    pe = np.zeros((max_len, d_model), np.float32)
    pe[:, 0::2] = np.sin(position * div_term)
    pe[:, 1::2] = np.cos(position * div_term)
    return jnp.asarray(pe)                                # (max_len, d_model)


def init_diet(key, *, word_dim, sent_dim, d_model, nhead, n_layers, d_ff,
              n_intents, n_tags, tag_hidden=16, max_len=50):
    assert d_model % nhead == 0
    Dh = d_model // nhead
    bf16 = jnp.bfloat16
    ks = iter(jax.random.split(key, 8 + 6 * n_layers))

    wiw, wib = _lin(next(ks), word_dim, d_model)
    siw, sib = _lin(next(ks), sent_dim, d_model)
    sow, sob = _lin(next(ks), d_model, n_intents)
    tw0, tb0 = _lin(next(ks), d_model, tag_hidden)
    tw1, tb1 = _lin(next(ks), tag_hidden, n_tags)

    def split_heads_w(w):   # (D, D) column-partitioned per head -> (H, D, Dh)
        return w.reshape(d_model, nhead, Dh).transpose(1, 0, 2)

    def split_heads_b(b):   # (D,) -> (H, 1, Dh)
        return b.reshape(nhead, 1, Dh)

    wq_l, bq_l, wk_l, bk_l, wv_l, bv_l = [], [], [], [], [], []
    wo_l, bo_l, w1_l, b1_l, w2_l, b2_l = [], [], [], [], [], []
    for _ in range(n_layers):
        wq, bq = _lin(next(ks), d_model, d_model)
        wk, bk = _lin(next(ks), d_model, d_model)
        wv, bv = _lin(next(ks), d_model, d_model)
        wo, bo = _lin(next(ks), d_model, d_model)
        w1, b1 = _lin(next(ks), d_model, d_ff)
        w2, b2 = _lin(next(ks), d_ff, d_model)
        wq_l.append(split_heads_w(wq)); bq_l.append(split_heads_b(bq))
        wk_l.append(split_heads_w(wk)); bk_l.append(split_heads_b(bk))
        wv_l.append(split_heads_w(wv)); bv_l.append(split_heads_b(bv))
        wo_l.append(wo.reshape(nhead, Dh, d_model))       # row-partitioned per head
        bo_l.append(bo.reshape(1, d_model))
        w1_l.append(w1); b1_l.append(b1.reshape(1, d_ff))
        w2_l.append(w2); b2_l.append(b2.reshape(1, d_model))

    params = {
        "w_in_w": wiw.astype(bf16), "w_in_b": wib.reshape(1, -1),
        "s_in_w": siw.astype(bf16), "s_in_b": sib.reshape(1, -1),
        "pe": positional_encoding(max_len, d_model),
        "wq": jnp.stack(wq_l).astype(bf16), "bq": jnp.stack(bq_l),
        "wk": jnp.stack(wk_l).astype(bf16), "bk": jnp.stack(bk_l),
        "wv": jnp.stack(wv_l).astype(bf16), "bv": jnp.stack(bv_l),
        "wo": jnp.stack(wo_l).astype(bf16), "bo": jnp.stack(bo_l),
        "w1": jnp.stack(w1_l).astype(bf16), "b1": jnp.stack(b1_l),
        "w2": jnp.stack(w2_l).astype(bf16), "b2": jnp.stack(b2_l),
        "ln1_g": jnp.ones((n_layers, 1, d_model), jnp.float32),
        "ln1_b": jnp.zeros((n_layers, 1, d_model), jnp.float32),
        "ln2_g": jnp.ones((n_layers, 1, d_model), jnp.float32),
        "ln2_b": jnp.zeros((n_layers, 1, d_model), jnp.float32),
        "enc_g": jnp.ones((1, d_model), jnp.float32),
        "enc_b": jnp.zeros((1, d_model), jnp.float32),
        "so_w": sow.astype(bf16), "so_b": sob.reshape(1, -1),
        "t0_w": tw0.astype(bf16), "t0_b": tb0.reshape(1, -1),
        "t1_w": tw1.astype(bf16), "t1_b": tb1.reshape(1, -1),
    }
    kc = jax.random.split(next(ks), 3)
    crf = {
        "start": np.asarray(jax.random.uniform(kc[0], (n_tags,), jnp.float32, -0.1, 0.1)),
        "end": np.asarray(jax.random.uniform(kc[1], (n_tags,), jnp.float32, -0.1, 0.1)),
        "trans": np.asarray(jax.random.uniform(kc[2], (n_tags, n_tags), jnp.float32, -0.1, 0.1)),
    }
    return params, crf


# --------------------------------------------------------------------------------------
# CRF Viterbi decode -- sequential, data-dependent, variable-length outputs.
# TODO(synk): torchcrf .decode returns variable-length python lists; we follow its
#             score/backtrack algorithm on host (numpy) rather than in a Pallas kernel.
# --------------------------------------------------------------------------------------

def crf_viterbi_decode(emissions, mask, crf):
    em = np.asarray(emissions, np.float32)       # (B, T, n_tags)
    mk = np.asarray(mask).astype(np.int64)       # (B, T)
    start, end, trans = crf["start"], crf["end"], crf["trans"]
    B, T, _ = em.shape
    best_tags_list = []
    for b in range(B):
        score = start + em[b, 0]
        history = []
        for t in range(1, T):
            cand = score[:, None] + trans + em[b, t][None, :]
            best = cand.max(axis=0)
            idx = cand.argmax(axis=0)
            if mk[b, t]:
                score = best
            history.append(idx)
        score = score + end
        seq_end = max(int(mk[b].sum()) - 1, 0)
        tag = int(score.argmax())
        tags = [tag]
        for hist in reversed(history[:seq_end]):
            tag = int(hist[tag])
            tags.append(tag)
        tags.reverse()
        best_tags_list.append(tags)
    return best_tags_list


# --------------------------------------------------------------------------------------
# Demo
# --------------------------------------------------------------------------------------

if __name__ == "__main__":
    B, S = 2, 8
    word_dim, sent_dim = 32, 24
    d_model, nhead, n_layers, d_ff = 32, 2, 2, 64
    n_intents, n_tags = 7, 5
    max_len = 50

    root = jax.random.PRNGKey(0)
    k_par, k_word, k_sent = jax.random.split(root, 3)
    params, crf = init_diet(k_par, word_dim=word_dim, sent_dim=sent_dim, d_model=d_model,
                            nhead=nhead, n_layers=n_layers, d_ff=d_ff,
                            n_intents=n_intents, n_tags=n_tags, max_len=max_len)

    word_embed = jax.random.normal(k_word, (B, S, word_dim), jnp.float32)
    sentence_embed = jax.random.normal(k_sent, (B, sent_dim), jnp.float32)
    batch_mask = jnp.asarray(np.array(
        [[[0, 0, 0, 0, 0, 1, 1, 1]],
         [[0, 0, 0, 0, 1, 1, 1, 1]]], dtype=np.float32))          # (B, 1, S), 1 = pad

    fwd = jax.jit(diet_forward)
    intent_logits, entities_mapping_output = fwd(params, batch_mask, word_embed, sentence_embed)
    jax.block_until_ready((intent_logits, entities_mapping_output))

    crf_mask = np.asarray(batch_mask)[:, 0, 1:]                    # (B, S-1), as in the module
    entities_predictions = crf_viterbi_decode(entities_mapping_output, crf_mask, crf)

    assert intent_logits.shape == (B, n_intents)
    assert entities_mapping_output.shape == (B, S - 1, n_tags)
    assert np.allclose(np.asarray(jnp.sum(intent_logits, axis=1)), 1.0, atol=1e-4)
    assert len(entities_predictions) == B

    print("KERNEL_OK")
</pallas_src>

<mosaic_0001>
module attributes {stable_mosaic.version = 11 : i64} {
  func.func @_diet_kernel(%arg0: i32, %arg1: memref<1x8x32xf32, #tpu.memory_space<vmem>>, %arg2: memref<1x1x24xf32, #tpu.memory_space<vmem>>, %arg3: memref<1x1x8xf32, #tpu.memory_space<vmem>>, %arg4: memref<8x32xf32, #tpu.memory_space<vmem>>, %arg5: memref<32x32xbf16, #tpu.memory_space<vmem>>, %arg6: memref<1x32xf32, #tpu.memory_space<vmem>>, %arg7: memref<24x32xbf16, #tpu.memory_space<vmem>>, %arg8: memref<1x32xf32, #tpu.memory_space<vmem>>, %arg9: memref<2x2x32x16xbf16, #tpu.memory_space<vmem>>, %arg10: memref<2x2x1x16xf32, #tpu.memory_space<vmem>>, %arg11: memref<2x2x32x16xbf16, #tpu.memory_space<vmem>>, %arg12: memref<2x2x1x16xf32, #tpu.memory_space<vmem>>, %arg13: memref<2x2x32x16xbf16, #tpu.memory_space<vmem>>, %arg14: memref<2x2x1x16xf32, #tpu.memory_space<vmem>>, %arg15: memref<2x2x16x32xbf16, #tpu.memory_space<vmem>>, %arg16: memref<2x1x32xf32, #tpu.memory_space<vmem>>, %arg17: memref<2x32x64xbf16, #tpu.memory_space<vmem>>, %arg18: memref<2x1x64xf32, #tpu.memory_space<vmem>>, %arg19: memref<2x64x32xbf16, #tpu.memory_space<vmem>>, %arg20: memref<2x1x32xf32, #tpu.memory_space<vmem>>, %arg21: memref<2x1x32xf32, #tpu.memory_space<vmem>>, %arg22: memref<2x1x32xf32, #tpu.memory_space<vmem>>, %arg23: memref<2x1x32xf32, #tpu.memory_space<vmem>>, %arg24: memref<2x1x32xf32, #tpu.memory_space<vmem>>, %arg25: memref<1x32xf32, #tpu.memory_space<vmem>>, %arg26: memref<1x32xf32, #tpu.memory_space<vmem>>, %arg27: memref<32x7xbf16, #tpu.memory_space<vmem>>, %arg28: memref<1x7xf32, #tpu.memory_space<vmem>>, %arg29: memref<32x16xbf16, #tpu.memory_space<vmem>>, %arg30: memref<1x16xf32, #tpu.memory_space<vmem>>, %arg31: memref<16x5xbf16, #tpu.memory_space<vmem>>, %arg32: memref<1x5xf32, #tpu.memory_space<vmem>>, %arg33: memref<1x1x7xf32, #tpu.memory_space<vmem>>, %arg34: memref<1x8x5xf32, #tpu.memory_space<vmem>>) attributes {dimension_semantics = [#tpu.dimension_semantics<parallel>], iteration_bounds = array<i64: 2>, scalar_prefetch = 0 : i64, scratch_operands = 0 : i64, tpu.core_type = #tpu.core_type<tc>, window_params = [{transform_indices = @transform_0, window_bounds = array<i64: 1, 8, 32>}, {transform_indices = @transform_1, window_bounds = array<i64: 1, 1, 24>}, {transform_indices = @transform_2, window_bounds = array<i64: 1, 1, 8>}, {pipeline_mode = #tpu.pipeline_mode<synchronous>, transform_indices = @transform_3, window_bounds = array<i64: 8, 32>}, {pipeline_mode = #tpu.pipeline_mode<synchronous>, transform_indices = @transform_4, window_bounds = array<i64: 32, 32>}, {pipeline_mode = #tpu.pipeline_mode<synchronous>, transform_indices = @transform_5, window_bounds = array<i64: 1, 32>}, {pipeline_mode = #tpu.pipeline_mode<synchronous>, transform_indices = @transform_6, window_bounds = array<i64: 24, 32>}, {pipeline_mode = #tpu.pipeline_mode<synchronous>, transform_indices = @transform_7, window_bounds = array<i64: 1, 32>}, {pipeline_mode = #tpu.pipeline_mode<synchronous>, transform_indices = @transform_8, window_bounds = array<i64: 2, 2, 32, 16>}, {pipeline_mode = #tpu.pipeline_mode<synchronous>, transform_indices = @transform_9, window_bounds = array<i64: 2, 2, 1, 16>}, {pipeline_mode = #tpu.pipeline_mode<synchronous>, transform_indices = @transform_10, window_bounds = array<i64: 2, 2, 32, 16>}, {pipeline_mode = #tpu.pipeline_mode<synchronous>, transform_indices = @transform_11, window_bounds = array<i64: 2, 2, 1, 16>}, {pipeline_mode = #tpu.pipeline_mode<synchronous>, transform_indices = @transform_12, window_bounds = array<i64: 2, 2, 32, 16>}, {pipeline_mode = #tpu.pipeline_mode<synchronous>, transform_indices = @transform_13, window_bounds = array<i64: 2, 2, 1, 16>}, {pipeline_mode = #tpu.pipeline_mode<synchronous>, transform_indices = @transform_14, window_bounds = array<i64: 2, 2, 16, 32>}, {pipeline_mode = #tpu.pipeline_mode<synchronous>, transform_indices = @transform_15, window_bounds = array<i64: 2, 1, 32>}, {pipeline_mode = #tpu.pipeline_mode<synchronous>, transform_indices = @transform_16, window_bounds = array<i64: 2, 32, 64>}, {pipeline_mode = #tpu.pipeline_mode<synchronous>, transform_indices = @transform_17, window_bounds = array<i64: 2, 1, 64>}, {pipeline_mode = #tpu.pipeline_mode<synchronous>, transform_indices = @transform_18, window_bounds = array<i64: 2, 64, 32>}, {pipeline_mode = #tpu.pipeline_mode<synchronous>, transform_indices = @transform_19, window_bounds = array<i64: 2, 1, 32>}, {pipeline_mode = #tpu.pipeline_mode<synchronous>, transform_indices = @transform_20, window_bounds = array<i64: 2, 1, 32>}, {pipeline_mode = #tpu.pipeline_mode<synchronous>, transform_indices = @transform_21, window_bounds = array<i64: 2, 1, 32>}, {pipeline_mode = #tpu.pipeline_mode<synchronous>, transform_indices = @transform_22, window_bounds = array<i64: 2, 1, 32>}, {pipeline_mode = #tpu.pipeline_mode<synchronous>, transform_indices = @transform_23, window_bounds = array<i64: 2, 1, 32>}, {pipeline_mode = #tpu.pipeline_mode<synchronous>, transform_indices = @transform_24, window_bounds = array<i64: 1, 32>}, {pipeline_mode = #tpu.pipeline_mode<synchronous>, transform_indices = @transform_25, window_bounds = array<i64: 1, 32>}, {pipeline_mode = #tpu.pipeline_mode<synchronous>, transform_indices = @transform_26, window_bounds = array<i64: 32, 7>}, {pipeline_mode = #tpu.pipeline_mode<synchronous>, transform_indices = @transform_27, window_bounds = array<i64: 1, 7>}, {pipeline_mode = #tpu.pipeline_mode<synchronous>, transform_indices = @transform_28, window_bounds = array<i64: 32, 16>}, {pipeline_mode = #tpu.pipeline_mode<synchronous>, transform_indices = @transform_29, window_bounds = array<i64: 1, 16>}, {pipeline_mode = #tpu.pipeline_mode<synchronous>, transform_indices = @transform_30, window_bounds = array<i64: 16, 5>}, {pipeline_mode = #tpu.pipeline_mode<synchronous>, transform_indices = @transform_31, window_bounds = array<i64: 1, 5>}, {transform_indices = @transform_32, window_bounds = array<i64: 1, 1, 7>}, {transform_indices = @transform_33, window_bounds = array<i64: 1, 8, 5>}]} {
    %c0 = arith.constant 0 : index
    %c0_0 = arith.constant 0 : index
    %c0_1 = arith.constant 0 : index
    %0 = vector.load %arg1[%c0, %c0_0, %c0_1] : memref<1x8x32xf32, #tpu.memory_space<vmem>>, vector<1x8x32xf32>
    %1 = vector.shape_cast %0 : vector<1x8x32xf32> to vector<8x32xf32>
    %c0_2 = arith.constant 0 : index
    %c0_3 = arith.constant 0 : index
    %2 = vector.load %arg5[%c0_2, %c0_3] : memref<32x32xbf16, #tpu.memory_space<vmem>>, vector<32x32xbf16>
    %3 = arith.truncf %1 : vector<8x32xf32> to vector<8x32xbf16>
    %cst = arith.constant dense<0.000000e+00> : vector<8x32xf32>
    %4 = tpu.matmul %3, %2, %cst {dimension_numbers = #tpu.dot_dimension_numbers<[1], [0], [0], [1], [0, 0, 1, 1], [], []>} : vector<8x32xbf16>, vector<32x32xbf16>, vector<8x32xf32> -> vector<8x32xf32>
    %c0_4 = arith.constant 0 : index
    %c0_5 = arith.constant 0 : index
    %5 = vector.load %arg6[%c0_4, %c0_5] : memref<1x32xf32, #tpu.memory_space<vmem>>, vector<1x32xf32>
    %6 = vector.broadcast %5 : vector<1x32xf32> to vector<8x32xf32>
    %7 = arith.addf %4, %6 : vector<8x32xf32>
    %cst_6 = arith.constant 0.000000e+00 : f32
    %8 = vector.broadcast %cst_6 : f32 to vector<8x32xf32>
    %9 = arith.cmpf oge, %7, %8 : vector<8x32xf32>
    %cst_7 = arith.constant 1.000000e-01 : f32
    %10 = vector.broadcast %cst_7 : f32 to vector<8x32xf32>
    %11 = arith.mulf %10, %7 : vector<8x32xf32>
    %12 = arith.select %9, %7, %11 : vector<8x32xi1>, vector<8x32xf32>
    %c0_8 = arith.constant 0 : index
    %c0_9 = arith.constant 0 : index
    %c0_10 = arith.constant 0 : index
    %13 = vector.load %arg2[%c0_8, %c0_9, %c0_10] : memref<1x1x24xf32, #tpu.memory_space<vmem>>, vector<1x1x24xf32>
    %14 = vector.shape_cast %13 : vector<1x1x24xf32> to vector<1x24xf32>
    %c0_11 = arith.constant 0 : index
    %c0_12 = arith.constant 0 : index
    %15 = vector.load %arg7[%c0_11, %c0_12] : memref<24x32xbf16, #tpu.memory_space<vmem>>, vector<24x32xbf16>
    %16 = arith.truncf %14 : vector<1x24xf32> to vector<1x24xbf16>
    %cst_13 = arith.constant dense<0.000000e+00> : vector<1x32xf32>
    %17 = tpu.matmul %16, %15, %cst_13 {dimension_numbers = #tpu.dot_dimension_numbers<[1], [0], [0], [1], [0, 0, 1, 1], [], []>} : vector<1x24xbf16>, vector<24x32xbf16>, vector<1x32xf32> -> vector<1x32xf32>
    %c0_14 = arith.constant 0 : index
    %c0_15 = arith.constant 0 : index
    %18 = vector.load %arg8[%c0_14, %c0_15] : memref<1x32xf32, #tpu.memory_space<vmem>>, vector<1x32xf32>
    %19 = arith.addf %17, %18 : vector<1x32xf32>
    %cst_16 = arith.constant 0.000000e+00 : f32
    %20 = vector.broadcast %cst_16 : f32 to vector<1x32xf32>
    %21 = arith.cmpf oge, %19, %20 : vector<1x32xf32>
    %cst_17 = arith.constant 1.000000e-01 : f32
    %22 = vector.broadcast %cst_17 : f32 to vector<1x32xf32>
    %23 = arith.mulf %22, %19 : vector<1x32xf32>
    %24 = arith.select %21, %19, %23 : vector<1x32xi1>, vector<1x32xf32>
    %25 = tpu.iota {dimensions = array<i32: 0>} : vector<8x32xi32>
    %c0_i32 = arith.constant 0 : i32
    %26 = vector.broadcast %c0_i32 : i32 to vector<8x32xi32>
    %27 = arith.cmpi eq, %25, %26 : vector<8x32xi32>
    %28 = vector.shape_cast %24 : vector<1x32xf32> to vector<1x32xf32>
    %29 = vector.broadcast %28 : vector<1x32xf32> to vector<8x32xf32>
    %30 = arith.select %27, %29, %12 : vector<8x32xi1>, vector<8x32xf32>
    %c0_18 = arith.constant 0 : index
    %c0_19 = arith.constant 0 : index
    %31 = vector.load %arg4[%c0_18, %c0_19] : memref<8x32xf32, #tpu.memory_space<vmem>>, vector<8x32xf32>
    %32 = arith.addf %30, %31 : vector<8x32xf32>
    %c0_20 = arith.constant 0 : index
    %c0_21 = arith.constant 0 : index
    %c0_22 = arith.constant 0 : index
    %33 = vector.load %arg3[%c0_20, %c0_21, %c0_22] : memref<1x1x8xf32, #tpu.memory_space<vmem>>, vector<1x1x8xf32>
    %34 = vector.shape_cast %33 : vector<1x1x8xf32> to vector<1x8xf32>
    %35 = arith.truncf %32 : vector<8x32xf32> to vector<8x32xbf16>
    %c0_23 = arith.constant 0 : index
    %c0_24 = arith.constant 0 : index
    %c0_25 = arith.constant 0 : index
    %36 = vector.load %arg16[%c0_23, %c0_24, %c0_25] : memref<2x1x32xf32, #tpu.memory_space<vmem>>, vector<1x1x32xf32>
    %37 = vector.shape_cast %36 : vector<1x1x32xf32> to vector<1x32xf32>
    %c0_26 = arith.constant 0 : index
    %c0_27 = arith.constant 0 : index
    %c0_28 = arith.constant 0 : index
    %c0_29 = arith.constant 0 : index
    %38 = vector.load %arg9[%c0_26, %c0_27, %c0_28, %c0_29] : memref<2x2x32x16xbf16, #tpu.memory_space<vmem>>, vector<1x1x32x16xbf16>
    %39 = vector.shape_cast %38 : vector<1x1x32x16xbf16> to vector<32x16xbf16>
    %cst_30 = arith.constant dense<0.000000e+00> : vector<8x16xf32>
    %40 = tpu.matmul %35, %39, %cst_30 {dimension_numbers = #tpu.dot_dimension_numbers<[1], [0], [0], [1], [0, 0, 1, 1], [], []>} : vector<8x32xbf16>, vector<32x16xbf16>, vector<8x16xf32> -> vector<8x16xf32>
    %c0_31 = arith.constant 0 : index
    %c0_32 = arith.constant 0 : index
    %c0_33 = arith.constant 0 : index
    %c0_34 = arith.constant 0 : index
    %41 = vector.load %arg10[%c0_31, %c0_32, %c0_33, %c0_34] : memref<2x2x1x16xf32, #tpu.memory_space<vmem>>, vector<1x1x1x16xf32>
    %42 = vector.shape_cast %41 : vector<1x1x1x16xf32> to vector<1x16xf32>
    %43 = vector.broadcast %42 : vector<1x16xf32> to vector<8x16xf32>
    %44 = arith.addf %40, %43 : vector<8x16xf32>
    %c0_35 = arith.constant 0 : index
    %c0_36 = arith.constant 0 : index
    %c0_37 = arith.constant 0 : index
    %c0_38 = arith.constant 0 : index
    %45 = vector.load %arg11[%c0_35, %c0_36, %c0_37, %c0_38] : memref<2x2x32x16xbf16, #tpu.memory_space<vmem>>, vector<1x1x32x16xbf16>
    %46 = vector.shape_cast %45 : vector<1x1x32x16xbf16> to vector<32x16xbf16>
    %cst_39 = arith.constant dense<0.000000e+00> : vector<8x16xf32>
    %47 = tpu.matmul %35, %46, %cst_39 {dimension_numbers = #tpu.dot_dimension_numbers<[1], [0], [0], [1], [0, 0, 1, 1], [], []>} : vector<8x32xbf16>, vector<32x16xbf16>, vector<8x16xf32> -> vector<8x16xf32>
    %c0_40 = arith.constant 0 : index
    %c0_41 = arith.constant 0 : index
    %c0_42 = arith.constant 0 : index
    %c0_43 = arith.constant 0 : index
    %48 = vector.load %arg12[%c0_40, %c0_41, %c0_42, %c0_43] : memref<2x2x1x16xf32, #tpu.memory_space<vmem>>, vector<1x1x1x16xf32>
    %49 = vector.shape_cast %48 : vector<1x1x1x16xf32> to vector<1x16xf32>
    %50 = vector.broadcast %49 : vector<1x16xf32> to vector<8x16xf32>
    %51 = arith.addf %47, %50 : vector<8x16xf32>
    %c0_44 = arith.constant 0 : index
    %c0_45 = arith.constant 0 : index
    %c0_46 = arith.constant 0 : index
    %c0_47 = arith.constant 0 : index
    %52 = vector.load %arg13[%c0_44, %c0_45, %c0_46, %c0_47] : memref<2x2x32x16xbf16, #tpu.memory_space<vmem>>, vector<1x1x32x16xbf16>
    %53 = vector.shape_cast %52 : vector<1x1x32x16xbf16> to vector<32x16xbf16>
    %cst_48 = arith.constant dense<0.000000e+00> : vector<8x16xf32>
    %54 = tpu.matmul %35, %53, %cst_48 {dimension_numbers = #tpu.dot_dimension_numbers<[1], [0], [0], [1], [0, 0, 1, 1], [], []>} : vector<8x32xbf16>, vector<32x16xbf16>, vector<8x16xf32> -> vector<8x16xf32>
    %c0_49 = arith.constant 0 : index
    %c0_50 = arith.constant 0 : index
    %c0_51 = arith.constant 0 : index
    %c0_52 = arith.constant 0 : index
    %55 = vector.load %arg14[%c0_49, %c0_50, %c0_51, %c0_52] : memref<2x2x1x16xf32, #tpu.memory_space<vmem>>, vector<1x1x1x16xf32>
    %56 = vector.shape_cast %55 : vector<1x1x1x16xf32> to vector<1x16xf32>
    %57 = vector.broadcast %56 : vector<1x16xf32> to vector<8x16xf32>
    %58 = arith.addf %54, %57 : vector<8x16xf32>
    %59 = arith.truncf %44 : vector<8x16xf32> to vector<8x16xbf16>
    %60 = arith.truncf %51 : vector<8x16xf32> to vector<8x16xbf16>
    %cst_53 = arith.constant dense<0.000000e+00> : vector<8x8xf32>
    %61 = tpu.matmul %59, %60, %cst_53 {dimension_numbers = #tpu.dot_dimension_numbers<[1], [1], [0], [0], [0, 0, 1, 0], [], []>} : vector<8x16xbf16>, vector<8x16xbf16>, vector<8x8xf32> -> vector<8x8xf32>
    %cst_54 = arith.constant 2.500000e-01 : f32
    %62 = vector.broadcast %cst_54 : f32 to vector<8x8xf32>
    %63 = arith.mulf %61, %62 : vector<8x8xf32>
    %cst_55 = arith.constant -1.000000e+09 : f32
    %64 = vector.broadcast %cst_55 : f32 to vector<1x8xf32>
    %65 = arith.mulf %34, %64 : vector<1x8xf32>
    %66 = vector.broadcast %65 : vector<1x8xf32> to vector<8x8xf32>
    %67 = arith.addf %63, %66 : vector<8x8xf32>
    %cst_56 = arith.constant dense<0xFF800000> : vector<8xf32>
    %68 = vector.multi_reduction <maximumf>, %67, %cst_56 [1] : vector<8x8xf32> to vector<8xf32>
    %69 = vector.shape_cast %68 : vector<8xf32> to vector<8x1xf32>
    %70 = vector.broadcast %69 : vector<8x1xf32> to vector<8x8xf32>
    %71 = arith.subf %67, %70 : vector<8x8xf32>
    %72 = math.exp %71 : vector<8x8xf32>
    %cst_57 = arith.constant dense<0.000000e+00> : vector<8xf32>
    %73 = vector.multi_reduction <add>, %72, %cst_57 [1] : vector<8x8xf32> to vector<8xf32>
    %74 = vector.shape_cast %73 : vector<8xf32> to vector<8x1xf32>
    %75 = tpu.reciprocal %74 {approx = true} : vector<8x1xf32> -> vector<8x1xf32>
    %76 = vector.broadcast %75 : vector<8x1xf32> to vector<8x8xf32>
    %77 = arith.mulf %72, %76 : vector<8x8xf32>
    %78 = arith.truncf %77 : vector<8x8xf32> to vector<8x8xbf16>
    %79 = arith.truncf %58 : vector<8x16xf32> to vector<8x16xbf16>
    %cst_58 = arith.constant dense<0.000000e+00> : vector<8x16xf32>
    %80 = tpu.matmul %78, %79, %cst_58 {dimension_numbers = #tpu.dot_dimension_numbers<[1], [0], [0], [1], [0, 0, 1, 1], [], []>} : vector<8x8xbf16>, vector<8x16xbf16>, vector<8x16xf32> -> vector<8x16xf32>
    %81 = arith.truncf %80 : vector<8x16xf32> to vector<8x16xbf16>
    %c0_59 = arith.constant 0 : index
    %c0_60 = arith.constant 0 : index
    %c0_61 = arith.constant 0 : index
    %c0_62 = arith.constant 0 : index
    %82 = vector.load %arg15[%c0_59, %c0_60, %c0_61, %c0_62] : memref<2x2x16x32xbf16, #tpu.memory_space<vmem>>, vector<1x1x16x32xbf16>
    %83 = vector.shape_cast %82 : vector<1x1x16x32xbf16> to vector<16x32xbf16>
    %cst_63 = arith.constant dense<0.000000e+00> : vector<8x32xf32>
    %84 = tpu.matmul %81, %83, %cst_63 {dimension_numbers = #tpu.dot_dimension_numbers<[1], [0], [0], [1], [0, 0, 1, 1], [], []>} : vector<8x16xbf16>, vector<16x32xbf16>, vector<8x32xf32> -> vector<8x32xf32>
    %85 = vector.broadcast %37 : vector<1x32xf32> to vector<8x32xf32>
    %86 = arith.addf %85, %84 : vector<8x32xf32>
    %c0_64 = arith.constant 0 : index
    %c1 = arith.constant 1 : index
    %c0_65 = arith.constant 0 : index
    %c0_66 = arith.constant 0 : index
    %87 = vector.load %arg9[%c0_64, %c1, %c0_65, %c0_66] : memref<2x2x32x16xbf16, #tpu.memory_space<vmem>>, vector<1x1x32x16xbf16>
    %88 = vector.shape_cast %87 : vector<1x1x32x16xbf16> to vector<32x16xbf16>
    %cst_67 = arith.constant dense<0.000000e+00> : vector<8x16xf32>
    %89 = tpu.matmul %35, %88, %cst_67 {dimension_numbers = #tpu.dot_dimension_numbers<[1], [0], [0], [1], [0, 0, 1, 1], [], []>} : vector<8x32xbf16>, vector<32x16xbf16>, vector<8x16xf32> -> vector<8x16xf32>
    %c0_68 = arith.constant 0 : index
    %c1_69 = arith.constant 1 : index
    %c0_70 = arith.constant 0 : index
    %c0_71 = arith.constant 0 : index
    %90 = vector.load %arg10[%c0_68, %c1_69, %c0_70, %c0_71] : memref<2x2x1x16xf32, #tpu.memory_space<vmem>>, vector<1x1x1x16xf32>
    %91 = vector.shape_cast %90 : vector<1x1x1x16xf32> to vector<1x16xf32>
    %92 = vector.broadcast %91 : vector<1x16xf32> to vector<8x16xf32>
    %93 = arith.addf %89, %92 : vector<8x16xf32>
    %c0_72 = arith.constant 0 : index
    %c1_73 = arith.constant 1 : index
    %c0_74 = arith.constant 0 : index
    %c0_75 = arith.constant 0 : index
    %94 = vector.load %arg11[%c0_72, %c1_73, %c0_74, %c0_75] : memref<2x2x32x16xbf16, #tpu.memory_space<vmem>>, vector<1x1x32x16xbf16>
    %95 = vector.shape_cast %94 : vector<1x1x32x16xbf16> to vector<32x16xbf16>
    %cst_76 = arith.constant dense<0.000000e+00> : vector<8x16xf32>
    %96 = tpu.matmul %35, %95, %cst_76 {dimension_numbers = #tpu.dot_dimension_numbers<[1], [0], [0], [1], [0, 0, 1, 1], [], []>} : vector<8x32xbf16>, vector<32x16xbf16>, vector<8x16xf32> -> vector<8x16xf32>
    %c0_77 = arith.constant 0 : index
    %c1_78 = arith.constant 1 : index
    %c0_79 = arith.constant 0 : index
    %c0_80 = arith.constant 0 : index
    %97 = vector.load %arg12[%c0_77, %c1_78, %c0_79, %c0_80] : memref<2x2x1x16xf32, #tpu.memory_space<vmem>>, vector<1x1x1x16xf32>
    %98 = vector.shape_cast %97 : vector<1x1x1x16xf32> to vector<1x16xf32>
    %99 = vector.broadcast %98 : vector<1x16xf32> to vector<8x16xf32>
    %100 = arith.addf %96, %99 : vector<8x16xf32>
    %c0_81 = arith.constant 0 : index
    %c1_82 = arith.constant 1 : index
    %c0_83 = arith.constant 0 : index
    %c0_84 = arith.constant 0 : index
    %101 = vector.load %arg13[%c0_81, %c1_82, %c0_83, %c0_84] : memref<2x2x32x16xbf16, #tpu.memory_space<vmem>>, vector<1x1x32x16xbf16>
    %102 = vector.shape_cast %101 : vector<1x1x32x16xbf16> to vector<32x16xbf16>
    %cst_85 = arith.constant dense<0.000000e+00> : vector<8x16xf32>
    %103 = tpu.matmul %35, %102, %cst_85 {dimension_numbers = #tpu.dot_dimension_numbers<[1], [0], [0], [1], [0, 0, 1, 1], [], []>} : vector<8x32xbf16>, vector<32x16xbf16>, vector<8x16xf32> -> vector<8x16xf32>
    %c0_86 = arith.constant 0 : index
    %c1_87 = arith.constant 1 : index
    %c0_88 = arith.constant 0 : index
    %c0_89 = arith.constant 0 : index
    %104 = vector.load %arg14[%c0_86, %c1_87, %c0_88, %c0_89] : memref<2x2x1x16xf32, #tpu.memory_space<vmem>>, vector<1x1x1x16xf32>
    %105 = vector.shape_cast %104 : vector<1x1x1x16xf32> to vector<1x16xf32>
    %106 = vector.broadcast %105 : vector<1x16xf32> to vector<8x16xf32>
    %107 = arith.addf %103, %106 : vector<8x16xf32>
    %108 = arith.truncf %93 : vector<8x16xf32> to vector<8x16xbf16>
    %109 = arith.truncf %100 : vector<8x16xf32> to vector<8x16xbf16>
    %cst_90 = arith.constant dense<0.000000e+00> : vector<8x8xf32>
    %110 = tpu.matmul %108, %109, %cst_90 {dimension_numbers = #tpu.dot_dimension_numbers<[1], [1], [0], [0], [0, 0, 1, 0], [], []>} : vector<8x16xbf16>, vector<8x16xbf16>, vector<8x8xf32> -> vector<8x8xf32>
    %cst_91 = arith.constant 2.500000e-01 : f32
    %111 = vector.broadcast %cst_91 : f32 to vector<8x8xf32>
    %112 = arith.mulf %110, %111 : vector<8x8xf32>
    %cst_92 = arith.constant -1.000000e+09 : f32
    %113 = vector.broadcast %cst_92 : f32 to vector<1x8xf32>
    %114 = arith.mulf %34, %113 : vector<1x8xf32>
    %115 = vector.broadcast %114 : vector<1x8xf32> to vector<8x8xf32>
    %116 = arith.addf %112, %115 : vector<8x8xf32>
    %cst_93 = arith.constant dense<0xFF800000> : vector<8xf32>
    %117 = vector.multi_reduction <maximumf>, %116, %cst_93 [1] : vector<8x8xf32> to vector<8xf32>
    %118 = vector.shape_cast %117 : vector<8xf32> to vector<8x1xf32>
    %119 = vector.broadcast %118 : vector<8x1xf32> to vector<8x8xf32>
    %120 = arith.subf %116, %119 : vector<8x8xf32>
    %121 = math.exp %120 : vector<8x8xf32>
    %cst_94 = arith.constant dense<0.000000e+00> : vector<8xf32>
    %122 = vector.multi_reduction <add>, %121, %cst_94 [1] : vector<8x8xf32> to vector<8xf32>
    %123 = vector.shape_cast %122 : vector<8xf32> to vector<8x1xf32>
    %124 = tpu.reciprocal %123 {approx = true} : vector<8x1xf32> -> vector<8x1xf32>
    %125 = vector.broadcast %124 : vector<8x1xf32> to vector<8x8xf32>
    %126 = arith.mulf %121, %125 : vector<8x8xf32>
    %127 = arith.truncf %126 : vector<8x8xf32> to vector<8x8xbf16>
    %128 = arith.truncf %107 : vector<8x16xf32> to vector<8x16xbf16>
    %cst_95 = arith.constant dense<0.000000e+00> : vector<8x16xf32>
    %129 = tpu.matmul %127, %128, %cst_95 {dimension_numbers = #tpu.dot_dimension_numbers<[1], [0], [0], [1], [0, 0, 1, 1], [], []>} : vector<8x8xbf16>, vector<8x16xbf16>, vector<8x16xf32> -> vector<8x16xf32>
    %130 = arith.truncf %129 : vector<8x16xf32> to vector<8x16xbf16>
    %c0_96 = arith.constant 0 : index
    %c1_97 = arith.constant 1 : index
    %c0_98 = arith.constant 0 : index
    %c0_99 = arith.constant 0 : index
    %131 = vector.load %arg15[%c0_96, %c1_97, %c0_98, %c0_99] : memref<2x2x16x32xbf16, #tpu.memory_space<vmem>>, vector<1x1x16x32xbf16>
    %132 = vector.shape_cast %131 : vector<1x1x16x32xbf16> to vector<16x32xbf16>
    %cst_100 = arith.constant dense<0.000000e+00> : vector<8x32xf32>
    %133 = tpu.matmul %130, %132, %cst_100 {dimension_numbers = #tpu.dot_dimension_numbers<[1], [0], [0], [1], [0, 0, 1, 1], [], []>} : vector<8x16xbf16>, vector<16x32xbf16>, vector<8x32xf32> -> vector<8x32xf32>
    %134 = arith.addf %86, %133 : vector<8x32xf32>
    %135 = arith.addf %32, %134 : vector<8x32xf32>
    %c0_101 = arith.constant 0 : index
    %c0_102 = arith.constant 0 : index
    %c0_103 = arith.constant 0 : index
    %136 = vector.load %arg21[%c0_101, %c0_102, %c0_103] : memref<2x1x32xf32, #tpu.memory_space<vmem>>, vector<1x1x32xf32>
    %137 = vector.shape_cast %136 : vector<1x1x32xf32> to vector<1x32xf32>
    %c0_104 = arith.constant 0 : index
    %c0_105 = arith.constant 0 : index
    %c0_106 = arith.constant 0 : index
    %138 = vector.load %arg22[%c0_104, %c0_105, %c0_106] : memref<2x1x32xf32, #tpu.memory_space<vmem>>, vector<1x1x32xf32>
    %139 = vector.shape_cast %138 : vector<1x1x32xf32> to vector<1x32xf32>
    %cst_107 = arith.constant dense<0.000000e+00> : vector<8xf32>
    %140 = vector.multi_reduction <add>, %135, %cst_107 [1] : vector<8x32xf32> to vector<8xf32>
    %141 = vector.shape_cast %140 : vector<8xf32> to vector<8x1xf32>
    %cst_108 = arith.constant 3.200000e+01 : f32
    %142 = vector.broadcast %cst_108 : f32 to vector<8x1xf32>
    %143 = arith.divf %141, %142 : vector<8x1xf32>
    %144 = vector.broadcast %143 : vector<8x1xf32> to vector<8x32xf32>
    %145 = arith.subf %135, %144 : vector<8x32xf32>
    %146 = arith.mulf %145, %145 : vector<8x32xf32>
    %cst_109 = arith.constant dense<0.000000e+00> : vector<8xf32>
    %147 = vector.multi_reduction <add>, %146, %cst_109 [1] : vector<8x32xf32> to vector<8xf32>
    %148 = vector.shape_cast %147 : vector<8xf32> to vector<8x1xf32>
    %cst_110 = arith.constant 3.200000e+01 : f32
    %149 = vector.broadcast %cst_110 : f32 to vector<8x1xf32>
    %150 = arith.divf %148, %149 : vector<8x1xf32>
    %cst_111 = arith.constant 9.99999974E-6 : f32
    %151 = vector.broadcast %cst_111 : f32 to vector<8x1xf32>
    %152 = arith.addf %150, %151 : vector<8x1xf32>
    %153 = math.rsqrt %152 : vector<8x1xf32>
    %154 = vector.broadcast %153 : vector<8x1xf32> to vector<8x32xf32>
    %155 = arith.mulf %145, %154 : vector<8x32xf32>
    %156 = vector.broadcast %137 : vector<1x32xf32> to vector<8x32xf32>
    %157 = arith.mulf %155, %156 : vector<8x32xf32>
    %158 = vector.broadcast %139 : vector<1x32xf32> to vector<8x32xf32>
    %159 = arith.addf %157, %158 : vector<8x32xf32>
    %c0_112 = arith.constant 0 : index
    %c0_113 = arith.constant 0 : index
    %c0_114 = arith.constant 0 : index
    %160 = vector.load %arg17[%c0_112, %c0_113, %c0_114] : memref<2x32x64xbf16, #tpu.memory_space<vmem>>, vector<1x32x64xbf16>
    %161 = vector.shape_cast %160 : vector<1x32x64xbf16> to vector<32x64xbf16>
    %162 = arith.truncf %159 : vector<8x32xf32> to vector<8x32xbf16>
    %cst_115 = arith.constant dense<0.000000e+00> : vector<8x64xf32>
    %163 = tpu.matmul %162, %161, %cst_115 {dimension_numbers = #tpu.dot_dimension_numbers<[1], [0], [0], [1], [0, 0, 1, 1], [], []>} : vector<8x32xbf16>, vector<32x64xbf16>, vector<8x64xf32> -> vector<8x64xf32>
    %c0_116 = arith.constant 0 : index
    %c0_117 = arith.constant 0 : index
    %c0_118 = arith.constant 0 : index
    %164 = vector.load %arg18[%c0_116, %c0_117, %c0_118] : memref<2x1x64xf32, #tpu.memory_space<vmem>>, vector<1x1x64xf32>
    %165 = vector.shape_cast %164 : vector<1x1x64xf32> to vector<1x64xf32>
    %166 = vector.broadcast %165 : vector<1x64xf32> to vector<8x64xf32>
    %167 = arith.addf %163, %166 : vector<8x64xf32>
    %cst_119 = arith.constant 0.000000e+00 : f32
    %168 = vector.broadcast %cst_119 : f32 to vector<8x64xf32>
    %169 = arith.maximumf %167, %168 : vector<8x64xf32>
    %c0_120 = arith.constant 0 : index
    %c0_121 = arith.constant 0 : index
    %c0_122 = arith.constant 0 : index
    %170 = vector.load %arg19[%c0_120, %c0_121, %c0_122] : memref<2x64x32xbf16, #tpu.memory_space<vmem>>, vector<1x64x32xbf16>
    %171 = vector.shape_cast %170 : vector<1x64x32xbf16> to vector<64x32xbf16>
    %172 = arith.truncf %169 : vector<8x64xf32> to vector<8x64xbf16>
    %cst_123 = arith.constant dense<0.000000e+00> : vector<8x32xf32>
    %173 = tpu.matmul %172, %171, %cst_123 {dimension_numbers = #tpu.dot_dimension_numbers<[1], [0], [0], [1], [0, 0, 1, 1], [], []>} : vector<8x64xbf16>, vector<64x32xbf16>, vector<8x32xf32> -> vector<8x32xf32>
    %c0_124 = arith.constant 0 : index
    %c0_125 = arith.constant 0 : index
    %c0_126 = arith.constant 0 : index
    %174 = vector.load %arg20[%c0_124, %c0_125, %c0_126] : memref<2x1x32xf32, #tpu.memory_space<vmem>>, vector<1x1x32xf32>
    %175 = vector.shape_cast %174 : vector<1x1x32xf32> to vector<1x32xf32>
    %176 = vector.broadcast %175 : vector<1x32xf32> to vector<8x32xf32>
    %177 = arith.addf %173, %176 : vector<8x32xf32>
    %178 = arith.addf %159, %177 : vector<8x32xf32>
    %c0_127 = arith.constant 0 : index
    %c0_128 = arith.constant 0 : index
    %c0_129 = arith.constant 0 : index
    %179 = vector.load %arg23[%c0_127, %c0_128, %c0_129] : memref<2x1x32xf32, #tpu.memory_space<vmem>>, vector<1x1x32xf32>
    %180 = vector.shape_cast %179 : vector<1x1x32xf32> to vector<1x32xf32>
    %c0_130 = arith.constant 0 : index
    %c0_131 = arith.constant 0 : index
    %c0_132 = arith.constant 0 : index
    %181 = vector.load %arg24[%c0_130, %c0_131, %c0_132] : memref<2x1x32xf32, #tpu.memory_space<vmem>>, vector<1x1x32xf32>
    %182 = vector.shape_cast %181 : vector<1x1x32xf32> to vector<1x32xf32>
    %cst_133 = arith.constant dense<0.000000e+00> : vector<8xf32>
    %183 = vector.multi_reduction <add>, %178, %cst_133 [1] : vector<8x32xf32> to vector<8xf32>
    %184 = vector.shape_cast %183 : vector<8xf32> to vector<8x1xf32>
    %cst_134 = arith.constant 3.200000e+01 : f32
    %185 = vector.broadcast %cst_134 : f32 to vector<8x1xf32>
    %186 = arith.divf %184, %185 : vector<8x1xf32>
    %187 = vector.broadcast %186 : vector<8x1xf32> to vector<8x32xf32>
    %188 = arith.subf %178, %187 : vector<8x32xf32>
    %189 = arith.mulf %188, %188 : vector<8x32xf32>
    %cst_135 = arith.constant dense<0.000000e+00> : vector<8xf32>
    %190 = vector.multi_reduction <add>, %189, %cst_135 [1] : vector<8x32xf32> to vector<8xf32>
    %191 = vector.shape_cast %190 : vector<8xf32> to vector<8x1xf32>
    %cst_136 = arith.constant 3.200000e+01 : f32
    %192 = vector.broadcast %cst_136 : f32 to vector<8x1xf32>
    %193 = arith.divf %191, %192 : vector<8x1xf32>
    %cst_137 = arith.constant 9.99999974E-6 : f32
    %194 = vector.broadcast %cst_137 : f32 to vector<8x1xf32>
    %195 = arith.addf %193, %194 : vector<8x1xf32>
    %196 = math.rsqrt %195 : vector<8x1xf32>
    %197 = vector.broadcast %196 : vector<8x1xf32> to vector<8x32xf32>
    %198 = arith.mulf %188, %197 : vector<8x32xf32>
    %199 = vector.broadcast %180 : vector<1x32xf32> to vector<8x32xf32>
    %200 = arith.mulf %198, %199 : vector<8x32xf32>
    %201 = vector.broadcast %182 : vector<1x32xf32> to vector<8x32xf32>
    %202 = arith.addf %200, %201 : vector<8x32xf32>
    %203 = arith.truncf %202 : vector<8x32xf32> to vector<8x32xbf16>
    %c1_138 = arith.constant 1 : index
    %c0_139 = arith.constant 0 : index
    %c0_140 = arith.constant 0 : index
    %204 = vector.load %arg16[%c1_138, %c0_139, %c0_140] : memref<2x1x32xf32, #tpu.memory_space<vmem>>, vector<1x1x32xf32>
    %205 = vector.shape_cast %204 : vector<1x1x32xf32> to vector<1x32xf32>
    %c1_141 = arith.constant 1 : index
    %c0_142 = arith.constant 0 : index
    %c0_143 = arith.constant 0 : index
    %c0_144 = arith.constant 0 : index
    %206 = vector.load %arg9[%c1_141, %c0_142, %c0_143, %c0_144] : memref<2x2x32x16xbf16, #tpu.memory_space<vmem>>, vector<1x1x32x16xbf16>
    %207 = vector.shape_cast %206 : vector<1x1x32x16xbf16> to vector<32x16xbf16>
    %cst_145 = arith.constant dense<0.000000e+00> : vector<8x16xf32>
    %208 = tpu.matmul %203, %207, %cst_145 {dimension_numbers = #tpu.dot_dimension_numbers<[1], [0], [0], [1], [0, 0, 1, 1], [], []>} : vector<8x32xbf16>, vector<32x16xbf16>, vector<8x16xf32> -> vector<8x16xf32>
    %c1_146 = arith.constant 1 : index
    %c0_147 = arith.constant 0 : index
    %c0_148 = arith.constant 0 : index
    %c0_149 = arith.constant 0 : index
    %209 = vector.load %arg10[%c1_146, %c0_147, %c0_148, %c0_149] : memref<2x2x1x16xf32, #tpu.memory_space<vmem>>, vector<1x1x1x16xf32>
    %210 = vector.shape_cast %209 : vector<1x1x1x16xf32> to vector<1x16xf32>
    %211 = vector.broadcast %210 : vector<1x16xf32> to vector<8x16xf32>
    %212 = arith.addf %208, %211 : vector<8x16xf32>
    %c1_150 = arith.constant 1 : index
    %c0_151 = arith.constant 0 : index
    %c0_152 = arith.constant 0 : index
    %c0_153 = arith.constant 0 : index
    %213 = vector.load %arg11[%c1_150, %c0_151, %c0_152, %c0_153] : memref<2x2x32x16xbf16, #tpu.memory_space<vmem>>, vector<1x1x32x16xbf16>
    %214 = vector.shape_cast %213 : vector<1x1x32x16xbf16> to vector<32x16xbf16>
    %cst_154 = arith.constant dense<0.000000e+00> : vector<8x16xf32>
    %215 = tpu.matmul %203, %214, %cst_154 {dimension_numbers = #tpu.dot_dimension_numbers<[1], [0], [0], [1], [0, 0, 1, 1], [], []>} : vector<8x32xbf16>, vector<32x16xbf16>, vector<8x16xf32> -> vector<8x16xf32>
    %c1_155 = arith.constant 1 : index
    %c0_156 = arith.constant 0 : index
    %c0_157 = arith.constant 0 : index
    %c0_158 = arith.constant 0 : index
    %216 = vector.load %arg12[%c1_155, %c0_156, %c0_157, %c0_158] : memref<2x2x1x16xf32, #tpu.memory_space<vmem>>, vector<1x1x1x16xf32>
    %217 = vector.shape_cast %216 : vector<1x1x1x16xf32> to vector<1x16xf32>
    %218 = vector.broadcast %217 : vector<1x16xf32> to vector<8x16xf32>
    %219 = arith.addf %215, %218 : vector<8x16xf32>
    %c1_159 = arith.constant 1 : index
    %c0_160 = arith.constant 0 : index
    %c0_161 = arith.constant 0 : index
    %c0_162 = arith.constant 0 : index
    %220 = vector.load %arg13[%c1_159, %c0_160, %c0_161, %c0_162] : memref<2x2x32x16xbf16, #tpu.memory_space<vmem>>, vector<1x1x32x16xbf16>
    %221 = vector.shape_cast %220 : vector<1x1x32x16xbf16> to vector<32x16xbf16>
    %cst_163 = arith.constant dense<0.000000e+00> : vector<8x16xf32>
    %222 = tpu.matmul %203, %221, %cst_163 {dimension_numbers = #tpu.dot_dimension_numbers<[1], [0], [0], [1], [0, 0, 1, 1], [], []>} : vector<8x32xbf16>, vector<32x16xbf16>, vector<8x16xf32> -> vector<8x16xf32>
    %c1_164 = arith.constant 1 : index
    %c0_165 = arith.constant 0 : index
    %c0_166 = arith.constant 0 : index
    %c0_167 = arith.constant 0 : index
    %223 = vector.load %arg14[%c1_164, %c0_165, %c0_166, %c0_167] : memref<2x2x1x16xf32, #tpu.memory_space<vmem>>, vector<1x1x1x16xf32>
    %224 = vector.shape_cast %223 : vector<1x1x1x16xf32> to vector<1x16xf32>
    %225 = vector.broadcast %224 : vector<1x16xf32> to vector<8x16xf32>
    %226 = arith.addf %222, %225 : vector<8x16xf32>
    %227 = arith.truncf %212 : vector<8x16xf32> to vector<8x16xbf16>
    %228 = arith.truncf %219 : vector<8x16xf32> to vector<8x16xbf16>
    %cst_168 = arith.constant dense<0.000000e+00> : vector<8x8xf32>
    %229 = tpu.matmul %227, %228, %cst_168 {dimension_numbers = #tpu.dot_dimension_numbers<[1], [1], [0], [0], [0, 0, 1, 0], [], []>} : vector<8x16xbf16>, vector<8x16xbf16>, vector<8x8xf32> -> vector<8x8xf32>
    %cst_169 = arith.constant 2.500000e-01 : f32
    %230 = vector.broadcast %cst_169 : f32 to vector<8x8xf32>
    %231 = arith.mulf %229, %230 : vector<8x8xf32>
    %cst_170 = arith.constant -1.000000e+09 : f32
    %232 = vector.broadcast %cst_170 : f32 to vector<1x8xf32>
    %233 = arith.mulf %34, %232 : vector<1x8xf32>
    %234 = vector.broadcast %233 : vector<1x8xf32> to vector<8x8xf32>
    %235 = arith.addf %231, %234 : vector<8x8xf32>
    %cst_171 = arith.constant dense<0xFF800000> : vector<8xf32>
    %236 = vector.multi_reduction <maximumf>, %235, %cst_171 [1] : vector<8x8xf32> to vector<8xf32>
    %237 = vector.shape_cast %236 : vector<8xf32> to vector<8x1xf32>
    %238 = vector.broadcast %237 : vector<8x1xf32> to vector<8x8xf32>
    %239 = arith.subf %235, %238 : vector<8x8xf32>
    %240 = math.exp %239 : vector<8x8xf32>
    %cst_172 = arith.constant dense<0.000000e+00> : vector<8xf32>
    %241 = vector.multi_reduction <add>, %240, %cst_172 [1] : vector<8x8xf32> to vector<8xf32>
    %242 = vector.shape_cast %241 : vector<8xf32> to vector<8x1xf32>
    %243 = tpu.reciprocal %242 {approx = true} : vector<8x1xf32> -> vector<8x1xf32>
    %244 = vector.broadcast %243 : vector<8x1xf32> to vector<8x8xf32>
    %245 = arith.mulf %240, %244 : vector<8x8xf32>
    %246 = arith.truncf %245 : vector<8x8xf32> to vector<8x8xbf16>
    %247 = arith.truncf %226 : vector<8x16xf32> to vector<8x16xbf16>
    %cst_173 = arith.constant dense<0.000000e+00> : vector<8x16xf32>
    %248 = tpu.matmul %246, %247, %cst_173 {dimension_numbers = #tpu.dot_dimension_numbers<[1], [0], [0], [1], [0, 0, 1, 1], [], []>} : vector<8x8xbf16>, vector<8x16xbf16>, vector<8x16xf32> -> vector<8x16xf32>
    %249 = arith.truncf %248 : vector<8x16xf32> to vector<8x16xbf16>
    %c1_174 = arith.constant 1 : index
    %c0_175 = arith.constant 0 : index
    %c0_176 = arith.constant 0 : index
    %c0_177 = arith.constant 0 : index
    %250 = vector.load %arg15[%c1_174, %c0_175, %c0_176, %c0_177] : memref<2x2x16x32xbf16, #tpu.memory_space<vmem>>, vector<1x1x16x32xbf16>
    %251 = vector.shape_cast %250 : vector<1x1x16x32xbf16> to vector<16x32xbf16>
    %cst_178 = arith.constant dense<0.000000e+00> : vector<8x32xf32>
    %252 = tpu.matmul %249, %251, %cst_178 {dimension_numbers = #tpu.dot_dimension_numbers<[1], [0], [0], [1], [0, 0, 1, 1], [], []>} : vector<8x16xbf16>, vector<16x32xbf16>, vector<8x32xf32> -> vector<8x32xf32>
    %253 = vector.broadcast %205 : vector<1x32xf32> to vector<8x32xf32>
    %254 = arith.addf %253, %252 : vector<8x32xf32>
    %c1_179 = arith.constant 1 : index
    %c1_180 = arith.constant 1 : index
    %c0_181 = arith.constant 0 : index
    %c0_182 = arith.constant 0 : index
    %255 = vector.load %arg9[%c1_179, %c1_180, %c0_181, %c0_182] : memref<2x2x32x16xbf16, #tpu.memory_space<vmem>>, vector<1x1x32x16xbf16>
    %256 = vector.shape_cast %255 : vector<1x1x32x16xbf16> to vector<32x16xbf16>
    %cst_183 = arith.constant dense<0.000000e+00> : vector<8x16xf32>
    %257 = tpu.matmul %203, %256, %cst_183 {dimension_numbers = #tpu.dot_dimension_numbers<[1], [0], [0], [1], [0, 0, 1, 1], [], []>} : vector<8x32xbf16>, vector<32x16xbf16>, vector<8x16xf32> -> vector<8x16xf32>
    %c1_184 = arith.constant 1 : index
    %c1_185 = arith.constant 1 : index
    %c0_186 = arith.constant 0 : index
    %c0_187 = arith.constant 0 : index
    %258 = vector.load %arg10[%c1_184, %c1_185, %c0_186, %c0_187] : memref<2x2x1x16xf32, #tpu.memory_space<vmem>>, vector<1x1x1x16xf32>
    %259 = vector.shape_cast %258 : vector<1x1x1x16xf32> to vector<1x16xf32>
    %260 = vector.broadcast %259 : vector<1x16xf32> to vector<8x16xf32>
    %261 = arith.addf %257, %260 : vector<8x16xf32>
    %c1_188 = arith.constant 1 : index
    %c1_189 = arith.constant 1 : index
    %c0_190 = arith.constant 0 : index
    %c0_191 = arith.constant 0 : index
    %262 = vector.load %arg11[%c1_188, %c1_189, %c0_190, %c0_191] : memref<2x2x32x16xbf16, #tpu.memory_space<vmem>>, vector<1x1x32x16xbf16>
    %263 = vector.shape_cast %262 : vector<1x1x32x16xbf16> to vector<32x16xbf16>
    %cst_192 = arith.constant dense<0.000000e+00> : vector<8x16xf32>
    %264 = tpu.matmul %203, %263, %cst_192 {dimension_numbers = #tpu.dot_dimension_numbers<[1], [0], [0], [1], [0, 0, 1, 1], [], []>} : vector<8x32xbf16>, vector<32x16xbf16>, vector<8x16xf32> -> vector<8x16xf32>
    %c1_193 = arith.constant 1 : index
    %c1_194 = arith.constant 1 : index
    %c0_195 = arith.constant 0 : index
    %c0_196 = arith.constant 0 : index
    %265 = vector.load %arg12[%c1_193, %c1_194, %c0_195, %c0_196] : memref<2x2x1x16xf32, #tpu.memory_space<vmem>>, vector<1x1x1x16xf32>
    %266 = vector.shape_cast %265 : vector<1x1x1x16xf32> to vector<1x16xf32>
    %267 = vector.broadcast %266 : vector<1x16xf32> to vector<8x16xf32>
    %268 = arith.addf %264, %267 : vector<8x16xf32>
    %c1_197 = arith.constant 1 : index
    %c1_198 = arith.constant 1 : index
    %c0_199 = arith.constant 0 : index
    %c0_200 = arith.constant 0 : index
    %269 = vector.load %arg13[%c1_197, %c1_198, %c0_199, %c0_200] : memref<2x2x32x16xbf16, #tpu.memory_space<vmem>>, vector<1x1x32x16xbf16>
    %270 = vector.shape_cast %269 : vector<1x1x32x16xbf16> to vector<32x16xbf16>
    %cst_201 = arith.constant dense<0.000000e+00> : vector<8x16xf32>
    %271 = tpu.matmul %203, %270, %cst_201 {dimension_numbers = #tpu.dot_dimension_numbers<[1], [0], [0], [1], [0, 0, 1, 1], [], []>} : vector<8x32xbf16>, vector<32x16xbf16>, vector<8x16xf32> -> vector<8x16xf32>
    %c1_202 = arith.constant 1 : index
    %c1_203 = arith.constant 1 : index
    %c0_204 = arith.constant 0 : index
    %c0_205 = arith.constant 0 : index
    %272 = vector.load %arg14[%c1_202, %c1_203, %c0_204, %c0_205] : memref<2x2x1x16xf32, #tpu.memory_space<vmem>>, vector<1x1x1x16xf32>
    %273 = vector.shape_cast %272 : vector<1x1x1x16xf32> to vector<1x16xf32>
    %274 = vector.broadcast %273 : vector<1x16xf32> to vector<8x16xf32>
    %275 = arith.addf %271, %274 : vector<8x16xf32>
    %276 = arith.truncf %261 : vector<8x16xf32> to vector<8x16xbf16>
    %277 = arith.truncf %268 : vector<8x16xf32> to vector<8x16xbf16>
    %cst_206 = arith.constant dense<0.000000e+00> : vector<8x8xf32>
    %278 = tpu.matmul %276, %277, %cst_206 {dimension_numbers = #tpu.dot_dimension_numbers<[1], [1], [0], [0], [0, 0, 1, 0], [], []>} : vector<8x16xbf16>, vector<8x16xbf16>, vector<8x8xf32> -> vector<8x8xf32>
    %cst_207 = arith.constant 2.500000e-01 : f32
    %279 = vector.broadcast %cst_207 : f32 to vector<8x8xf32>
    %280 = arith.mulf %278, %279 : vector<8x8xf32>
    %cst_208 = arith.constant -1.000000e+09 : f32
    %281 = vector.broadcast %cst_208 : f32 to vector<1x8xf32>
    %282 = arith.mulf %34, %281 : vector<1x8xf32>
    %283 = vector.broadcast %282 : vector<1x8xf32> to vector<8x8xf32>
    %284 = arith.addf %280, %283 : vector<8x8xf32>
    %cst_209 = arith.constant dense<0xFF800000> : vector<8xf32>
    %285 = vector.multi_reduction <maximumf>, %284, %cst_209 [1] : vector<8x8xf32> to vector<8xf32>
    %286 = vector.shape_cast %285 : vector<8xf32> to vector<8x1xf32>
    %287 = vector.broadcast %286 : vector<8x1xf32> to vector<8x8xf32>
    %288 = arith.subf %284, %287 : vector<8x8xf32>
    %289 = math.exp %288 : vector<8x8xf32>
    %cst_210 = arith.constant dense<0.000000e+00> : vector<8xf32>
    %290 = vector.multi_reduction <add>, %289, %cst_210 [1] : vector<8x8xf32> to vector<8xf32>
    %291 = vector.shape_cast %290 : vector<8xf32> to vector<8x1xf32>
    %292 = tpu.reciprocal %291 {approx = true} : vector<8x1xf32> -> vector<8x1xf32>
    %293 = vector.broadcast %292 : vector<8x1xf32> to vector<8x8xf32>
    %294 = arith.mulf %289, %293 : vector<8x8xf32>
    %295 = arith.truncf %294 : vector<8x8xf32> to vector<8x8xbf16>
    %296 = arith.truncf %275 : vector<8x16xf32> to vector<8x16xbf16>
    %cst_211 = arith.constant dense<0.000000e+00> : vector<8x16xf32>
    %297 = tpu.matmul %295, %296, %cst_211 {dimension_numbers = #tpu.dot_dimension_numbers<[1], [0], [0], [1], [0, 0, 1, 1], [], []>} : vector<8x8xbf16>, vector<8x16xbf16>, vector<8x16xf32> -> vector<8x16xf32>
    %298 = arith.truncf %297 : vector<8x16xf32> to vector<8x16xbf16>
    %c1_212 = arith.constant 1 : index
    %c1_213 = arith.constant 1 : index
    %c0_214 = arith.constant 0 : index
    %c0_215 = arith.constant 0 : index
    %299 = vector.load %arg15[%c1_212, %c1_213, %c0_214, %c0_215] : memref<2x2x16x32xbf16, #tpu.memory_space<vmem>>, vector<1x1x16x32xbf16>
    %300 = vector.shape_cast %299 : vector<1x1x16x32xbf16> to vector<16x32xbf16>
    %cst_216 = arith.constant dense<0.000000e+00> : vector<8x32xf32>
    %301 = tpu.matmul %298, %300, %cst_216 {dimension_numbers = #tpu.dot_dimension_numbers<[1], [0], [0], [1], [0, 0, 1, 1], [], []>} : vector<8x16xbf16>, vector<16x32xbf16>, vector<8x32xf32> -> vector<8x32xf32>
    %302 = arith.addf %254, %301 : vector<8x32xf32>
    %303 = arith.addf %202, %302 : vector<8x32xf32>
    %c1_217 = arith.constant 1 : index
    %c0_218 = arith.constant 0 : index
    %c0_219 = arith.constant 0 : index
    %304 = vector.load %arg21[%c1_217, %c0_218, %c0_219] : memref<2x1x32xf32, #tpu.memory_space<vmem>>, vector<1x1x32xf32>
    %305 = vector.shape_cast %304 : vector<1x1x32xf32> to vector<1x32xf32>
    %c1_220 = arith.constant 1 : index
    %c0_221 = arith.constant 0 : index
    %c0_222 = arith.constant 0 : index
    %306 = vector.load %arg22[%c1_220, %c0_221, %c0_222] : memref<2x1x32xf32, #tpu.memory_space<vmem>>, vector<1x1x32xf32>
    %307 = vector.shape_cast %306 : vector<1x1x32xf32> to vector<1x32xf32>
    %cst_223 = arith.constant dense<0.000000e+00> : vector<8xf32>
    %308 = vector.multi_reduction <add>, %303, %cst_223 [1] : vector<8x32xf32> to vector<8xf32>
    %309 = vector.shape_cast %308 : vector<8xf32> to vector<8x1xf32>
    %cst_224 = arith.constant 3.200000e+01 : f32
    %310 = vector.broadcast %cst_224 : f32 to vector<8x1xf32>
    %311 = arith.divf %309, %310 : vector<8x1xf32>
    %312 = vector.broadcast %311 : vector<8x1xf32> to vector<8x32xf32>
    %313 = arith.subf %303, %312 : vector<8x32xf32>
    %314 = arith.mulf %313, %313 : vector<8x32xf32>
    %cst_225 = arith.constant dense<0.000000e+00> : vector<8xf32>
    %315 = vector.multi_reduction <add>, %314, %cst_225 [1] : vector<8x32xf32> to vector<8xf32>
    %316 = vector.shape_cast %315 : vector<8xf32> to vector<8x1xf32>
    %cst_226 = arith.constant 3.200000e+01 : f32
    %317 = vector.broadcast %cst_226 : f32 to vector<8x1xf32>
    %318 = arith.divf %316, %317 : vector<8x1xf32>
    %cst_227 = arith.constant 9.99999974E-6 : f32
    %319 = vector.broadcast %cst_227 : f32 to vector<8x1xf32>
    %320 = arith.addf %318, %319 : vector<8x1xf32>
    %321 = math.rsqrt %320 : vector<8x1xf32>
    %322 = vector.broadcast %321 : vector<8x1xf32> to vector<8x32xf32>
    %323 = arith.mulf %313, %322 : vector<8x32xf32>
    %324 = vector.broadcast %305 : vector<1x32xf32> to vector<8x32xf32>
    %325 = arith.mulf %323, %324 : vector<8x32xf32>
    %326 = vector.broadcast %307 : vector<1x32xf32> to vector<8x32xf32>
    %327 = arith.addf %325, %326 : vector<8x32xf32>
    %c1_228 = arith.constant 1 : index
    %c0_229 = arith.constant 0 : index
    %c0_230 = arith.constant 0 : index
    %328 = vector.load %arg17[%c1_228, %c0_229, %c0_230] : memref<2x32x64xbf16, #tpu.memory_space<vmem>>, vector<1x32x64xbf16>
    %329 = vector.shape_cast %328 : vector<1x32x64xbf16> to vector<32x64xbf16>
    %330 = arith.truncf %327 : vector<8x32xf32> to vector<8x32xbf16>
    %cst_231 = arith.constant dense<0.000000e+00> : vector<8x64xf32>
    %331 = tpu.matmul %330, %329, %cst_231 {dimension_numbers = #tpu.dot_dimension_numbers<[1], [0], [0], [1], [0, 0, 1, 1], [], []>} : vector<8x32xbf16>, vector<32x64xbf16>, vector<8x64xf32> -> vector<8x64xf32>
    %c1_232 = arith.constant 1 : index
    %c0_233 = arith.constant 0 : index
    %c0_234 = arith.constant 0 : index
    %332 = vector.load %arg18[%c1_232, %c0_233, %c0_234] : memref<2x1x64xf32, #tpu.memory_space<vmem>>, vector<1x1x64xf32>
    %333 = vector.shape_cast %332 : vector<1x1x64xf32> to vector<1x64xf32>
    %334 = vector.broadcast %333 : vector<1x64xf32> to vector<8x64xf32>
    %335 = arith.addf %331, %334 : vector<8x64xf32>
    %cst_235 = arith.constant 0.000000e+00 : f32
    %336 = vector.broadcast %cst_235 : f32 to vector<8x64xf32>
    %337 = arith.maximumf %335, %336 : vector<8x64xf32>
    %c1_236 = arith.constant 1 : index
    %c0_237 = arith.constant 0 : index
    %c0_238 = arith.constant 0 : index
    %338 = vector.load %arg19[%c1_236, %c0_237, %c0_238] : memref<2x64x32xbf16, #tpu.memory_space<vmem>>, vector<1x64x32xbf16>
    %339 = vector.shape_cast %338 : vector<1x64x32xbf16> to vector<64x32xbf16>
    %340 = arith.truncf %337 : vector<8x64xf32> to vector<8x64xbf16>
    %cst_239 = arith.constant dense<0.000000e+00> : vector<8x32xf32>
    %341 = tpu.matmul %340, %339, %cst_239 {dimension_numbers = #tpu.dot_dimension_numbers<[1], [0], [0], [1], [0, 0, 1, 1], [], []>} : vector<8x64xbf16>, vector<64x32xbf16>, vector<8x32xf32> -> vector<8x32xf32>
    %c1_240 = arith.constant 1 : index
    %c0_241 = arith.constant 0 : index
    %c0_242 = arith.constant 0 : index
    %342 = vector.load %arg20[%c1_240, %c0_241, %c0_242] : memref<2x1x32xf32, #tpu.memory_space<vmem>>, vector<1x1x32xf32>
    %343 = vector.shape_cast %342 : vector<1x1x32xf32> to vector<1x32xf32>
    %344 = vector.broadcast %343 : vector<1x32xf32> to vector<8x32xf32>
    %345 = arith.addf %341, %344 : vector<8x32xf32>
    %346 = arith.addf %327, %345 : vector<8x32xf32>
    %c1_243 = arith.constant 1 : index
    %c0_244 = arith.constant 0 : index
    %c0_245 = arith.constant 0 : index
    %347 = vector.load %arg23[%c1_243, %c0_244, %c0_245] : memref<2x1x32xf32, #tpu.memory_space<vmem>>, vector<1x1x32xf32>
    %348 = vector.shape_cast %347 : vector<1x1x32xf32> to vector<1x32xf32>
    %c1_246 = arith.constant 1 : index
    %c0_247 = arith.constant 0 : index
    %c0_248 = arith.constant 0 : index
    %349 = vector.load %arg24[%c1_246, %c0_247, %c0_248] : memref<2x1x32xf32, #tpu.memory_space<vmem>>, vector<1x1x32xf32>
    %350 = vector.shape_cast %349 : vector<1x1x32xf32> to vector<1x32xf32>
    %cst_249 = arith.constant dense<0.000000e+00> : vector<8xf32>
    %351 = vector.multi_reduction <add>, %346, %cst_249 [1] : vector<8x32xf32> to vector<8xf32>
    %352 = vector.shape_cast %351 : vector<8xf32> to vector<8x1xf32>
    %cst_250 = arith.constant 3.200000e+01 : f32
    %353 = vector.broadcast %cst_250 : f32 to vector<8x1xf32>
    %354 = arith.divf %352, %353 : vector<8x1xf32>
    %355 = vector.broadcast %354 : vector<8x1xf32> to vector<8x32xf32>
    %356 = arith.subf %346, %355 : vector<8x32xf32>
    %357 = arith.mulf %356, %356 : vector<8x32xf32>
    %cst_251 = arith.constant dense<0.000000e+00> : vector<8xf32>
    %358 = vector.multi_reduction <add>, %357, %cst_251 [1] : vector<8x32xf32> to vector<8xf32>
    %359 = vector.shape_cast %358 : vector<8xf32> to vector<8x1xf32>
    %cst_252 = arith.constant 3.200000e+01 : f32
    %360 = vector.broadcast %cst_252 : f32 to vector<8x1xf32>
    %361 = arith.divf %359, %360 : vector<8x1xf32>
    %cst_253 = arith.constant 9.99999974E-6 : f32
    %362 = vector.broadcast %cst_253 : f32 to vector<8x1xf32>
    %363 = arith.addf %361, %362 : vector<8x1xf32>
    %364 = math.rsqrt %363 : vector<8x1xf32>
    %365 = vector.broadcast %364 : vector<8x1xf32> to vector<8x32xf32>
    %366 = arith.mulf %356, %365 : vector<8x32xf32>
    %367 = vector.broadcast %348 : vector<1x32xf32> to vector<8x32xf32>
    %368 = arith.mulf %366, %367 : vector<8x32xf32>
    %369 = vector.broadcast %350 : vector<1x32xf32> to vector<8x32xf32>
    %370 = arith.addf %368, %369 : vector<8x32xf32>
    %c0_254 = arith.constant 0 : index
    %c0_255 = arith.constant 0 : index
    %371 = vector.load %arg25[%c0_254, %c0_255] : memref<1x32xf32, #tpu.memory_space<vmem>>, vector<1x32xf32>
    %c0_256 = arith.constant 0 : index
    %c0_257 = arith.constant 0 : index
    %372 = vector.load %arg26[%c0_256, %c0_257] : memref<1x32xf32, #tpu.memory_space<vmem>>, vector<1x32xf32>
    %cst_258 = arith.constant dense<0.000000e+00> : vector<8xf32>
    %373 = vector.multi_reduction <add>, %370, %cst_258 [1] : vector<8x32xf32> to vector<8xf32>
    %374 = vector.shape_cast %373 : vector<8xf32> to vector<8x1xf32>
    %cst_259 = arith.constant 3.200000e+01 : f32
    %375 = vector.broadcast %cst_259 : f32 to vector<8x1xf32>
    %376 = arith.divf %374, %375 : vector<8x1xf32>
    %377 = vector.broadcast %376 : vector<8x1xf32> to vector<8x32xf32>
    %378 = arith.subf %370, %377 : vector<8x32xf32>
    %379 = arith.mulf %378, %378 : vector<8x32xf32>
    %cst_260 = arith.constant dense<0.000000e+00> : vector<8xf32>
    %380 = vector.multi_reduction <add>, %379, %cst_260 [1] : vector<8x32xf32> to vector<8xf32>
    %381 = vector.shape_cast %380 : vector<8xf32> to vector<8x1xf32>
    %cst_261 = arith.constant 3.200000e+01 : f32
    %382 = vector.broadcast %cst_261 : f32 to vector<8x1xf32>
    %383 = arith.divf %381, %382 : vector<8x1xf32>
    %cst_262 = arith.constant 9.99999974E-6 : f32
    %384 = vector.broadcast %cst_262 : f32 to vector<8x1xf32>
    %385 = arith.addf %383, %384 : vector<8x1xf32>
    %386 = math.rsqrt %385 : vector<8x1xf32>
    %387 = vector.broadcast %386 : vector<8x1xf32> to vector<8x32xf32>
    %388 = arith.mulf %378, %387 : vector<8x32xf32>
    %389 = vector.broadcast %371 : vector<1x32xf32> to vector<8x32xf32>
    %390 = arith.mulf %388, %389 : vector<8x32xf32>
    %391 = vector.broadcast %372 : vector<1x32xf32> to vector<8x32xf32>
    %392 = arith.addf %390, %391 : vector<8x32xf32>
    %393 = vector.extract_strided_slice %392 {offsets = [0, 0], sizes = [1, 32], strides = [1, 1]} : vector<8x32xf32> to vector<1x32xf32>
    %c0_263 = arith.constant 0 : index
    %c0_264 = arith.constant 0 : index
    %394 = vector.load %arg27[%c0_263, %c0_264] : memref<32x7xbf16, #tpu.memory_space<vmem>>, vector<32x7xbf16>
    %395 = arith.truncf %393 : vector<1x32xf32> to vector<1x32xbf16>
    %cst_265 = arith.constant dense<0.000000e+00> : vector<1x7xf32>
    %396 = tpu.matmul %395, %394, %cst_265 {dimension_numbers = #tpu.dot_dimension_numbers<[1], [0], [0], [1], [0, 0, 1, 1], [], []>} : vector<1x32xbf16>, vector<32x7xbf16>, vector<1x7xf32> -> vector<1x7xf32>
    %c0_266 = arith.constant 0 : index
    %c0_267 = arith.constant 0 : index
    %397 = vector.load %arg28[%c0_266, %c0_267] : memref<1x7xf32, #tpu.memory_space<vmem>>, vector<1x7xf32>
    %398 = arith.addf %396, %397 : vector<1x7xf32>
    %cst_268 = arith.constant dense<0xFF800000> : vector<1xf32>
    %399 = vector.multi_reduction <maximumf>, %398, %cst_268 [1] : vector<1x7xf32> to vector<1xf32>
    %400 = vector.shape_cast %399 : vector<1xf32> to vector<1x1xf32>
    %401 = vector.broadcast %400 : vector<1x1xf32> to vector<1x7xf32>
    %402 = arith.subf %398, %401 : vector<1x7xf32>
    %403 = math.exp %402 : vector<1x7xf32>
    %cst_269 = arith.constant dense<0.000000e+00> : vector<1xf32>
    %404 = vector.multi_reduction <add>, %403, %cst_269 [1] : vector<1x7xf32> to vector<1xf32>
    %405 = vector.shape_cast %404 : vector<1xf32> to vector<1x1xf32>
    %406 = vector.broadcast %405 : vector<1x1xf32> to vector<1x7xf32>
    %407 = arith.divf %403, %406 : vector<1x7xf32>
    %c0_270 = arith.constant 0 : index
    %c0_271 = arith.constant 0 : index
    %c0_272 = arith.constant 0 : index
    %408 = vector.load %arg33[%c0_270, %c0_271, %c0_272] : memref<1x1x7xf32, #tpu.memory_space<vmem>>, vector<1x1x7xf32>
    %409 = vector.shape_cast %408 : vector<1x1x7xf32> to vector<1x7xf32>
    %410 = vector.shape_cast %407 : vector<1x7xf32> to vector<1x1x7xf32>
    tpu.vector_store %arg33[%c0_270, %c0_271, %c0_272], %410 {strides = array<i32>} : memref<1x1x7xf32, #tpu.memory_space<vmem>>, vector<1x1x7xf32>,
    %c0_273 = arith.constant 0 : index
    %c0_274 = arith.constant 0 : index
    %411 = vector.load %arg29[%c0_273, %c0_274] : memref<32x16xbf16, #tpu.memory_space<vmem>>, vector<32x16xbf16>
    %412 = arith.truncf %392 : vector<8x32xf32> to vector<8x32xbf16>
    %cst_275 = arith.constant dense<0.000000e+00> : vector<8x16xf32>
    %413 = tpu.matmul %412, %411, %cst_275 {dimension_numbers = #tpu.dot_dimension_numbers<[1], [0], [0], [1], [0, 0, 1, 1], [], []>} : vector<8x32xbf16>, vector<32x16xbf16>, vector<8x16xf32> -> vector<8x16xf32>
    %c0_276 = arith.constant 0 : index
    %c0_277 = arith.constant 0 : index
    %414 = vector.load %arg30[%c0_276, %c0_277] : memref<1x16xf32, #tpu.memory_space<vmem>>, vector<1x16xf32>
    %415 = vector.broadcast %414 : vector<1x16xf32> to vector<8x16xf32>
    %416 = arith.addf %413, %415 : vector<8x16xf32>
    %cst_278 = arith.constant 0.000000e+00 : f32
    %417 = vector.broadcast %cst_278 : f32 to vector<8x16xf32>
    %418 = arith.cmpf oge, %416, %417 : vector<8x16xf32>
    %cst_279 = arith.constant 1.000000e-01 : f32
    %419 = vector.broadcast %cst_279 : f32 to vector<8x16xf32>
    %420 = arith.mulf %419, %416 : vector<8x16xf32>
    %421 = arith.select %418, %416, %420 : vector<8x16xi1>, vector<8x16xf32>
    %c0_280 = arith.constant 0 : index
    %c0_281 = arith.constant 0 : index
    %422 = vector.load %arg31[%c0_280, %c0_281] : memref<16x5xbf16, #tpu.memory_space<vmem>>, vector<16x5xbf16>
    %423 = arith.truncf %421 : vector<8x16xf32> to vector<8x16xbf16>
    %cst_282 = arith.constant dense<0.000000e+00> : vector<8x5xf32>
    %424 = tpu.matmul %423, %422, %cst_282 {dimension_numbers = #tpu.dot_dimension_numbers<[1], [0], [0], [1], [0, 0, 1, 1], [], []>} : vector<8x16xbf16>, vector<16x5xbf16>, vector<8x5xf32> -> vector<8x5xf32>
    %c0_283 = arith.constant 0 : index
    %c0_284 = arith.constant 0 : index
    %425 = vector.load %arg32[%c0_283, %c0_284] : memref<1x5xf32, #tpu.memory_space<vmem>>, vector<1x5xf32>
    %426 = vector.broadcast %425 : vector<1x5xf32> to vector<8x5xf32>
    %427 = arith.addf %424, %426 : vector<8x5xf32>
    %cst_285 = arith.constant 0.000000e+00 : f32
    %428 = vector.broadcast %cst_285 : f32 to vector<8x5xf32>
    %429 = arith.cmpf oge, %427, %428 : vector<8x5xf32>
    %cst_286 = arith.constant 1.000000e-01 : f32
    %430 = vector.broadcast %cst_286 : f32 to vector<8x5xf32>
    %431 = arith.mulf %430, %427 : vector<8x5xf32>
    %432 = arith.select %429, %427, %431 : vector<8x5xi1>, vector<8x5xf32>
    %c0_287 = arith.constant 0 : index
    %c0_288 = arith.constant 0 : index
    %c0_289 = arith.constant 0 : index
    %433 = vector.load %arg34[%c0_287, %c0_288, %c0_289] : memref<1x8x5xf32, #tpu.memory_space<vmem>>, vector<1x8x5xf32>
    %434 = vector.shape_cast %433 : vector<1x8x5xf32> to vector<8x5xf32>
    %435 = vector.shape_cast %432 : vector<8x5xf32> to vector<1x8x5xf32>
    tpu.vector_store %arg34[%c0_287, %c0_288, %c0_289], %435 {strides = array<i32>} : memref<1x8x5xf32, #tpu.memory_space<vmem>>, vector<1x8x5xf32>,
    return
  }
  func.func @transform_0(%arg0: i32) -> (i32, i32, i32) {
    %c0_i32 = arith.constant 0 : i32
    %c0_i32_0 = arith.constant 0 : i32
    %c0_i32_1 = arith.constant 0 : i32
    return %arg0, %c0_i32, %c0_i32_0 : i32, i32, i32
  }
  func.func @transform_1(%arg0: i32) -> (i32, i32, i32) {
    %c0_i32 = arith.constant 0 : i32
    %c0_i32_0 = arith.constant 0 : i32
    %c0_i32_1 = arith.constant 0 : i32
    return %arg0, %c0_i32, %c0_i32_0 : i32, i32, i32
  }
  func.func @transform_2(%arg0: i32) -> (i32, i32, i32) {
    %c0_i32 = arith.constant 0 : i32
    %c0_i32_0 = arith.constant 0 : i32
    %c0_i32_1 = arith.constant 0 : i32
    return %arg0, %c0_i32, %c0_i32_0 : i32, i32, i32
  }
  func.func @transform_3(%arg0: i32) -> (i32, i32) {
    %c0_i32 = arith.constant 0 : i32
    %c0_i32_0 = arith.constant 0 : i32
    %c0_i32_1 = arith.constant 0 : i32
    return %c0_i32, %c0_i32_0 : i32, i32
  }
  func.func @transform_4(%arg0: i32) -> (i32, i32) {
    %c0_i32 = arith.constant 0 : i32
    %c0_i32_0 = arith.constant 0 : i32
    %c0_i32_1 = arith.constant 0 : i32
    return %c0_i32, %c0_i32_0 : i32, i32
  }
  func.func @transform_5(%arg0: i32) -> (i32, i32) {
    %c0_i32 = arith.constant 0 : i32
    %c0_i32_0 = arith.constant 0 : i32
    %c0_i32_1 = arith.constant 0 : i32
    return %c0_i32, %c0_i32_0 : i32, i32
  }
  func.func @transform_6(%arg0: i32) -> (i32, i32) {
    %c0_i32 = arith.constant 0 : i32
    %c0_i32_0 = arith.constant 0 : i32
    %c0_i32_1 = arith.constant 0 : i32
    return %c0_i32, %c0_i32_0 : i32, i32
  }
  func.func @transform_7(%arg0: i32) -> (i32, i32) {
    %c0_i32 = arith.constant 0 : i32
    %c0_i32_0 = arith.constant 0 : i32
    %c0_i32_1 = arith.constant 0 : i32
    return %c0_i32, %c0_i32_0 : i32, i32
  }
  func.func @transform_8(%arg0: i32) -> (i32, i32, i32, i32) {
    %c0_i32 = arith.constant 0 : i32
    %c0_i32_0 = arith.constant 0 : i32
    %c0_i32_1 = arith.constant 0 : i32
    %c0_i32_2 = arith.constant 0 : i32
    %c0_i32_3 = arith.constant 0 : i32
    return %c0_i32, %c0_i32_0, %c0_i32_1, %c0_i32_2 : i32, i32, i32, i32
  }
  func.func @transform_9(%arg0: i32) -> (i32, i32, i32, i32) {
    %c0_i32 = arith.constant 0 : i32
    %c0_i32_0 = arith.constant 0 : i32
    %c0_i32_1 = arith.constant 0 : i32
    %c0_i32_2 = arith.constant 0 : i32
    %c0_i32_3 = arith.constant 0 : i32
    return %c0_i32, %c0_i32_0, %c0_i32_1, %c0_i32_2 : i32, i32, i32, i32
  }
  func.func @transform_10(%arg0: i32) -> (i32, i32, i32, i32) {
    %c0_i32 = arith.constant 0 : i32
    %c0_i32_0 = arith.constant 0 : i32
    %c0_i32_1 = arith.constant 0 : i32
    %c0_i32_2 = arith.constant 0 : i32
    %c0_i32_3 = arith.constant 0 : i32
    return %c0_i32, %c0_i32_0, %c0_i32_1, %c0_i32_2 : i32, i32, i32, i32
  }
  func.func @transform_11(%arg0: i32) -> (i32, i32, i32, i32) {
    %c0_i32 = arith.constant 0 : i32
    %c0_i32_0 = arith.constant 0 : i32
    %c0_i32_1 = arith.constant 0 : i32
    %c0_i32_2 = arith.constant 0 : i32
    %c0_i32_3 = arith.constant 0 : i32
    return %c0_i32, %c0_i32_0, %c0_i32_1, %c0_i32_2 : i32, i32, i32, i32
  }
  func.func @transform_12(%arg0: i32) -> (i32, i32, i32, i32) {
    %c0_i32 = arith.constant 0 : i32
    %c0_i32_0 = arith.constant 0 : i32
    %c0_i32_1 = arith.constant 0 : i32
    %c0_i32_2 = arith.constant 0 : i32
    %c0_i32_3 = arith.constant 0 : i32
    return %c0_i32, %c0_i32_0, %c0_i32_1, %c0_i32_2 : i32, i32, i32, i32
  }
  func.func @transform_13(%arg0: i32) -> (i32, i32, i32, i32) {
    %c0_i32 = arith.constant 0 : i32
    %c0_i32_0 = arith.constant 0 : i32
    %c0_i32_1 = arith.constant 0 : i32
    %c0_i32_2 = arith.constant 0 : i32
    %c0_i32_3 = arith.constant 0 : i32
    return %c0_i32, %c0_i32_0, %c0_i32_1, %c0_i32_2 : i32, i32, i32, i32
  }
  func.func @transform_14(%arg0: i32) -> (i32, i32, i32, i32) {
    %c0_i32 = arith.constant 0 : i32
    %c0_i32_0 = arith.constant 0 : i32
    %c0_i32_1 = arith.constant 0 : i32
    %c0_i32_2 = arith.constant 0 : i32
    %c0_i32_3 = arith.constant 0 : i32
    return %c0_i32, %c0_i32_0, %c0_i32_1, %c0_i32_2 : i32, i32, i32, i32
  }
  func.func @transform_15(%arg0: i32) -> (i32, i32, i32) {
    %c0_i32 = arith.constant 0 : i32
    %c0_i32_0 = arith.constant 0 : i32
    %c0_i32_1 = arith.constant 0 : i32
    %c0_i32_2 = arith.constant 0 : i32
    return %c0_i32, %c0_i32_0, %c0_i32_1 : i32, i32, i32
  }
  func.func @transform_16(%arg0: i32) -> (i32, i32, i32) {
    %c0_i32 = arith.constant 0 : i32
    %c0_i32_0 = arith.constant 0 : i32
    %c0_i32_1 = arith.constant 0 : i32
    %c0_i32_2 = arith.constant 0 : i32
    return %c0_i32, %c0_i32_0, %c0_i32_1 : i32, i32, i32
  }
  func.func @transform_17(%arg0: i32) -> (i32, i32, i32) {
    %c0_i32 = arith.constant 0 : i32
    %c0_i32_0 = arith.constant 0 : i32
    %c0_i32_1 = arith.constant 0 : i32
    %c0_i32_2 = arith.constant 0 : i32
    return %c0_i32, %c0_i32_0, %c0_i32_1 : i32, i32, i32
  }
  func.func @transform_18(%arg0: i32) -> (i32, i32, i32) {
    %c0_i32 = arith.constant 0 : i32
    %c0_i32_0 = arith.constant 0 : i32
    %c0_i32_1 = arith.constant 0 : i32
    %c0_i32_2 = arith.constant 0 : i32
    return %c0_i32, %c0_i32_0, %c0_i32_1 : i32, i32, i32
  }
  func.func @transform_19(%arg0: i32) -> (i32, i32, i32) {
    %c0_i32 = arith.constant 0 : i32
    %c0_i32_0 = arith.constant 0 : i32
    %c0_i32_1 = arith.constant 0 : i32
    %c0_i32_2 = arith.constant 0 : i32
    return %c0_i32, %c0_i32_0, %c0_i32_1 : i32, i32, i32
  }
  func.func @transform_20(%arg0: i32) -> (i32, i32, i32) {
    %c0_i32 = arith.constant 0 : i32
    %c0_i32_0 = arith.constant 0 : i32
    %c0_i32_1 = arith.constant 0 : i32
    %c0_i32_2 = arith.constant 0 : i32
    return %c0_i32, %c0_i32_0, %c0_i32_1 : i32, i32, i32
  }
  func.func @transform_21(%arg0: i32) -> (i32, i32, i32) {
    %c0_i32 = arith.constant 0 : i32
    %c0_i32_0 = arith.constant 0 : i32
    %c0_i32_1 = arith.constant 0 : i32
    %c0_i32_2 = arith.constant 0 : i32
    return %c0_i32, %c0_i32_0, %c0_i32_1 : i32, i32, i32
  }
  func.func @transform_22(%arg0: i32) -> (i32, i32, i32) {
    %c0_i32 = arith.constant 0 : i32
    %c0_i32_0 = arith.constant 0 : i32
    %c0_i32_1 = arith.constant 0 : i32
    %c0_i32_2 = arith.constant 0 : i32
    return %c0_i32, %c0_i32_0, %c0_i32_1 : i32, i32, i32
  }
  func.func @transform_23(%arg0: i32) -> (i32, i32, i32) {
    %c0_i32 = arith.constant 0 : i32
    %c0_i32_0 = arith.constant 0 : i32
    %c0_i32_1 = arith.constant 0 : i32
    %c0_i32_2 = arith.constant 0 : i32
    return %c0_i32, %c0_i32_0, %c0_i32_1 : i32, i32, i32
  }
  func.func @transform_24(%arg0: i32) -> (i32, i32) {
    %c0_i32 = arith.constant 0 : i32
    %c0_i32_0 = arith.constant 0 : i32
    %c0_i32_1 = arith.constant 0 : i32
    return %c0_i32, %c0_i32_0 : i32, i32
  }
  func.func @transform_25(%arg0: i32) -> (i32, i32) {
    %c0_i32 = arith.constant 0 : i32
    %c0_i32_0 = arith.constant 0 : i32
    %c0_i32_1 = arith.constant 0 : i32
    return %c0_i32, %c0_i32_0 : i32, i32
  }
  func.func @transform_26(%arg0: i32) -> (i32, i32) {
    %c0_i32 = arith.constant 0 : i32
    %c0_i32_0 = arith.constant 0 : i32
    %c0_i32_1 = arith.constant 0 : i32
    return %c0_i32, %c0_i32_0 : i32, i32
  }
  func.func @transform_27(%arg0: i32) -> (i32, i32) {
    %c0_i32 = arith.constant 0 : i32
    %c0_i32_0 = arith.constant 0 : i32
    %c0_i32_1 = arith.constant 0 : i32
    return %c0_i32, %c0_i32_0 : i32, i32
  }
  func.func @transform_28(%arg0: i32) -> (i32, i32) {
    %c0_i32 = arith.constant 0 : i32
    %c0_i32_0 = arith.constant 0 : i32
    %c0_i32_1 = arith.constant 0 : i32
    return %c0_i32, %c0_i32_0 : i32, i32
  }
  func.func @transform_29(%arg0: i32) -> (i32, i32) {
    %c0_i32 = arith.constant 0 : i32
    %c0_i32_0 = arith.constant 0 : i32
    %c0_i32_1 = arith.constant 0 : i32
    return %c0_i32, %c0_i32_0 : i32, i32
  }
  func.func @transform_30(%arg0: i32) -> (i32, i32) {
    %c0_i32 = arith.constant 0 : i32
    %c0_i32_0 = arith.constant 0 : i32
    %c0_i32_1 = arith.constant 0 : i32
    return %c0_i32, %c0_i32_0 : i32, i32
  }
  func.func @transform_31(%arg0: i32) -> (i32, i32) {
    %c0_i32 = arith.constant 0 : i32
    %c0_i32_0 = arith.constant 0 : i32
    %c0_i32_1 = arith.constant 0 : i32
    return %c0_i32, %c0_i32_0 : i32, i32
  }
  func.func @transform_32(%arg0: i32) -> (i32, i32, i32) {
    %c0_i32 = arith.constant 0 : i32
    %c0_i32_0 = arith.constant 0 : i32
    %c0_i32_1 = arith.constant 0 : i32
    return %arg0, %c0_i32, %c0_i32_0 : i32, i32, i32
  }
  func.func @transform_33(%arg0: i32) -> (i32, i32, i32) {
    %c0_i32 = arith.constant 0 : i32
    %c0_i32_0 = arith.constant 0 : i32
    %c0_i32_1 = arith.constant 0 : i32
    return %arg0, %c0_i32, %c0_i32_0 : i32, i32, i32
  }
}

</mosaic_0001>

<llo_original>
// kernel: diet_forward.1
$region0: #{diet_forward.1}
  #allocation0 [shape = 'u32[]', space=smem, size = 0x4, offset = 0x4, fixed_abs, tag = 'smem constant byte address 0x4 - core index']
  #allocation1 [shape = 'u32[144,128]{1,0:T(1,128)}', space=vmem, size = 0x12000, scoped, tag = 'internal scratch']
  %s0 = inlined_call_operand.smem [shape: u32[34], index: -1, kind: input, shape index: {}]
  %s1 = sld [smem:[%s0]]
  %s2 = scalar_lea.smem %s0, 1
  %s3 = sld [smem:[%s2]]
  %s4 = scalar_lea.smem %s0, 2
  %s5 = sld [smem:[%s4]]
  %s6 = scalar_lea.smem %s0, 3
  %s7 = sld [smem:[%s6]]
  %s8 = scalar_lea.smem %s0, 4
  %s9 = sld [smem:[%s8]]
  %s10 = scalar_lea.smem %s0, 5
  %s11 = sld [smem:[%s10]]
  %s12 = scalar_lea.smem %s0, 6
  %s13 = sld [smem:[%s12]]
  %s14 = scalar_lea.smem %s0, 7
  %s15 = sld [smem:[%s14]]
  %s16 = scalar_lea.smem %s0, 8
  %s17 = sld [smem:[%s16]]
  %s18 = scalar_lea.smem %s0, 9
  %s19 = sld [smem:[%s18]]
  %s20 = scalar_lea.smem %s0, 10
  %s21 = sld [smem:[%s20]]
  %s22 = scalar_lea.smem %s0, 11
  %s23 = sld [smem:[%s22]]
  %s24 = scalar_lea.smem %s0, 12
  %s25 = sld [smem:[%s24]]
  %s26 = scalar_lea.smem %s0, 13
  %s27 = sld [smem:[%s26]]
  %s28 = scalar_lea.smem %s0, 14
  %s29 = sld [smem:[%s28]]
  %s30 = scalar_lea.smem %s0, 15
  %s31 = sld [smem:[%s30]]
  %s32 = scalar_lea.smem %s0, 16
  %s33 = sld [smem:[%s32]]
  %s34 = scalar_lea.smem %s0, 17
  %s35 = sld [smem:[%s34]]
  %s36 = scalar_lea.smem %s0, 18
  %s37 = sld [smem:[%s36]]
  %s38 = scalar_lea.smem %s0, 19
  %s39 = sld [smem:[%s38]]
  %s40 = scalar_lea.smem %s0, 20
  %s41 = sld [smem:[%s40]]
  %s42 = scalar_lea.smem %s0, 21
  %s43 = sld [smem:[%s42]]
  %s44 = scalar_lea.smem %s0, 22
  %s45 = sld [smem:[%s44]]
  %s46 = scalar_lea.smem %s0, 23
  %s47 = sld [smem:[%s46]]
  %s48 = scalar_lea.smem %s0, 24
  %s49 = sld [smem:[%s48]]
  %s50 = scalar_lea.smem %s0, 25
  %s51 = sld [smem:[%s50]]
  %s52 = scalar_lea.smem %s0, 26
  %s53 = sld [smem:[%s52]]
  %s54 = scalar_lea.smem %s0, 27
  %s55 = sld [smem:[%s54]]
  %s56 = scalar_lea.smem %s0, 28
  %s57 = sld [smem:[%s56]]
  %s58 = scalar_lea.smem %s0, 29
  %s59 = sld [smem:[%s58]]
  %s60 = scalar_lea.smem %s0, 30
  %s61 = sld [smem:[%s60]]
  %s62 = scalar_lea.smem %s0, 31
  %s63 = sld [smem:[%s62]]
  %s64 = scalar_lea.smem %s0, 32
  %s65 = sld [smem:[%s64]]
  %s66 = scalar_lea.smem %s0, 33
  %s67 = sld [smem:[%s66]]
  %68 = xla_tuple %s65, %s67
  %s69 = sld [smem:[#allocation0]]
  $region169: #{diet_forward.1} parent=0
    _
  %s71 = ssub.s32 1, %s69
  %s72 = scalar_select 0, %s71, %s69
  $region1: #{diet_forward.1} parent=0
    #allocation2 [shape = 'u8[1024]{0}', space=vmem, size = 0x400, scoped, tag = 'output window, operand 0']
    #allocation3 [shape = 's32[2]{0}', space=sflag, size = 0x8, scoped, tag = 'scoped memory for diet_forward.1']
    %73 = vsyncpa [#allocation3], 0
    %s74 = scalar_lea.sflag [#allocation3], 1
    %75 = vsyncpa %s74, 0
    loop: start=0, step=1, limit=4
    $region2: #{diet_forward.1} parent=1 // loop_pre_header
      _
    $region3: #{diet_forward.1} parent=1 // loop_header
      %s77 = sphi 0, %s81
      %p78 = scmp.ge.s32.totalorder %s77, 4
      %s87 = sphi 0, %s89
      %s90 = sphi 0, %s87
      %s91 = sphi 0, %s90
      %s107 = sphi 0, %s91
      %s113 = sphi 0, %s115
      %s116 = sphi 0, %s113
      %s117 = sphi 0, %s116
      %s133 = sphi 0, %s117
      %s139 = sphi 0, %s141
      %s142 = sphi 0, %s139
      %s143 = sphi 0, %s142
      %s159 = sphi 0, %s143
      %s163 = sphi 0, %s163
      %s165 = sphi 0, %s163
      %s166 = sphi 0, %s165
      %s180 = sphi 0, %s166
      %s184 = sphi 0, %s184
      %s186 = sphi 0, %s184
      %s187 = sphi 0, %s186
      %s201 = sphi 0, %s187
      %s205 = sphi 0, %s205
      %s207 = sphi 0, %s205
      %s208 = sphi 0, %s207
      %s222 = sphi 0, %s208
      %s226 = sphi 0, %s226
      %s228 = sphi 0, %s226
      %s229 = sphi 0, %s228
      %s243 = sphi 0, %s229
      %s247 = sphi 0, %s247
      %s249 = sphi 0, %s247
      %s250 = sphi 0, %s249
      %s264 = sphi 0, %s250
      %s268 = sphi 0, %s268
      %s270 = sphi 0, %s268
      %s271 = sphi 0, %s270
      %s285 = sphi 0, %s271
      %s289 = sphi 0, %s289
      %s291 = sphi 0, %s289
      %s292 = sphi 0, %s291
      %s306 = sphi 0, %s292
      %s310 = sphi 0, %s310
      %s312 = sphi 0, %s310
      %s313 = sphi 0, %s312
      %s327 = sphi 0, %s313
      %s331 = sphi 0, %s331
      %s333 = sphi 0, %s331
      %s334 = sphi 0, %s333
      %s348 = sphi 0, %s334
      %s352 = sphi 0, %s352
      %s354 = sphi 0, %s352
      %s355 = sphi 0, %s354
      %s369 = sphi 0, %s355
      %s373 = sphi 0, %s373
      %s375 = sphi 0, %s373
      %s376 = sphi 0, %s375
      %s390 = sphi 0, %s376
      %s394 = sphi 0, %s394
      %s396 = sphi 0, %s394
      %s397 = sphi 0, %s396
      %s411 = sphi 0, %s397
      %s415 = sphi 0, %s415
      %s417 = sphi 0, %s415
      %s418 = sphi 0, %s417
      %s432 = sphi 0, %s418
      %s436 = sphi 0, %s436
      %s438 = sphi 0, %s436
      %s439 = sphi 0, %s438
      %s453 = sphi 0, %s439
      %s457 = sphi 0, %s457
      %s459 = sphi 0, %s457
      %s460 = sphi 0, %s459
      %s474 = sphi 0, %s460
      %s478 = sphi 0, %s478
      %s480 = sphi 0, %s478
      %s481 = sphi 0, %s480
      %s495 = sphi 0, %s481
      %s499 = sphi 0, %s499
      %s501 = sphi 0, %s499
      %s502 = sphi 0, %s501
      %s516 = sphi 0, %s502
      %s520 = sphi 0, %s520
      %s522 = sphi 0, %s520
      %s523 = sphi 0, %s522
      %s537 = sphi 0, %s523
      %s541 = sphi 0, %s541
      %s543 = sphi 0, %s541
      %s544 = sphi 0, %s543
      %s558 = sphi 0, %s544
      %s562 = sphi 0, %s562
      %s564 = sphi 0, %s562
      %s565 = sphi 0, %s564
      %s579 = sphi 0, %s565
      %s583 = sphi 0, %s583
      %s585 = sphi 0, %s583
      %s586 = sphi 0, %s585
      %s600 = sphi 0, %s586
      %s604 = sphi 0, %s604
      %s606 = sphi 0, %s604
      %s607 = sphi 0, %s606
      %s621 = sphi 0, %s607
      %s625 = sphi 0, %s625
      %s627 = sphi 0, %s625
      %s628 = sphi 0, %s627
      %s642 = sphi 0, %s628
      %s646 = sphi 0, %s646
      %s648 = sphi 0, %s646
      %s649 = sphi 0, %s648
      %s663 = sphi 0, %s649
      %s667 = sphi 0, %s667
      %s669 = sphi 0, %s667
      %s670 = sphi 0, %s669
      %s684 = sphi 0, %s670
      %s688 = sphi 0, %s688
      %s690 = sphi 0, %s688
      %s691 = sphi 0, %s690
      %s705 = sphi 0, %s691
      %s709 = sphi 0, %s709
      %s711 = sphi 0, %s709
      %s712 = sphi 0, %s711
      %s726 = sphi 0, %s712
      %s730 = sphi 0, %s730
      %s732 = sphi 0, %s730
      %s733 = sphi 0, %s732
      %s747 = sphi 0, %s733
      %s751 = sphi 0, %s751
      %s753 = sphi 0, %s751
      %s754 = sphi 0, %s753
      %s768 = sphi 0, %s754
      %s774 = sphi 0, %s776
      %s777 = sphi 0, %s774
      %s778 = sphi 0, %s777
      %s794 = sphi 0, %s778
      %s800 = sphi 0, %s802
      %s803 = sphi 0, %s800
      %s804 = sphi 0, %s803
      %s820 = sphi 0, %s804
    $region4: #{diet_forward.1} parent=1 // loop_header_branch
      %80 = sbr.rel (%p78) target = $region8
    $region5: #{diet_forward.1} parent=1 // loop_body
      %s82 = ssub.s32 %s77, 1
      %s83 = ssub.s32 %s77, 2
      %s84 = sadd.s32 %s77, 1
      %s85 = ssub.s32 %s77, %s84
      %p86 = scmp.eq.s32.totalorder %s85, 0
      %s88 = sadd.s32 %s87, 1
      %s89 = scalar_select %p86, %s87, %s88
      %p92 = pneg %p86
      %p93 = scmp.eq.s32.totalorder %s77, 1
      %p94 = por %p92, %p93
      %p95 = scmp.ne.s32.totalorder %s87, %s90
      %p96 = scmp.eq.s32.totalorder %s77, 0
      %p97 = por %p95, %p96
      %p98 = scmp.ne.s32.totalorder %s87, %s90
      %p99 = scmp.eq.s32.totalorder %s82, 1
      %p100 = por %p98, %p99
      %p101 = scmp.ne.s32.totalorder %s90, %s91
      %p102 = scmp.eq.s32.totalorder %s82, 0
      %p103 = por %p101, %p102
      %p104 = scmp.ne.s32.totalorder %s90, %s91
      %p105 = scmp.eq.s32.totalorder %s83, 1
      %p106 = por %p104, %p105
      %p108 = scmp.ne.s32.totalorder %s91, %s107
      %p109 = scmp.eq.s32.totalorder %s83, 0
      %p110 = por %p108, %p109
      %s111 = ssub.s32 %s77, %s84
      %p112 = scmp.eq.s32.totalorder %s111, 0
      %s114 = sadd.s32 %s113, 1
      %s115 = scalar_select %p112, %s113, %s114
      %p118 = pneg %p112
      %p119 = scmp.eq.s32.totalorder %s77, 1
      %p120 = por %p118, %p119
      %p121 = scmp.ne.s32.totalorder %s113, %s116
      %p122 = scmp.eq.s32.totalorder %s77, 0
      %p123 = por %p121, %p122
      %p124 = scmp.ne.s32.totalorder %s113, %s116
      %p125 = scmp.eq.s32.totalorder %s82, 1
      %p126 = por %p124, %p125
      %p127 = scmp.ne.s32.totalorder %s116, %s117
      %p128 = scmp.eq.s32.totalorder %s82, 0
      %p129 = por %p127, %p128
      %p130 = scmp.ne.s32.totalorder %s116, %s117
      %p131 = scmp.eq.s32.totalorder %s83, 1
      %p132 = por %p130, %p131
      %p134 = scmp.ne.s32.totalorder %s117, %s133
      %p135 = scmp.eq.s32.totalorder %s83, 0
      %p136 = por %p134, %p135
      %s137 = ssub.s32 %s77, %s84
      %p138 = scmp.eq.s32.totalorder %s137, 0
      %s140 = sadd.s32 %s139, 1
      %s141 = scalar_select %p138, %s139, %s140
      %p144 = pneg %p138
      %p145 = scmp.eq.s32.totalorder %s77, 1
      %p146 = por %p144, %p145
      %p147 = scmp.ne.s32.totalorder %s139, %s142
      %p148 = scmp.eq.s32.totalorder %s77, 0
      %p149 = por %p147, %p148
      %p150 = scmp.ne.s32.totalorder %s139, %s142
      %p151 = scmp.eq.s32.totalorder %s82, 1
      %p152 = por %p150, %p151
      %p153 = scmp.ne.s32.totalorder %s142, %s143
      %p154 = scmp.eq.s32.totalorder %s82, 0
      %p155 = por %p153, %p154
      %p156 = scmp.ne.s32.totalorder %s142, %s143
      %p157 = scmp.eq.s32.totalorder %s83, 1
      %p158 = por %p156, %p157
      %p160 = scmp.ne.s32.totalorder %s143, %s159
      %p161 = scmp.eq.s32.totalorder %s83, 0
      %p162 = por %p160, %p161
      %s164 = sadd.s32 %s163, 1
      %p167 = scmp.eq.s32.totalorder %s77, 1
      %p168 = scmp.ne.s32.totalorder %s163, %s165
      %p169 = scmp.eq.s32.totalorder %s77, 0
      %p170 = por %p168, %p169
      %p171 = scmp.ne.s32.totalorder %s163, %s165
      %p172 = scmp.eq.s32.totalorder %s82, 1
      %p173 = por %p171, %p172
      %p174 = scmp.ne.s32.totalorder %s165, %s166
      %p175 = scmp.eq.s32.totalorder %s82, 0
      %p176 = por %p174, %p175
      %p177 = scmp.ne.s32.totalorder %s165, %s166
      %p178 = scmp.eq.s32.totalorder %s83, 1
      %p179 = por %p177, %p178
      %p181 = scmp.ne.s32.totalorder %s166, %s180
      %p182 = scmp.eq.s32.totalorder %s83, 0
      %p183 = por %p181, %p182
      %s185 = sadd.s32 %s184, 1
      %p188 = scmp.eq.s32.totalorder %s77, 1
      %p189 = scmp.ne.s32.totalorder %s184, %s186
      %p190 = scmp.eq.s32.totalorder %s77, 0
      %p191 = por %p189, %p190
      %p192 = scmp.ne.s32.totalorder %s184, %s186
      %p193 = scmp.eq.s32.totalorder %s82, 1
      %p194 = por %p192, %p193
      %p195 = scmp.ne.s32.totalorder %s186, %s187
      %p196 = scmp.eq.s32.totalorder %s82, 0
      %p197 = por %p195, %p196
      %p198 = scmp.ne.s32.totalorder %s186, %s187
      %p199 = scmp.eq.s32.totalorder %s83, 1
      %p200 = por %p198, %p199
      %p202 = scmp.ne.s32.totalorder %s187, %s201
      %p203 = scmp.eq.s32.totalorder %s83, 0
      %p204 = por %p202, %p203
      %s206 = sadd.s32 %s205, 1
      %p209 = scmp.eq.s32.totalorder %s77, 1
      %p210 = scmp.ne.s32.totalorder %s205, %s207
      %p211 = scmp.eq.s32.totalorder %s77, 0
      %p212 = por %p210, %p211
      %p213 = scmp.ne.s32.totalorder %s205, %s207
      %p214 = scmp.eq.s32.totalorder %s82, 1
      %p215 = por %p213, %p214
      %p216 = scmp.ne.s32.totalorder %s207, %s208
      %p217 = scmp.eq.s32.totalorder %s82, 0
      %p218 = por %p216, %p217
      %p219 = scmp.ne.s32.totalorder %s207, %s208
      %p220 = scmp.eq.s32.totalorder %s83, 1
      %p221 = por %p219, %p220
      %p223 = scmp.ne.s32.totalorder %s208, %s222
      %p224 = scmp.eq.s32.totalorder %s83, 0
      %p225 = por %p223, %p224
      %s227 = sadd.s32 %s226, 1
      %p230 = scmp.eq.s32.totalorder %s77, 1
      %p231 = scmp.ne.s32.totalorder %s226, %s228
      %p232 = scmp.eq.s32.totalorder %s77, 0
      %p233 = por %p231, %p232
      %p234 = scmp.ne.s32.totalorder %s226, %s228
      %p235 = scmp.eq.s32.totalorder %s82, 1
      %p236 = por %p234, %p235
      %p237 = scmp.ne.s32.totalorder %s228, %s229
      %p238 = scmp.eq.s32.totalorder %s82, 0
      %p239 = por %p237, %p238
      %p240 = scmp.ne.s32.totalorder %s228, %s229
      %p241 = scmp.eq.s32.totalorder %s83, 1
      %p242 = por %p240, %p241
      %p244 = scmp.ne.s32.totalorder %s229, %s243
      %p245 = scmp.eq.s32.totalorder %s83, 0
      %p246 = por %p244, %p245
      %s248 = sadd.s32 %s247, 1
      %p251 = scmp.eq.s32.totalorder %s77, 1
      %p252 = scmp.ne.s32.totalorder %s247, %s249
      %p253 = scmp.eq.s32.totalorder %s77, 0
      %p254 = por %p252, %p253
      %p255 = scmp.ne.s32.totalorder %s247, %s249
      %p256 = scmp.eq.s32.totalorder %s82, 1
      %p257 = por %p255, %p256
      %p258 = scmp.ne.s32.totalorder %s249, %s250
      %p259 = scmp.eq.s32.totalorder %s82, 0
      %p260 = por %p258, %p259
      %p261 = scmp.ne.s32.totalorder %s249, %s250
      %p262 = scmp.eq.s32.totalorder %s83, 1
      %p263 = por %p261, %p262
      %p265 = scmp.ne.s32.totalorder %s250, %s264
      %p266 = scmp.eq.s32.totalorder %s83, 0
      %p267 = por %p265, %p266
      %s269 = sadd.s32 %s268, 1
      %p272 = scmp.eq.s32.totalorder %s77, 1
      %p273 = scmp.ne.s32.totalorder %s268, %s270
      %p274 = scmp.eq.s32.totalorder %s77, 0
      %p275 = por %p273, %p274
      %p276 = scmp.ne.s32.totalorder %s268, %s270
      %p277 = scmp.eq.s32.totalorder %s82, 1
      %p278 = por %p276, %p277
      %p279 = scmp.ne.s32.totalorder %s270, %s271
      %p280 = scmp.eq.s32.totalorder %s82, 0
      %p281 = por %p279, %p280
      %p282 = scmp.ne.s32.totalorder %s270, %s271
      %p283 = scmp.eq.s32.totalorder %s83, 1
      %p284 = por %p282, %p283
      %p286 = scmp.ne.s32.totalorder %s271, %s285
      %p287 = scmp.eq.s32.totalorder %s83, 0
      %p288 = por %p286, %p287
      %s290 = sadd.s32 %s289, 1
      %p293 = scmp.eq.s32.totalorder %s77, 1
      %p294 = scmp.ne.s32.totalorder %s289, %s291
      %p295 = scmp.eq.s32.totalorder %s77, 0
      %p296 = por %p294, %p295
      %p297 = scmp.ne.s32.totalorder %s289, %s291
      %p298 = scmp.eq.s32.totalorder %s82, 1
      %p299 = por %p297, %p298
      %p300 = scmp.ne.s32.totalorder %s291, %s292
      %p301 = scmp.eq.s32.totalorder %s82, 0
      %p302 = por %p300, %p301
      %p303 = scmp.ne.s32.totalorder %s291, %s292
      %p304 = scmp.eq.s32.totalorder %s83, 1
      %p305 = por %p303, %p304
      %p307 = scmp.ne.s32.totalorder %s292, %s306
      %p308 = scmp.eq.s32.totalorder %s83, 0
      %p309 = por %p307, %p308
      %s311 = sadd.s32 %s310, 1
      %p314 = scmp.eq.s32.totalorder %s77, 1
      %p315 = scmp.ne.s32.totalorder %s310, %s312
      %p316 = scmp.eq.s32.totalorder %s77, 0
      %p317 = por %p315, %p316
      %p318 = scmp.ne.s32.totalorder %s310, %s312
      %p319 = scmp.eq.s32.totalorder %s82, 1
      %p320 = por %p318, %p319
      %p321 = scmp.ne.s32.totalorder %s312, %s313
      %p322 = scmp.eq.s32.totalorder %s82, 0
      %p323 = por %p321, %p322
      %p324 = scmp.ne.s32.totalorder %s312, %s313
      %p325 = scmp.eq.s32.totalorder %s83, 1
      %p326 = por %p324, %p325
      %p328 = scmp.ne.s32.totalorder %s313, %s327
      %p329 = scmp.eq.s32.totalorder %s83, 0
      %p330 = por %p328, %p329
      %s332 = sadd.s32 %s331, 1
      %p335 = scmp.eq.s32.totalorder %s77, 1
      %p336 = scmp.ne.s32.totalorder %s331, %s333
      %p337 = scmp.eq.s32.totalorder %s77, 0
      %p338 = por %p336, %p337
      %p339 = scmp.ne.s32.totalorder %s331, %s333
      %p340 = scmp.eq.s32.totalorder %s82, 1
      %p341 = por %p339, %p340
      %p342 = scmp.ne.s32.totalorder %s333, %s334
      %p343 = scmp.eq.s32.totalorder %s82, 0
      %p344 = por %p342, %p343
      %p345 = scmp.ne.s32.totalorder %s333, %s334
      %p346 = scmp.eq.s32.totalorder %s83, 1
      %p347 = por %p345, %p346
      %p349 = scmp.ne.s32.totalorder %s334, %s348
      %p350 = scmp.eq.s32.totalorder %s83, 0
      %p351 = por %p349, %p350
      %s353 = sadd.s32 %s352, 1
      %p356 = scmp.eq.s32.totalorder %s77, 1
      %p357 = scmp.ne.s32.totalorder %s352, %s354
      %p358 = scmp.eq.s32.totalorder %s77, 0
      %p359 = por %p357, %p358
      %p360 = scmp.ne.s32.totalorder %s352, %s354
      %p361 = scmp.eq.s32.totalorder %s82, 1
      %p362 = por %p360, %p361
      %p363 = scmp.ne.s32.totalorder %s354, %s355
      %p364 = scmp.eq.s32.totalorder %s82, 0
      %p365 = por %p363, %p364
      %p366 = scmp.ne.s32.totalorder %s354, %s355
      %p367 = scmp.eq.s32.totalorder %s83, 1
      %p368 = por %p366, %p367
      %p370 = scmp.ne.s32.totalorder %s355, %s369
      %p371 = scmp.eq.s32.totalorder %s83, 0
      %p372 = por %p370, %p371
      %s374 = sadd.s32 %s373, 1
      %p377 = scmp.eq.s32.totalorder %s77, 1
      %p378 = scmp.ne.s32.totalorder %s373, %s375
      %p379 = scmp.eq.s32.totalorder %s77, 0
      %p380 = por %p378, %p379
      %p381 = scmp.ne.s32.totalorder %s373, %s375
      %p382 = scmp.eq.s32.totalorder %s82, 1
      %p383 = por %p381, %p382
      %p384 = scmp.ne.s32.totalorder %s375, %s376
      %p385 = scmp.eq.s32.totalorder %s82, 0
      %p386 = por %p384, %p385
      %p387 = scmp.ne.s32.totalorder %s375, %s376
      %p388 = scmp.eq.s32.totalorder %s83, 1
      %p389 = por %p387, %p388
      %p391 = scmp.ne.s32.totalorder %s376, %s390
      %p392 = scmp.eq.s32.totalorder %s83, 0
      %p393 = por %p391, %p392
      %s395 = sadd.s32 %s394, 1
      %p398 = scmp.eq.s32.totalorder %s77, 1
      %p399 = scmp.ne.s32.totalorder %s394, %s396
      %p400 = scmp.eq.s32.totalorder %s77, 0
      %p401 = por %p399, %p400
      %p402 = scmp.ne.s32.totalorder %s394, %s396
      %p403 = scmp.eq.s32.totalorder %s82, 1
      %p404 = por %p402, %p403
      %p405 = scmp.ne.s32.totalorder %s396, %s397
      %p406 = scmp.eq.s32.totalorder %s82, 0
      %p407 = por %p405, %p406
      %p408 = scmp.ne.s32.totalorder %s396, %s397
      %p409 = scmp.eq.s32.totalorder %s83, 1
      %p410 = por %p408, %p409
      %p412 = scmp.ne.s32.totalorder %s397, %s411
      %p413 = scmp.eq.s32.totalorder %s83, 0
      %p414 = por %p412, %p413
      %s416 = sadd.s32 %s415, 1
      %p419 = scmp.eq.s32.totalorder %s77, 1
      %p420 = scmp.ne.s32.totalorder %s415, %s417
      %p421 = scmp.eq.s32.totalorder %s77, 0
      %p422 = por %p420, %p421
      %p423 = scmp.ne.s32.totalorder %s415, %s417
      %p424 = scmp.eq.s32.totalorder %s82, 1
      %p425 = por %p423, %p424
      %p426 = scmp.ne.s32.totalorder %s417, %s418
      %p427 = scmp.eq.s32.totalorder %s82, 0
      %p428 = por %p426, %p427
      %p429 = scmp.ne.s32.totalorder %s417, %s418
      %p430 = scmp.eq.s32.totalorder %s83, 1
      %p431 = por %p429, %p430
      %p433 = scmp.ne.s32.totalorder %s418, %s432
      %p434 = scmp.eq.s32.totalorder %s83, 0
      %p435 = por %p433, %p434
      %s437 = sadd.s32 %s436, 1
      %p440 = scmp.eq.s32.totalorder %s77, 1
      %p441 = scmp.ne.s32.totalorder %s436, %s438
      %p442 = scmp.eq.s32.totalorder %s77, 0
      %p443 = por %p441, %p442
      %p444 = scmp.ne.s32.totalorder %s436, %s438
      %p445 = scmp.eq.s32.totalorder %s82, 1
      %p446 = por %p444, %p445
      %p447 = scmp.ne.s32.totalorder %s438, %s439
      %p448 = scmp.eq.s32.totalorder %s82, 0
      %p449 = por %p447, %p448
      %p450 = scmp.ne.s32.totalorder %s438, %s439
      %p451 = scmp.eq.s32.totalorder %s83, 1
      %p452 = por %p450, %p451
      %p454 = scmp.ne.s32.totalorder %s439, %s453
      %p455 = scmp.eq.s32.totalorder %s83, 0
      %p456 = por %p454, %p455
      %s458 = sadd.s32 %s457, 1
      %p461 = scmp.eq.s32.totalorder %s77, 1
      %p462 = scmp.ne.s32.totalorder %s457, %s459
      %p463 = scmp.eq.s32.totalorder %s77, 0
      %p464 = por %p462, %p463
      %p465 = scmp.ne.s32.totalorder %s457, %s459
      %p466 = scmp.eq.s32.totalorder %s82, 1
      %p467 = por %p465, %p466
      %p468 = scmp.ne.s32.totalorder %s459, %s460
      %p469 = scmp.eq.s32.totalorder %s82, 0
      %p470 = por %p468, %p469
      %p471 = scmp.ne.s32.totalorder %s459, %s460
      %p472 = scmp.eq.s32.totalorder %s83, 1
      %p473 = por %p471, %p472
      %p475 = scmp.ne.s32.totalorder %s460, %s474
      %p476 = scmp.eq.s32.totalorder %s83, 0
      %p477 = por %p475, %p476
      %s479 = sadd.s32 %s478, 1
      %p482 = scmp.eq.s32.totalorder %s77, 1
      %p483 = scmp.ne.s32.totalorder %s478, %s480
      %p484 = scmp.eq.s32.totalorder %s77, 0
      %p485 = por %p483, %p484
      %p486 = scmp.ne.s32.totalorder %s478, %s480
      %p487 = scmp.eq.s32.totalorder %s82, 1
      %p488 = por %p486, %p487
      %p489 = scmp.ne.s32.totalorder %s480, %s481
      %p490 = scmp.eq.s32.totalorder %s82, 0
      %p491 = por %p489, %p490
      %p492 = scmp.ne.s32.totalorder %s480, %s481
      %p493 = scmp.eq.s32.totalorder %s83, 1
      %p494 = por %p492, %p493
      %p496 = scmp.ne.s32.totalorder %s481, %s495
      %p497 = scmp.eq.s32.totalorder %s83, 0
      %p498 = por %p496, %p497
      %s500 = sadd.s32 %s499, 1
      %p503 = scmp.eq.s32.totalorder %s77, 1
      %p504 = scmp.ne.s32.totalorder %s499, %s501
      %p505 = scmp.eq.s32.totalorder %s77, 0
      %p506 = por %p504, %p505
      %p507 = scmp.ne.s32.totalorder %s499, %s501
      %p508 = scmp.eq.s32.totalorder %s82, 1
      %p509 = por %p507, %p508
      %p510 = scmp.ne.s32.totalorder %s501, %s502
      %p511 = scmp.eq.s32.totalorder %s82, 0
      %p512 = por %p510, %p511
      %p513 = scmp.ne.s32.totalorder %s501, %s502
      %p514 = scmp.eq.s32.totalorder %s83, 1
      %p515 = por %p513, %p514
      %p517 = scmp.ne.s32.totalorder %s502, %s516
      %p518 = scmp.eq.s32.totalorder %s83, 0
      %p519 = por %p517, %p518
      %s521 = sadd.s32 %s520, 1
      %p524 = scmp.eq.s32.totalorder %s77, 1
      %p525 = scmp.ne.s32.totalorder %s520, %s522
      %p526 = scmp.eq.s32.totalorder %s77, 0
      %p527 = por %p525, %p526
      %p528 = scmp.ne.s32.totalorder %s520, %s522
      %p529 = scmp.eq.s32.totalorder %s82, 1
      %p530 = por %p528, %p529
      %p531 = scmp.ne.s32.totalorder %s522, %s523
      %p532 = scmp.eq.s32.totalorder %s82, 0
      %p533 = por %p531, %p532
      %p534 = scmp.ne.s32.totalorder %s522, %s523
      %p535 = scmp.eq.s32.totalorder %s83, 1
      %p536 = por %p534, %p535
      %p538 = scmp.ne.s32.totalorder %s523, %s537
      %p539 = scmp.eq.s32.totalorder %s83, 0
      %p540 = por %p538, %p539
      %s542 = sadd.s32 %s541, 1
      %p545 = scmp.eq.s32.totalorder %s77, 1
      %p546 = scmp.ne.s32.totalorder %s541, %s543
      %p547 = scmp.eq.s32.totalorder %s77, 0
      %p548 = por %p546, %p547
      %p549 = scmp.ne.s32.totalorder %s541, %s543
      %p550 = scmp.eq.s32.totalorder %s82, 1
      %p551 = por %p549, %p550
      %p552 = scmp.ne.s32.totalorder %s543, %s544
      %p553 = scmp.eq.s32.totalorder %s82, 0
      %p554 = por %p552, %p553
      %p555 = scmp.ne.s32.totalorder %s543, %s544
      %p556 = scmp.eq.s32.totalorder %s83, 1
      %p557 = por %p555, %p556
      %p559 = scmp.ne.s32.totalorder %s544, %s558
      %p560 = scmp.eq.s32.totalorder %s83, 0
      %p561 = por %p559, %p560
      %s563 = sadd.s32 %s562, 1
      %p566 = scmp.eq.s32.totalorder %s77, 1
      %p567 = scmp.ne.s32.totalorder %s562, %s564
      %p568 = scmp.eq.s32.totalorder %s77, 0
      %p569 = por %p567, %p568
      %p570 = scmp.ne.s32.totalorder %s562, %s564
      %p571 = scmp.eq.s32.totalorder %s82, 1
      %p572 = por %p570, %p571
      %p573 = scmp.ne.s32.totalorder %s564, %s565
      %p574 = scmp.eq.s32.totalorder %s82, 0
      %p575 = por %p573, %p574
      %p576 = scmp.ne.s32.totalorder %s564, %s565
      %p577 = scmp.eq.s32.totalorder %s83, 1
      %p578 = por %p576, %p577
      %p580 = scmp.ne.s32.totalorder %s565, %s579
      %p581 = scmp.eq.s32.totalorder %s83, 0
      %p582 = por %p580, %p581
      %s584 = sadd.s32 %s583, 1
      %p587 = scmp.eq.s32.totalorder %s77, 1
      %p588 = scmp.ne.s32.totalorder %s583, %s585
      %p589 = scmp.eq.s32.totalorder %s77, 0
      %p590 = por %p588, %p589
      %p591 = scmp.ne.s32.totalorder %s583, %s585
      %p592 = scmp.eq.s32.totalorder %s82, 1
      %p593 = por %p591, %p592
      %p594 = scmp.ne.s32.totalorder %s585, %s586
      %p595 = scmp.eq.s32.totalorder %s82, 0
      %p596 = por %p594, %p595
      %p597 = scmp.ne.s32.totalorder %s585, %s586
      %p598 = scmp.eq.s32.totalorder %s83, 1
      %p599 = por %p597, %p598
      %p601 = scmp.ne.s32.totalorder %s586, %s600
      %p602 = scmp.eq.s32.totalorder %s83, 0
      %p603 = por %p601, %p602
      %s605 = sadd.s32 %s604, 1
      %p608 = scmp.eq.s32.totalorder %s77, 1
      %p609 = scmp.ne.s32.totalorder %s604, %s606
      %p610 = scmp.eq.s32.totalorder %s77, 0
      %p611 = por %p609, %p610
      %p612 = scmp.ne.s32.totalorder %s604, %s606
      %p613 = scmp.eq.s32.totalorder %s82, 1
      %p614 = por %p612, %p613
      %p615 = scmp.ne.s32.totalorder %s606, %s607
      %p616 = scmp.eq.s32.totalorder %s82, 0
      %p617 = por %p615, %p616
      %p618 = scmp.ne.s32.totalorder %s606, %s607
      %p619 = scmp.eq.s32.totalorder %s83, 1
      %p620 = por %p618, %p619
      %p622 = scmp.ne.s32.totalorder %s607, %s621
      %p623 = scmp.eq.s32.totalorder %s83, 0
      %p624 = por %p622, %p623
      %s626 = sadd.s32 %s625, 1
      %p629 = scmp.eq.s32.totalorder %s77, 1
      %p630 = scmp.ne.s32.totalorder %s625, %s627
      %p631 = scmp.eq.s32.totalorder %s77, 0
      %p632 = por %p630, %p631
      %p633 = scmp.ne.s32.totalorder %s625, %s627
      %p634 = scmp.eq.s32.totalorder %s82, 1
      %p635 = por %p633, %p634
      %p636 = scmp.ne.s32.totalorder %s627, %s628
      %p637 = scmp.eq.s32.totalorder %s82, 0
      %p638 = por %p636, %p637
      %p639 = scmp.ne.s32.totalorder %s627, %s628
      %p640 = scmp.eq.s32.totalorder %s83, 1
      %p641 = por %p639, %p640
      %p643 = scmp.ne.s32.totalorder %s628, %s642
      %p644 = scmp.eq.s32.totalorder %s83, 0
      %p645 = por %p643, %p644
      %s647 = sadd.s32 %s646, 1
      %p650 = scmp.eq.s32.totalorder %s77, 1
      %p651 = scmp.ne.s32.totalorder %s646, %s648
      %p652 = scmp.eq.s32.totalorder %s77, 0
      %p653 = por %p651, %p652
      %p654 = scmp.ne.s32.totalorder %s646, %s648
      %p655 = scmp.eq.s32.totalorder %s82, 1
      %p656 = por %p654, %p655
      %p657 = scmp.ne.s32.totalorder %s648, %s649
      %p658 = scmp.eq.s32.totalorder %s82, 0
      %p659 = por %p657, %p658
      %p660 = scmp.ne.s32.totalorder %s648, %s649
      %p661 = scmp.eq.s32.totalorder %s83, 1
      %p662 = por %p660, %p661
      %p664 = scmp.ne.s32.totalorder %s649, %s663
      %p665 = scmp.eq.s32.totalorder %s83, 0
      %p666 = por %p664, %p665
      %s668 = sadd.s32 %s667, 1
      %p671 = scmp.eq.s32.totalorder %s77, 1
      %p672 = scmp.ne.s32.totalorder %s667, %s669
      %p673 = scmp.eq.s32.totalorder %s77, 0
      %p674 = por %p672, %p673
      %p675 = scmp.ne.s32.totalorder %s667, %s669
      %p676 = scmp.eq.s32.totalorder %s82, 1
      %p677 = por %p675, %p676
      %p678 = scmp.ne.s32.totalorder %s669, %s670
      %p679 = scmp.eq.s32.totalorder %s82, 0
      %p680 = por %p678, %p679
      %p681 = scmp.ne.s32.totalorder %s669, %s670
      %p682 = scmp.eq.s32.totalorder %s83, 1
      %p683 = por %p681, %p682
      %p685 = scmp.ne.s32.totalorder %s670, %s684
      %p686 = scmp.eq.s32.totalorder %s83, 0
      %p687 = por %p685, %p686
      %s689 = sadd.s32 %s688, 1
      %p692 = scmp.eq.s32.totalorder %s77, 1
      %p693 = scmp.ne.s32.totalorder %s688, %s690
      %p694 = scmp.eq.s32.totalorder %s77, 0
      %p695 = por %p693, %p694
      %p696 = scmp.ne.s32.totalorder %s688, %s690
      %p697 = scmp.eq.s32.totalorder %s82, 1
      %p698 = por %p696, %p697
      %p699 = scmp.ne.s32.totalorder %s690, %s691
      %p700 = scmp.eq.s32.totalorder %s82, 0
      %p701 = por %p699, %p700
      %p702 = scmp.ne.s32.totalorder %s690, %s691
      %p703 = scmp.eq.s32.totalorder %s83, 1
      %p704 = por %p702, %p703
      %p706 = scmp.ne.s32.totalorder %s691, %s705
      %p707 = scmp.eq.s32.totalorder %s83, 0
      %p708 = por %p706, %p707
      %s710 = sadd.s32 %s709, 1
      %p713 = scmp.eq.s32.totalorder %s77, 1
      %p714 = scmp.ne.s32.totalorder %s709, %s711
      %p715 = scmp.eq.s32.totalorder %s77, 0
      %p716 = por %p714, %p715
      %p717 = scmp.ne.s32.totalorder %s709, %s711
      %p718 = scmp.eq.s32.totalorder %s82, 1
      %p719 = por %p717, %p718
      %p720 = scmp.ne.s32.totalorder %s711, %s712
      %p721 = scmp.eq.s32.totalorder %s82, 0
      %p722 = por %p720, %p721
      %p723 = scmp.ne.s32.totalorder %s711, %s712
      %p724 = scmp.eq.s32.totalorder %s83, 1
      %p725 = por %p723, %p724
      %p727 = scmp.ne.s32.totalorder %s712, %s726
      %p728 = scmp.eq.s32.totalorder %s83, 0
      %p729 = por %p727, %p728
      %s731 = sadd.s32 %s730, 1
      %p734 = scmp.eq.s32.totalorder %s77, 1
      %p735 = scmp.ne.s32.totalorder %s730, %s732
      %p736 = scmp.eq.s32.totalorder %s77, 0
      %p737 = por %p735, %p736
      %p738 = scmp.ne.s32.totalorder %s730, %s732
      %p739 = scmp.eq.s32.totalorder %s82, 1
      %p740 = por %p738, %p739
      %p741 = scmp.ne.s32.totalorder %s732, %s733
      %p742 = scmp.eq.s32.totalorder %s82, 0
      %p743 = por %p741, %p742
      %p744 = scmp.ne.s32.totalorder %s732, %s733
      %p745 = scmp.eq.s32.totalorder %s83, 1
      %p746 = por %p744, %p745
      %p748 = scmp.ne.s32.totalorder %s733, %s747
      %p749 = scmp.eq.s32.totalorder %s83, 0
      %p750 = por %p748, %p749
      %s752 = sadd.s32 %s751, 1
      %p755 = scmp.eq.s32.totalorder %s77, 1
      %p756 = scmp.ne.s32.totalorder %s751, %s753
      %p757 = scmp.eq.s32.totalorder %s77, 0
      %p758 = por %p756, %p757
      %p759 = scmp.ne.s32.totalorder %s751, %s753
      %p760 = scmp.eq.s32.totalorder %s82, 1
      %p761 = por %p759, %p760
      %p762 = scmp.ne.s32.totalorder %s753, %s754
      %p763 = scmp.eq.s32.totalorder %s82, 0
      %p764 = por %p762, %p763
      %p765 = scmp.ne.s32.totalorder %s753, %s754
      %p766 = scmp.eq.s32.totalorder %s83, 1
      %p767 = por %p765, %p766
      %p769 = scmp.ne.s32.totalorder %s754, %s768
      %p770 = scmp.eq.s32.totalorder %s83, 0
      %p771 = por %p769, %p770
      %s772 = ssub.s32 %s77, %s84
      %p773 = scmp.eq.s32.totalorder %s772, 0
      %s775 = sadd.s32 %s774, 1
      %s776 = scalar_select %p773, %s774, %s775
      %p779 = pneg %p773
      %p780 = scmp.eq.s32.totalorder %s77, 1
      %p781 = por %p779, %p780
      %p782 = scmp.ne.s32.totalorder %s774, %s777
      %p783 = scmp.eq.s32.totalorder %s77, 0
      %p784 = por %p782, %p783
      %p785 = scmp.ne.s32.totalorder %s774, %s777
      %p786 = scmp.eq.s32.totalorder %s82, 1
      %p787 = por %p785, %p786
      %p788 = scmp.ne.s32.totalorder %s777, %s778
      %p789 = scmp.eq.s32.totalorder %s82, 0
      %p790 = por %p788, %p789
      %p791 = scmp.ne.s32.totalorder %s777, %s778
      %p792 = scmp.eq.s32.totalorder %s83, 1
      %p793 = por %p791, %p792
      %p795 = scmp.ne.s32.totalorder %s778, %s794
      %p796 = scmp.eq.s32.totalorder %s83, 0
      %p797 = por %p795, %p796
      %s798 = ssub.s32 %s77, %s84
      %p799 = scmp.eq.s32.totalorder %s798, 0
      %s801 = sadd.s32 %s800, 1
      %s802 = scalar_select %p799, %s800, %s801
      %p805 = pneg %p799
      %p806 = scmp.eq.s32.totalorder %s77, 1
      %p807 = por %p805, %p806
      %p808 = scmp.ne.s32.totalorder %s800, %s803
      %p809 = scmp.eq.s32.totalorder %s77, 0
      %p810 = por %p808, %p809
      %p811 = scmp.ne.s32.totalorder %s800, %s803
      %p812 = scmp.eq.s32.totalorder %s82, 1
      %p813 = por %p811, %p812
      %p814 = scmp.ne.s32.totalorder %s803, %s804
      %p815 = scmp.eq.s32.totalorder %s82, 0
      %p816 = por %p814, %p815
      %p817 = scmp.ne.s32.totalorder %s803, %s804
      %p818 = scmp.eq.s32.totalorder %s83, 1
      %p819 = por %p817, %p818
      %p821 = scmp.ne.s32.totalorder %s804, %s820
      %p822 = scmp.eq.s32.totalorder %s83, 0
      %p823 = por %p821, %p822
      %p824 = scmp.le.s32.totalorder 1, %s77
      %p825 = scmp.lt.s32.totalorder %s77, 3
      %p826 = pnand %p824, %p825
      %p827 = pneg %p826
      // Predicated region
      $region9: #{diet_forward.1} parent=5 // pred_check
        _
      $region10: #{diet_forward.1} parent=5 // pred_check_branch
        %829 = sbr.rel (%p826) target = $region12
      $region11: #{diet_forward.1} parent=5 // pred_region
        %s830 = ssub.s32 %s77, 1
        // Predicated region
        $region13: #{diet_forward.1} parent=11 // pred_check
          %p831 = pneg %p176
        $region14: #{diet_forward.1} parent=11 // pred_check_branch
          %833 = sbr.rel (%p831) target = $region16
        $region15: #{diet_forward.1} parent=11 // pred_region
          _
        $region16: #{diet_forward.1} parent=11 // pred_fallthru
          _
        // Predicated region
        $region17: #{diet_forward.1} parent=11 // pred_check
          %p834 = pneg %p197
        $region18: #{diet_forward.1} parent=11 // pred_check_branch
          %836 = sbr.rel (%p834) target = $region20
        $region19: #{diet_forward.1} parent=11 // pred_region
          _
        $region20: #{diet_forward.1} parent=11 // pred_fallthru
          _
        // Predicated region
        $region21: #{diet_forward.1} parent=11 // pred_check
          %p837 = pneg %p218
        $region22: #{diet_forward.1} parent=11 // pred_check_branch
          %839 = sbr.rel (%p837) target = $region24
        $region23: #{diet_forward.1} parent=11 // pred_region
          _
        $region24: #{diet_forward.1} parent=11 // pred_fallthru
          _
        // Predicated region
        $region25: #{diet_forward.1} parent=11 // pred_check
          %p840 = pneg %p239
        $region26: #{diet_forward.1} parent=11 // pred_check_branch
          %842 = sbr.rel (%p840) target = $region28
        $region27: #{diet_forward.1} parent=11 // pred_region
          _
        $region28: #{diet_forward.1} parent=11 // pred_fallthru
          _
        // Predicated region
        $region29: #{diet_forward.1} parent=11 // pred_check
          %p843 = pneg %p260
        $region30: #{diet_forward.1} parent=11 // pred_check_branch
          %845 = sbr.rel (%p843) target = $region32
        $region31: #{diet_forward.1} parent=11 // pred_region
          _
        $region32: #{diet_forward.1} parent=11 // pred_fallthru
          _
        // Predicated region
        $region33: #{diet_forward.1} parent=11 // pred_check
          %p846 = pneg %p281
        $region34: #{diet_forward.1} parent=11 // pred_check_branch
          %848 = sbr.rel (%p846) target = $region36
        $region35: #{diet_forward.1} parent=11 // pred_region
          _
        $region36: #{diet_forward.1} parent=11 // pred_fallthru
          _
        // Predicated region
        $region37: #{diet_forward.1} parent=11 // pred_check
          %p849 = pneg %p302
        $region38: #{diet_forward.1} parent=11 // pred_check_branch
          %851 = sbr.rel (%p849) target = $region40
        $region39: #{diet_forward.1} parent=11 // pred_region
          _
        $region40: #{diet_forward.1} parent=11 // pred_fallthru
          _
        // Predicated region
        $region41: #{diet_forward.1} parent=11 // pred_check
          %p852 = pneg %p323
        $region42: #{diet_forward.1} parent=11 // pred_check_branch
          %854 = sbr.rel (%p852) target = $region44
        $region43: #{diet_forward.1} parent=11 // pred_region
          _
        $region44: #{diet_forward.1} parent=11 // pred_fallthru
          _
        // Predicated region
        $region45: #{diet_forward.1} parent=11 // pred_check
          %p855 = pneg %p344
        $region46: #{diet_forward.1} parent=11 // pred_check_branch
          %857 = sbr.rel (%p855) target = $region48
        $region47: #{diet_forward.1} parent=11 // pred_region
          _
        $region48: #{diet_forward.1} parent=11 // pred_fallthru
          _
        // Predicated region
        $region49: #{diet_forward.1} parent=11 // pred_check
          %p858 = pneg %p365
        $region50: #{diet_forward.1} parent=11 // pred_check_branch
          %860 = sbr.rel (%p858) target = $region52
        $region51: #{diet_forward.1} parent=11 // pred_region
          _
        $region52: #{diet_forward.1} parent=11 // pred_fallthru
          _
        // Predicated region
        $region53: #{diet_forward.1} parent=11 // pred_check
          %p861 = pneg %p386
        $region54: #{diet_forward.1} parent=11 // pred_check_branch
          %863 = sbr.rel (%p861) target = $region56
        $region55: #{diet_forward.1} parent=11 // pred_region
          _
        $region56: #{diet_forward.1} parent=11 // pred_fallthru
          _
        // Predicated region
        $region57: #{diet_forward.1} parent=11 // pred_check
          %p864 = pneg %p407
        $region58: #{diet_forward.1} parent=11 // pred_check_branch
          %866 = sbr.rel (%p864) target = $region60
        $region59: #{diet_forward.1} parent=11 // pred_region
          _
        $region60: #{diet_forward.1} parent=11 // pred_fallthru
          _
        // Predicated region
        $region61: #{diet_forward.1} parent=11 // pred_check
          %p867 = pneg %p428
        $region62: #{diet_forward.1} parent=11 // pred_check_branch
          %869 = sbr.rel (%p867) target = $region64
        $region63: #{diet_forward.1} parent=11 // pred_region
          _
        $region64: #{diet_forward.1} parent=11 // pred_fallthru
          _
        // Predicated region
        $region65: #{diet_forward.1} parent=11 // pred_check
          %p870 = pneg %p449
        $region66: #{diet_forward.1} parent=11 // pred_check_branch
          %872 = sbr.rel (%p870) target = $region68
        $region67: #{diet_forward.1} parent=11 // pred_region
          _
        $region68: #{diet_forward.1} parent=11 // pred_fallthru
          _
        // Predicated region
        $region69: #{diet_forward.1} parent=11 // pred_check
          %p873 = pneg %p470
        $region70: #{diet_forward.1} parent=11 // pred_check_branch
          %875 = sbr.rel (%p873) target = $region72
        $region71: #{diet_forward.1} parent=11 // pred_region
          _
        $region72: #{diet_forward.1} parent=11 // pred_fallthru
          _
        // Predicated region
        $region73: #{diet_forward.1} parent=11 // pred_check
          %p876 = pneg %p491
        $region74: #{diet_forward.1} parent=11 // pred_check_branch
          %878 = sbr.rel (%p876) target = $region76
        $region75: #{diet_forward.1} parent=11 // pred_region
          _
        $region76: #{diet_forward.1} parent=11 // pred_fallthru
          _
        // Predicated region
        $region77: #{diet_forward.1} parent=11 // pred_check
          %p879 = pneg %p512
        $region78: #{diet_forward.1} parent=11 // pred_check_branch
          %881 = sbr.rel (%p879) target = $region80
        $region79: #{diet_forward.1} parent=11 // pred_region
          _
        $region80: #{diet_forward.1} parent=11 // pred_fallthru
          _
        // Predicated region
        $region81: #{diet_forward.1} parent=11 // pred_check
          %p882 = pneg %p533
        $region82: #{diet_forward.1} parent=11 // pred_check_branch
          %884 = sbr.rel (%p882) target = $region84
        $region83: #{diet_forward.1} parent=11 // pred_region
          _
        $region84: #{diet_forward.1} parent=11 // pred_fallthru
          _
        // Predicated region
        $region85: #{diet_forward.1} parent=11 // pred_check
          %p885 = pneg %p554
        $region86: #{diet_forward.1} parent=11 // pred_check_branch
          %887 = sbr.rel (%p885) target = $region88
        $region87: #{diet_forward.1} parent=11 // pred_region
          _
        $region88: #{diet_forward.1} parent=11 // pred_fallthru
          _
        // Predicated region
        $region89: #{diet_forward.1} parent=11 // pred_check
          %p888 = pneg %p575
        $region90: #{diet_forward.1} parent=11 // pred_check_branch
          %890 = sbr.rel (%p888) target = $region92
        $region91: #{diet_forward.1} parent=11 // pred_region
          _
        $region92: #{diet_forward.1} parent=11 // pred_fallthru
          _
        // Predicated region
        $region93: #{diet_forward.1} parent=11 // pred_check
          %p891 = pneg %p596
        $region94: #{diet_forward.1} parent=11 // pred_check_branch
          %893 = sbr.rel (%p891) target = $region96
        $region95: #{diet_forward.1} parent=11 // pred_region
          _
        $region96: #{diet_forward.1} parent=11 // pred_fallthru
          _
        // Predicated region
        $region97: #{diet_forward.1} parent=11 // pred_check
          %p894 = pneg %p617
        $region98: #{diet_forward.1} parent=11 // pred_check_branch
          %896 = sbr.rel (%p894) target = $region100
        $region99: #{diet_forward.1} parent=11 // pred_region
          _
        $region100: #{diet_forward.1} parent=11 // pred_fallthru
          _
        // Predicated region
        $region101: #{diet_forward.1} parent=11 // pred_check
          %p897 = pneg %p638
        $region102: #{diet_forward.1} parent=11 // pred_check_branch
          %899 = sbr.rel (%p897) target = $region104
        $region103: #{diet_forward.1} parent=11 // pred_region
          _
        $region104: #{diet_forward.1} parent=11 // pred_fallthru
          _
        // Predicated region
        $region105: #{diet_forward.1} parent=11 // pred_check
          %p900 = pneg %p659
        $region106: #{diet_forward.1} parent=11 // pred_check_branch
          %902 = sbr.rel (%p900) target = $region108
        $region107: #{diet_forward.1} parent=11 // pred_region
          _
        $region108: #{diet_forward.1} parent=11 // pred_fallthru
          _
        // Predicated region
        $region109: #{diet_forward.1} parent=11 // pred_check
          %p903 = pneg %p680
        $region110: #{diet_forward.1} parent=11 // pred_check_branch
          %905 = sbr.rel (%p903) target = $region112
        $region111: #{diet_forward.1} parent=11 // pred_region
          _
        $region112: #{diet_forward.1} parent=11 // pred_fallthru
          _
        // Predicated region
        $region113: #{diet_forward.1} parent=11 // pred_check
          %p906 = pneg %p701
        $region114: #{diet_forward.1} parent=11 // pred_check_branch
          %908 = sbr.rel (%p906) target = $region116
        $region115: #{diet_forward.1} parent=11 // pred_region
          _
        $region116: #{diet_forward.1} parent=11 // pred_fallthru
          _
        // Predicated region
        $region117: #{diet_forward.1} parent=11 // pred_check
          %p909 = pneg %p722
        $region118: #{diet_forward.1} parent=11 // pred_check_branch
          %911 = sbr.rel (%p909) target = $region120
        $region119: #{diet_forward.1} parent=11 // pred_region
          _
        $region120: #{diet_forward.1} parent=11 // pred_fallthru
          _
        // Predicated region
        $region121: #{diet_forward.1} parent=11 // pred_check
          %p912 = pneg %p743
        $region122: #{diet_forward.1} parent=11 // pred_check_branch
          %914 = sbr.rel (%p912) target = $region124
        $region123: #{diet_forward.1} parent=11 // pred_region
          _
        $region124: #{diet_forward.1} parent=11 // pred_fallthru
          _
        // Predicated region
        $region125: #{diet_forward.1} parent=11 // pred_check
          %p915 = pneg %p764
        $region126: #{diet_forward.1} parent=11 // pred_check_branch
          %917 = sbr.rel (%p915) target = $region128
        $region127: #{diet_forward.1} parent=11 // pred_region
          _
        $region128: #{diet_forward.1} parent=11 // pred_fallthru
          _
      $region12: #{diet_forward.1} parent=5 // pred_fallthru
        _
      %p918 = scmp.lt.s32.totalorder %s77, 2
      // Predicated region
      $region129: #{diet_forward.1} parent=5 // pred_check
        %p919 = pneg %p918
      $region130: #{diet_forward.1} parent=5 // pred_check_branch
        %921 = sbr.rel (%p919) target = $region132
      $region131: #{diet_forward.1} parent=5 // pred_region
        // Predicated region
        $region133: #{diet_forward.1} parent=131 // pred_check
          %p922 = pneg %p97
        $region134: #{diet_forward.1} parent=131 // pred_check_branch
          %924 = sbr.rel (%p922) target = $region136
        $region135: #{diet_forward.1} parent=131 // pred_region
          %p925 = scmp.lt.s32.totalorder %s77, 1
          %s926 = scalar_select %p925, %s77, 1
          %s927 = smul.addr %s926, 8
          %s928 = scalar_lea.vmem %s1, %s927
        $region136: #{diet_forward.1} parent=131 // pred_fallthru
          _
        // Predicated region
        $region137: #{diet_forward.1} parent=131 // pred_check
          %p929 = pneg %p123
        $region138: #{diet_forward.1} parent=131 // pred_check_branch
          %931 = sbr.rel (%p929) target = $region140
        $region139: #{diet_forward.1} parent=131 // pred_region
          %p932 = scmp.lt.s32.totalorder %s77, 1
          %s933 = scalar_select %p932, %s77, 1
          %s934 = scalar_lea.vmem %s3, %s933
        $region140: #{diet_forward.1} parent=131 // pred_fallthru
          _
        // Predicated region
        $region141: #{diet_forward.1} parent=131 // pred_check
          %p935 = pneg %p149
        $region142: #{diet_forward.1} parent=131 // pred_check_branch
          %937 = sbr.rel (%p935) target = $region144
        $region143: #{diet_forward.1} parent=131 // pred_region
          %p938 = scmp.lt.s32.totalorder %s77, 1
          %s939 = scalar_select %p938, %s77, 1
          %s940 = scalar_lea.vmem %s5, %s939
        $region144: #{diet_forward.1} parent=131 // pred_fallthru
          _
      $region132: #{diet_forward.1} parent=5 // pred_fallthru
        _
      %p941 = scmp.le.s32.totalorder 1, %s77
      %p942 = scmp.lt.s32.totalorder %s77, 3
      %p943 = pnand %p941, %p942
      %p944 = pneg %p943
      // Predicated region
      $region145: #{diet_forward.1} parent=5 // pred_check
        _
      $region146: #{diet_forward.1} parent=5 // pred_check_branch
        %946 = sbr.rel (%p943) target = $region148
      $region147: #{diet_forward.1} parent=5 // pred_region
        %s947 = ssub.s32 %s77, 1
        %p948 = scmp.lt.s32.totalorder %s82, 1
        %s949 = scalar_select %p948, %s82, 1
        %s950 = smul.addr %s949, 8
        %s951 = scalar_lea.vmem %s1, %s950
        %p952 = pneg %p103
        %p953 = pneg %p100
        %p954 = scmp.lt.s32.totalorder %s82, 1
        %s955 = scalar_select %p954, %s82, 1
        %s956 = scalar_lea.vmem %s3, %s955
        %p957 = pneg %p129
        %p958 = pneg %p126
        %p959 = scmp.lt.s32.totalorder %s82, 1
        %s960 = scalar_select %p959, %s82, 1
        %s961 = scalar_lea.vmem %s5, %s960
        %p962 = pneg %p155
        %p963 = pneg %p152
        %p964 = pneg %p176
        %p965 = pneg %p173
        %p966 = pneg %p197
        %p967 = pneg %p194
        %p968 = pneg %p218
        %p969 = pneg %p215
        %p970 = pneg %p239
        %p971 = pneg %p236
        %p972 = pneg %p260
        %p973 = pneg %p257
        %p974 = pneg %p281
        %p975 = pneg %p278
        %p976 = pneg %p302
        %p977 = pneg %p299
        %p978 = pneg %p323
        %p979 = pneg %p320
        %p980 = pneg %p344
        %p981 = pneg %p341
        %p982 = pneg %p365
        %p983 = pneg %p362
        %p984 = pneg %p386
        %p985 = pneg %p383
        %p986 = pneg %p407
        %p987 = pneg %p404
        %p988 = pneg %p428
        %p989 = pneg %p425
        %p990 = pneg %p449
        %p991 = pneg %p446
        %p992 = pneg %p470
        %p993 = pneg %p467
        %p994 = pneg %p491
        %p995 = pneg %p488
        %p996 = pneg %p512
        %p997 = pneg %p509
        %p998 = pneg %p533
        %p999 = pneg %p530
        %p1000 = pneg %p554
        %p1001 = pneg %p551
        %p1002 = pneg %p575
        %p1003 = pneg %p572
        %p1004 = pneg %p596
        %p1005 = pneg %p593
        %p1006 = pneg %p617
        %p1007 = pneg %p614
        %p1008 = pneg %p638
        %p1009 = pneg %p635
        %p1010 = pneg %p659
        %p1011 = pneg %p656
        %p1012 = pneg %p680
        %p1013 = pneg %p677
        %p1014 = pneg %p701
        %p1015 = pneg %p698
        %p1016 = pneg %p722
        %p1017 = pneg %p719
        %p1018 = pneg %p743
        %p1019 = pneg %p740
        %p1020 = pneg %p764
        %p1021 = pneg %p761
        %p1022 = pneg %p790
        %p1023 = pneg %p787
        %s1024 = sand.u32 %s777, 1
        %s1025 = scalar_lea.sflag [#allocation3], %s1024
        %s1026 = sand.u32 %s777, 1
        %s1027 = scalar_lea.vmem [#allocation2], %s1026
        %p1028 = pneg %p816
        %p1029 = pneg %p813
        %p1030 = scmp.lt.s32.totalorder %s82, 1
        %s1031 = scalar_select %p1030, %s82, 1
        %s1032 = smul.addr %s1031, 8
        %s1033 = scalar_lea.vmem %s67, %s1032
        %p1034 = scmp.lt.s32.totalorder %s82, 1
        %s1035 = scalar_select %p1034, %s82, 1
        %s1036 = smul.addr %s1035, 8
        %s1037 = scalar_lea.vmem %s1, %s1036
        %p1038 = scmp.lt.s32.totalorder %s82, 1
        %s1039 = scalar_select %p1038, %s82, 1
        %s1040 = scalar_lea.vmem %s3, %s1039
        %p1041 = scmp.lt.s32.totalorder %s82, 1
        %s1042 = scalar_select %p1041, %s82, 1
        %s1043 = scalar_lea.vmem %s5, %s1042
        %p1044 = scmp.lt.s32.totalorder %s82, 1
        %s1045 = scalar_select %p1044, %s82, 1
        %s1046 = smul.addr %s1045, 8
        %s1047 = scalar_lea.vmem %s67, %s1046
        %v1049 = vld [vmem:[%s1037] sm:$0xff]
        %v1050 = vld [vmem:[%s9] sm:$0xf]
        %v1051 = vld [vmem:[%s9 + $0x4] sm:$0xf]
        %v1052 = vld [vmem:[%s9 + $0x8] sm:$0xf]
        %v1053 = vld [vmem:[%s9 + $0xc] sm:$0xf]
        %v1054 = vpack.c.bf16 %v1049, %v1049
        %v1055 = vld [vmem:[%s11] sm:$0x1]
        %v1057 = vlaneseq
        %v1058 = vshrl.u32 %v1057, 7
        %v1059 = vsub.s32 0, %v1058
        %v1060 = vrot.slane %v1055, %v1059
        %v1066 = vunpack.c.l.b16 %v1050
        %v1067 = vunpack.c.l.b16 %v1051
        %v1068 = vunpack.c.l.b16 %v1052
        %v1069 = vunpack.c.l.b16 %v1053
        %v1070 = vpack.c.b16 %v1067, %v1066
        %v1071 = vpack.c.b16 %v1069, %v1068
        %vm1074 = vcmask 261120
        %v1076 = vsel %vm1074, %v1054, 0
        %1078 = vmatprep.subr.bf16.mxu0 0
        %1079 = vmatpush1.bf16.msra.mxu0 0
        %1080 = vmatprep.subr.bf16.mxu0 0
        %1081 = vmatpush1.bf16.msra.mxu0 0
        %1082 = vmatprep.subr.bf16.mxu0 0
        %1083 = vmatpush1.bf16.msra.mxu0 0
        %1084 = vmatprep.subr.bf16.mxu0 0
        %1085 = vmatpush1.bf16.msra.mxu0 0
        %1086 = vmatprep.subr.bf16.mxu0 0
        %1087 = vmatpush1.bf16.msra.mxu0 0
        %1088 = vmatprep.subr.bf16.mxu0 0
        %1089 = vmatpush1.bf16.msra.mxu0 0
        %1090 = vmatprep.subr.bf16.mxu0 0
        %1091 = vmatpush1.bf16.msra.mxu0 %v1071
        %1092 = vmatprep.subr.bf16.mxu0 0
        %1093 = vmatpush1.bf16.msra.mxu0 %v1070
        %1094 = vmatprep.subr.bf16.mxu0 0
        %1095 = vmatpush2.bf16.msra.mxu0 0
        %1096 = vmatprep.subr.bf16.mxu0 0
        %1097 = vmatpush2.bf16.msra.mxu0 0
        %1098 = vmatprep.subr.bf16.mxu0 0
        %1099 = vmatpush2.bf16.msra.mxu0 0
        %1100 = vmatprep.subr.bf16.mxu0 0
        %1101 = vmatpush2.bf16.msra.mxu0 0
        %1102 = vmatprep.subr.bf16.mxu0 0
        %1103 = vmatpush2.bf16.msra.mxu0 0
        %1104 = vmatprep.subr.bf16.mxu0 0
        %1105 = vmatpush2.bf16.msra.mxu0 0
        %1106 = vmatprep.subr.bf16.mxu0 0
        %1107 = vmatpush2.bf16.msra.mxu0 0
        %1108 = vmatprep.subr.bf16.mxu0 0
        %1109 = vmatpush2.bf16.msra.mxu0 0
        %1110 = vmatprep.mubr.bf16.mxu0 0
        %1111 = vmatmul.mubr.bf16.gmra.mxu0 %v1076
        %v1112 = vpop.f32.mrf.mxu0
        %v1113 = vadd.f32 %v1060, %v1112
        %v1114 = vpop.f32.mrf.mxu0
        %v1115 = vpop.f32.mrf.mxu0
        %v1116 = vpop.f32.mrf.mxu0
        %1117 = vdwg.mxu0
        %vm1118 = vcmp.ge.f32.partialorder %v1113, 0.0
        %v1119 = vmul.f32 %v1113, 0.1
        %v1120 = vsel %vm1118, %v1113, %v1119
        %v1121 = vld [vmem:[%s1040] sm:$0x1]
        %v1122 = vld [vmem:[%s13] sm:$0xf]
        %v1123 = vld [vmem:[%s13 + $0x4] sm:$0xf]
        %v1124 = vld [vmem:[%s13 + $0x8] sm:$0xf]
        %v1125 = vpack.c.bf16 %v1121, %v1121
        %v1126 = vld [vmem:[%s15] sm:$0x1]
        %v1130 = vunpack.c.l.b16 %v1122
        %v1131 = vunpack.c.l.b16 %v1123
        %v1132 = vunpack.c.l.b16 %v1124
        %v1133 = vpack.c.b16 %v1131, %v1130
        %v1134 = vpack.c.b16 %v1132, %v1132
        %vm1136 = vcmask 195584
        %v1138 = vsel %vm1136, %v1125, 0
        %vm1140 = vcmask 1043456
        %v1142 = vsel %vm1140, %v1134, 0
        %1144 = vmatprep.subr.bf16.mxu0 0
        %1145 = vmatpush1.bf16.msra.mxu0 0
        %1146 = vmatprep.subr.bf16.mxu0 0
        %1147 = vmatpush1.bf16.msra.mxu0 0
        %1148 = vmatprep.subr.bf16.mxu0 0
        %1149 = vmatpush1.bf16.msra.mxu0 0
        %1150 = vmatprep.subr.bf16.mxu0 0
        %1151 = vmatpush1.bf16.msra.mxu0 0
        %1152 = vmatprep.subr.bf16.mxu0 0
        %1153 = vmatpush1.bf16.msra.mxu0 0
        %1154 = vmatprep.subr.bf16.mxu0 0
        %1155 = vmatpush1.bf16.msra.mxu0 0
        %1156 = vmatprep.subr.bf16.mxu0 0
        %1157 = vmatpush1.bf16.msra.mxu0 %v1142
        %1158 = vmatprep.subr.bf16.mxu0 0
        %1159 = vmatpush1.bf16.msra.mxu0 %v1133
        %1160 = vmatprep.subr.bf16.mxu0 0
        %1161 = vmatpush2.bf16.msra.mxu0 0
        %1162 = vmatprep.subr.bf16.mxu0 0
        %1163 = vmatpush2.bf16.msra.mxu0 0
        %1164 = vmatprep.subr.bf16.mxu0 0
        %1165 = vmatpush2.bf16.msra.mxu0 0
        %1166 = vmatprep.subr.bf16.mxu0 0
        %1167 = vmatpush2.bf16.msra.mxu0 0
        %1168 = vmatprep.subr.bf16.mxu0 0
        %1169 = vmatpush2.bf16.msra.mxu0 0
        %1170 = vmatprep.subr.bf16.mxu0 0
        %1171 = vmatpush2.bf16.msra.mxu0 0
        %1172 = vmatprep.subr.bf16.mxu0 0
        %1173 = vmatpush2.bf16.msra.mxu0 0
        %1174 = vmatprep.subr.bf16.mxu0 0
        %1175 = vmatpush2.bf16.msra.mxu0 0
        %1176 = vmatprep.mubr.bf16.mxu0 0
        %1177 = vmatmul.mubr.bf16.gmra.mxu0 %v1138
        %v1178 = vpop.f32.mrf.mxu0
        %v1179 = vadd.f32 %v1126, %v1178
        %v1180 = vpop.f32.mrf.mxu0
        %v1181 = vpop.f32.mrf.mxu0
        %v1182 = vpop.f32.mrf.mxu0
        %1183 = vdwg.mxu0
        %vm1184 = vcmp.ge.f32.partialorder %v1179, 0.0
        %v1185 = vmul.f32 %v1179, 0.1
        %v1186 = vsel %vm1184, %v1179, %v1185
        %v1187 = vlaneseq
        %v1188 = vshrl.u32 %v1187, 7
        %vm1189 = vcmp.eq.s32.totalorder %v1188, 0
        %v1190 = vlaneseq
        %v1191 = vshrl.u32 %v1190, 7
        %v1192 = vsub.s32 0, %v1191
        %v1193 = vrot.slane %v1186, %v1192
        %v1194 = vsel %vm1189, %v1193, %v1120
        %v1195 = vld [vmem:[%s7] sm:$0xff]
        %v1196 = vadd.f32 %v1194, %v1195
        %v1197 = vld [vmem:[%s1043] sm:$0x1]
        %v1198 = vpack.c.bf16 %v1196, %v1196
        %v1199 = vld [vmem:[%s31] sm:$0x1]
        %v1200 = vld [vmem:[%s17] sm:$0xf]
        %v1201 = vld [vmem:[%s17 + $0x4] sm:$0xf]
        %v1202 = vld [vmem:[%s17 + $0x8] sm:$0xf]
        %v1203 = vld [vmem:[%s17 + $0xc] sm:$0xf]
        %v1204 = vld [vmem:[%s19] sm:$0x1]
        %v1206 = vlaneseq
        %v1207 = vshrl.u32 %v1206, 7
        %v1208 = vsub.s32 0, %v1207
        %v1209 = vrot.slane %v1204, %v1208
        %v1215 = vunpack.c.l.b16 %v1200
        %v1216 = vunpack.c.l.b16 %v1201
        %v1217 = vunpack.c.l.b16 %v1202
        %v1218 = vunpack.c.l.b16 %v1203
        %v1219 = vpack.c.b16 %v1216, %v1215
        %v1220 = vpack.c.b16 %v1218, %v1217
        %v1224 = vsel %vm1074, %v1198, 0
        %1226 = vmatprep.subr.bf16.mxu0 0
        %1227 = vmatpush1.bf16.msra.mxu0 0
        %1228 = vmatprep.subr.bf16.mxu0 0
        %1229 = vmatpush1.bf16.msra.mxu0 0
        %1230 = vmatprep.subr.bf16.mxu0 0
        %1231 = vmatpush1.bf16.msra.mxu0 0
        %1232 = vmatprep.subr.bf16.mxu0 0
        %1233 = vmatpush1.bf16.msra.mxu0 0
        %1234 = vmatprep.subr.bf16.mxu0 0
        %1235 = vmatpush1.bf16.msra.mxu0 0
        %1236 = vmatprep.subr.bf16.mxu0 0
        %1237 = vmatpush1.bf16.msra.mxu0 0
        %1238 = vmatprep.subr.bf16.mxu0 0
        %1239 = vmatpush1.bf16.msra.mxu0 %v1220
        %1240 = vmatprep.subr.bf16.mxu0 0
        %1241 = vmatpush1.bf16.msra.mxu0 %v1219
        %1242 = vmatprep.subr.bf16.mxu0 0
        %1243 = vmatpush2.bf16.msra.mxu0 0
        %1244 = vmatprep.subr.bf16.mxu0 0
        %1245 = vmatpush2.bf16.msra.mxu0 0
        %1246 = vmatprep.subr.bf16.mxu0 0
        %1247 = vmatpush2.bf16.msra.mxu0 0
        %1248 = vmatprep.subr.bf16.mxu0 0
        %1249 = vmatpush2.bf16.msra.mxu0 0
        %1250 = vmatprep.subr.bf16.mxu0 0
        %1251 = vmatpush2.bf16.msra.mxu0 0
        %1252 = vmatprep.subr.bf16.mxu0 0
        %1253 = vmatpush2.bf16.msra.mxu0 0
        %1254 = vmatprep.subr.bf16.mxu0 0
        %1255 = vmatpush2.bf16.msra.mxu0 0
        %1256 = vmatprep.subr.bf16.mxu0 0
        %1257 = vmatpush2.bf16.msra.mxu0 0
        %1258 = vmatprep.mubr.bf16.mxu0 0
        %1259 = vmatmul.mubr.bf16.gmra.mxu0 %v1224
        %v1260 = vpop.f32.mrf.mxu0
        %v1261 = vadd.f32 %v1209, %v1260
        %v1262 = vpop.f32.mrf.mxu0
        %v1263 = vpop.f32.mrf.mxu0
        %v1264 = vpop.f32.mrf.mxu0
        %1265 = vdwg.mxu0
        %v1266 = vld [vmem:[%s21] sm:$0xf]
        %v1267 = vld [vmem:[%s21 + $0x4] sm:$0xf]
        %v1268 = vld [vmem:[%s21 + $0x8] sm:$0xf]
        %v1269 = vld [vmem:[%s21 + $0xc] sm:$0xf]
        %v1270 = vld [vmem:[%s23] sm:$0x1]
        %v1272 = vlaneseq
        %v1273 = vshrl.u32 %v1272, 7
        %v1274 = vsub.s32 0, %v1273
        %v1275 = vrot.slane %v1270, %v1274
        %v1281 = vunpack.c.l.b16 %v1266
        %v1282 = vunpack.c.l.b16 %v1267
        %v1283 = vunpack.c.l.b16 %v1268
        %v1284 = vunpack.c.l.b16 %v1269
        %v1285 = vpack.c.b16 %v1282, %v1281
        %v1286 = vpack.c.b16 %v1284, %v1283
        %1289 = vmatprep.subr.bf16.mxu0 0
        %1290 = vmatpush1.bf16.msra.mxu0 0
        %1291 = vmatprep.subr.bf16.mxu0 0
        %1292 = vmatpush1.bf16.msra.mxu0 0
        %1293 = vmatprep.subr.bf16.mxu0 0
        %1294 = vmatpush1.bf16.msra.mxu0 0
        %1295 = vmatprep.subr.bf16.mxu0 0
        %1296 = vmatpush1.bf16.msra.mxu0 0
        %1297 = vmatprep.subr.bf16.mxu0 0
        %1298 = vmatpush1.bf16.msra.mxu0 0
        %1299 = vmatprep.subr.bf16.mxu0 0
        %1300 = vmatpush1.bf16.msra.mxu0 0
        %1301 = vmatprep.subr.bf16.mxu0 0
        %1302 = vmatpush1.bf16.msra.mxu0 %v1286
        %1303 = vmatprep.subr.bf16.mxu0 0
        %1304 = vmatpush1.bf16.msra.mxu0 %v1285
        %1305 = vmatprep.subr.bf16.mxu0 0
        %1306 = vmatpush2.bf16.msra.mxu0 0
        %1307 = vmatprep.subr.bf16.mxu0 0
        %1308 = vmatpush2.bf16.msra.mxu0 0
        %1309 = vmatprep.subr.bf16.mxu0 0
        %1310 = vmatpush2.bf16.msra.mxu0 0
        %1311 = vmatprep.subr.bf16.mxu0 0
        %1312 = vmatpush2.bf16.msra.mxu0 0
        %1313 = vmatprep.subr.bf16.mxu0 0
        %1314 = vmatpush2.bf16.msra.mxu0 0
        %1315 = vmatprep.subr.bf16.mxu0 0
        %1316 = vmatpush2.bf16.msra.mxu0 0
        %1317 = vmatprep.subr.bf16.mxu0 0
        %1318 = vmatpush2.bf16.msra.mxu0 0
        %1319 = vmatprep.subr.bf16.mxu0 0
        %1320 = vmatpush2.bf16.msra.mxu0 0
        %1321 = vmatprep.mubr.bf16.mxu0 0
        %1322 = vmatmul.mubr.bf16.gmra.mxu0 %v1224
        %v1323 = vpop.f32.mrf.mxu0
        %v1324 = vadd.f32 %v1275, %v1323
        %v1325 = vpop.f32.mrf.mxu0
        %v1326 = vpop.f32.mrf.mxu0
        %v1327 = vpop.f32.mrf.mxu0
        %1328 = vdwg.mxu0
        %v1329 = vld [vmem:[%s25] sm:$0xf]
        %v1330 = vld [vmem:[%s25 + $0x4] sm:$0xf]
        %v1331 = vld [vmem:[%s25 + $0x8] sm:$0xf]
        %v1332 = vld [vmem:[%s25 + $0xc] sm:$0xf]
        %v1333 = vld [vmem:[%s27] sm:$0x1]
        %v1335 = vlaneseq
        %v1336 = vshrl.u32 %v1335, 7
        %v1337 = vsub.s32 0, %v1336
        %v1338 = vrot.slane %v1333, %v1337
        %v1344 = vunpack.c.l.b16 %v1329
        %v1345 = vunpack.c.l.b16 %v1330
        %v1346 = vunpack.c.l.b16 %v1331
        %v1347 = vunpack.c.l.b16 %v1332
        %v1348 = vpack.c.b16 %v1345, %v1344
        %v1349 = vpack.c.b16 %v1347, %v1346
        %1352 = vmatprep.subr.bf16.mxu0 0
        %1353 = vmatpush1.bf16.msra.mxu0 0
        %1354 = vmatprep.subr.bf16.mxu0 0
        %1355 = vmatpush1.bf16.msra.mxu0 0
        %1356 = vmatprep.subr.bf16.mxu0 0
        %1357 = vmatpush1.bf16.msra.mxu0 0
        %1358 = vmatprep.subr.bf16.mxu0 0
        %1359 = vmatpush1.bf16.msra.mxu0 0
        %1360 = vmatprep.subr.bf16.mxu0 0
        %1361 = vmatpush1.bf16.msra.mxu0 0
        %1362 = vmatprep.subr.bf16.mxu0 0
        %1363 = vmatpush1.bf16.msra.mxu0 0
        %1364 = vmatprep.subr.bf16.mxu0 0
        %1365 = vmatpush1.bf16.msra.mxu0 %v1349
        %1366 = vmatprep.subr.bf16.mxu0 0
        %1367 = vmatpush1.bf16.msra.mxu0 %v1348
        %1368 = vmatprep.subr.bf16.mxu0 0
        %1369 = vmatpush2.bf16.msra.mxu0 0
        %1370 = vmatprep.subr.bf16.mxu0 0
        %1371 = vmatpush2.bf16.msra.mxu0 0
        %1372 = vmatprep.subr.bf16.mxu0 0
        %1373 = vmatpush2.bf16.msra.mxu0 0
        %1374 = vmatprep.subr.bf16.mxu0 0
        %1375 = vmatpush2.bf16.msra.mxu0 0
        %1376 = vmatprep.subr.bf16.mxu0 0
        %1377 = vmatpush2.bf16.msra.mxu0 0
        %1378 = vmatprep.subr.bf16.mxu0 0
        %1379 = vmatpush2.bf16.msra.mxu0 0
        %1380 = vmatprep.subr.bf16.mxu0 0
        %1381 = vmatpush2.bf16.msra.mxu0 0
        %1382 = vmatprep.subr.bf16.mxu0 0
        %1383 = vmatpush2.bf16.msra.mxu0 0
        %1384 = vmatprep.mubr.bf16.mxu0 0
        %1385 = vmatmul.mubr.bf16.gmra.mxu0 %v1224
        %v1386 = vpop.f32.mrf.mxu0
        %v1387 = vadd.f32 %v1338, %v1386
        %v1388 = vpop.f32.mrf.mxu0
        %v1389 = vpop.f32.mrf.mxu0
        %v1390 = vpop.f32.mrf.mxu0
        %1391 = vdwg.mxu0
        %v1392 = vpack.c.bf16 %v1261, %v1261
        %v1393 = vpack.c.bf16 %v1324, %v1324
        %vm1394 = vcmask 130048
        %v1396 = vsel %vm1394, %v1392, 0
        %v1399 = vsel %vm1394, %v1393, 0
        %1401 = vmatprep.subr.bf16.mxu0 0
        %1402 = vmatpush1.bf16.xpose.msra.mxu0 0
        %1403 = vmatprep.subr.bf16.mxu0 0
        %1404 = vmatpush1.bf16.xpose.msra.mxu0 0
        %1405 = vmatprep.subr.bf16.mxu0 0
        %1406 = vmatpush1.bf16.xpose.msra.mxu0 0
        %1407 = vmatprep.subr.bf16.mxu0 0
        %1408 = vmatpush1.bf16.xpose.msra.mxu0 0
        %1409 = vmatprep.subr.bf16.mxu0 0
        %1410 = vmatpush1.bf16.xpose.msra.mxu0 0
        %1411 = vmatprep.subr.bf16.mxu0 0
        %1412 = vmatpush1.bf16.xpose.msra.mxu0 0
        %1413 = vmatprep.subr.bf16.mxu0 0
        %1414 = vmatpush1.bf16.xpose.msra.mxu0 0
        %1415 = vmatprep.subr.bf16.mxu0 0
        %1416 = vmatpush1.bf16.xpose.msra.mxu0 %v1399
        %1417 = vmatprep.subr.bf16.mxu0 0
        %1418 = vmatpush2.bf16.xpose.msra.mxu0 0
        %1419 = vmatprep.subr.bf16.mxu0 0
        %1420 = vmatpush2.bf16.xpose.msra.mxu0 0
        %1421 = vmatprep.subr.bf16.mxu0 0
        %1422 = vmatpush2.bf16.xpose.msra.mxu0 0
        %1423 = vmatprep.subr.bf16.mxu0 0
        %1424 = vmatpush2.bf16.xpose.msra.mxu0 0
        %1425 = vmatprep.subr.bf16.mxu0 0
        %1426 = vmatpush2.bf16.xpose.msra.mxu0 0
        %1427 = vmatprep.subr.bf16.mxu0 0
        %1428 = vmatpush2.bf16.xpose.msra.mxu0 0
        %1429 = vmatprep.subr.bf16.mxu0 0
        %1430 = vmatpush2.bf16.xpose.msra.mxu0 0
        %1431 = vmatprep.subr.bf16.mxu0 0
        %1432 = vmatpush2.bf16.xpose.msra.mxu0 0
        %1433 = vmatprep.mubr.bf16.mxu0 0
        %1434 = vmatmul.mubr.bf16.gmra.mxu0 %v1396
        %v1435 = vpop.f32.mrf.mxu0
        %v1436 = vadd.f32 0.0, %v1435
        %v1437 = vpop.f32.mrf.mxu0
        %v1438 = vpop.f32.mrf.mxu0
        %v1439 = vpop.f32.mrf.mxu0
        %1440 = vdwg.mxu0
        %v1441 = vmul.f32 %v1436, 0.25
        %v1442 = vmul.f32 %v1197, -1e+09
        %v1444 = vlaneseq
        %v1445 = vshrl.u32 %v1444, 7
        %v1446 = vsub.s32 0, %v1445
        %v1447 = vrot.slane %v1442, %v1446
        %v1449 = vadd.f32 %v1441, %v1447
        %vm1450 = vcmask 64512
        %v1451 = vsel %vm1450, %v1449, -inf
        %1452 = vmax.xlane.f32.xlu0 %v1451
        %v1453 = vpop.xlane.xlu0 %1452
        %v1454 = vsub.f32 %v1449, %v1453
        %v1455 = vmul.f32 %v1454, 1.442695
        %v1456 = vpow.pop %v1455
        %v1457 = vsel %vm1450, %v1456, 0.0
        %1458 = vadd.xlane.f32.xlu0 %v1457
        %v1459 = vpop.xlane.xlu0 %1458
        %v1460 = vrcp.pop %v1459
        %v1461 = vmul.f32 %v1456, %v1460
        %v1462 = vpack.c.bf16 %v1461, %v1461
        %v1463 = vpack.c.bf16 %v1387, %v1387
        %v1465 = vsel %vm1450, %v1462, 0
        %v1468 = vsel %vm1140, %v1463, 0
        %1470 = vmatprep.subr.bf16.mxu0 0
        %1471 = vmatpush1.bf16.msra.mxu0 0
        %1472 = vmatprep.subr.bf16.mxu0 0
        %1473 = vmatpush1.bf16.msra.mxu0 0
        %1474 = vmatprep.subr.bf16.mxu0 0
        %1475 = vmatpush1.bf16.msra.mxu0 0
        %1476 = vmatprep.subr.bf16.mxu0 0
        %1477 = vmatpush1.bf16.msra.mxu0 0
        %1478 = vmatprep.subr.bf16.mxu0 0
        %1479 = vmatpush1.bf16.msra.mxu0 0
        %1480 = vmatprep.subr.bf16.mxu0 0
        %1481 = vmatpush1.bf16.msra.mxu0 0
        %1482 = vmatprep.subr.bf16.mxu0 0
        %1483 = vmatpush1.bf16.msra.mxu0 0
        %1484 = vmatprep.subr.bf16.mxu0 0
        %1485 = vmatpush1.bf16.msra.mxu0 %v1468
        %1486 = vmatprep.subr.bf16.mxu0 0
        %1487 = vmatpush2.bf16.msra.mxu0 0
        %1488 = vmatprep.subr.bf16.mxu0 0
        %1489 = vmatpush2.bf16.msra.mxu0 0
        %1490 = vmatprep.subr.bf16.mxu0 0
        %1491 = vmatpush2.bf16.msra.mxu0 0
        %1492 = vmatprep.subr.bf16.mxu0 0
        %1493 = vmatpush2.bf16.msra.mxu0 0
        %1494 = vmatprep.subr.bf16.mxu0 0
        %1495 = vmatpush2.bf16.msra.mxu0 0
        %1496 = vmatprep.subr.bf16.mxu0 0
        %1497 = vmatpush2.bf16.msra.mxu0 0
        %1498 = vmatprep.subr.bf16.mxu0 0
        %1499 = vmatpush2.bf16.msra.mxu0 0
        %1500 = vmatprep.subr.bf16.mxu0 0
        %1501 = vmatpush2.bf16.msra.mxu0 0
        %1502 = vmatprep.mubr.bf16.mxu0 0
        %1503 = vmatmul.mubr.bf16.gmra.mxu0 %v1465
        %v1504 = vpop.f32.mrf.mxu0
        %v1505 = vadd.f32 0.0, %v1504
        %v1506 = vpop.f32.mrf.mxu0
        %v1507 = vpop.f32.mrf.mxu0
        %v1508 = vpop.f32.mrf.mxu0
        %1509 = vdwg.mxu0
        %v1510 = vpack.c.bf16 %v1505, %v1505
        %v1511 = vld [vmem:[%s29] sm:$0xf]
        %v1512 = vld [vmem:[%s29 + $0x4] sm:$0xf]
        %v1515 = vunpack.c.l.b16 %v1511
        %v1516 = vunpack.c.l.b16 %v1512
        %v1517 = vpack.c.b16 %v1516, %v1515
        %v1520 = vsel %vm1394, %v1510, 0
        %1522 = vmatprep.subr.bf16.mxu0 0
        %1523 = vmatpush1.bf16.msra.mxu0 0
        %1524 = vmatprep.subr.bf16.mxu0 0
        %1525 = vmatpush1.bf16.msra.mxu0 0
        %1526 = vmatprep.subr.bf16.mxu0 0
        %1527 = vmatpush1.bf16.msra.mxu0 0
        %1528 = vmatprep.subr.bf16.mxu0 0
        %1529 = vmatpush1.bf16.msra.mxu0 0
        %1530 = vmatprep.subr.bf16.mxu0 0
        %1531 = vmatpush1.bf16.msra.mxu0 0
        %1532 = vmatprep.subr.bf16.mxu0 0
        %1533 = vmatpush1.bf16.msra.mxu0 0
        %1534 = vmatprep.subr.bf16.mxu0 0
        %1535 = vmatpush1.bf16.msra.mxu0 0
        %1536 = vmatprep.subr.bf16.mxu0 0
        %1537 = vmatpush1.bf16.msra.mxu0 %v1517
        %1538 = vmatprep.subr.bf16.mxu0 0
        %1539 = vmatpush2.bf16.msra.mxu0 0
        %1540 = vmatprep.subr.bf16.mxu0 0
        %1541 = vmatpush2.bf16.msra.mxu0 0
        %1542 = vmatprep.subr.bf16.mxu0 0
        %1543 = vmatpush2.bf16.msra.mxu0 0
        %1544 = vmatprep.subr.bf16.mxu0 0
        %1545 = vmatpush2.bf16.msra.mxu0 0
        %1546 = vmatprep.subr.bf16.mxu0 0
        %1547 = vmatpush2.bf16.msra.mxu0 0
        %1548 = vmatprep.subr.bf16.mxu0 0
        %1549 = vmatpush2.bf16.msra.mxu0 0
        %1550 = vmatprep.subr.bf16.mxu0 0
        %1551 = vmatpush2.bf16.msra.mxu0 0
        %1552 = vmatprep.subr.bf16.mxu0 0
        %1553 = vmatpush2.bf16.msra.mxu0 0
        %1554 = vmatprep.mubr.bf16.mxu0 0
        %1555 = vmatmul.mubr.bf16.gmra.mxu0 %v1520
        %v1556 = vpop.f32.mrf.mxu0
        %v1557 = vadd.f32 0.0, %v1556
        %v1558 = vpop.f32.mrf.mxu0
        %v1559 = vpop.f32.mrf.mxu0
        %v1560 = vpop.f32.mrf.mxu0
        %1561 = vdwg.mxu0
        %v1563 = vlaneseq
        %v1564 = vshrl.u32 %v1563, 7
        %v1565 = vsub.s32 0, %v1564
        %v1566 = vrot.slane %v1199, %v1565
        %v1568 = vadd.f32 %v1566, %v1557
        %s1569 = scalar_lea.vmem %s17, 16
        %v1570 = vld [vmem:[%s1569] sm:$0xf]
        %v1571 = vld [vmem:[%s1569 + $0x4] sm:$0xf]
        %v1572 = vld [vmem:[%s1569 + $0x8] sm:$0xf]
        %v1573 = vld [vmem:[%s1569 + $0xc] sm:$0xf]
        %s1574 = scalar_lea.vmem %s19, 1
        %v1575 = vld [vmem:[%s1574] sm:$0x1]
        %v1577 = vlaneseq
        %v1578 = vshrl.u32 %v1577, 7
        %v1579 = vsub.s32 0, %v1578
        %v1580 = vrot.slane %v1575, %v1579
        %v1586 = vunpack.c.l.b16 %v1570
        %v1587 = vunpack.c.l.b16 %v1571
        %v1588 = vunpack.c.l.b16 %v1572
        %v1589 = vunpack.c.l.b16 %v1573
        %v1590 = vpack.c.b16 %v1587, %v1586
        %v1591 = vpack.c.b16 %v1589, %v1588
        %1594 = vmatprep.subr.bf16.mxu0 0
        %1595 = vmatpush1.bf16.msra.mxu0 0
        %1596 = vmatprep.subr.bf16.mxu0 0
        %1597 = vmatpush1.bf16.msra.mxu0 0
        %1598 = vmatprep.subr.bf16.mxu0 0
        %1599 = vmatpush1.bf16.msra.mxu0 0
        %1600 = vmatprep.subr.bf16.mxu0 0
        %1601 = vmatpush1.bf16.msra.mxu0 0
        %1602 = vmatprep.subr.bf16.mxu0 0
        %1603 = vmatpush1.bf16.msra.mxu0 0
        %1604 = vmatprep.subr.bf16.mxu0 0
        %1605 = vmatpush1.bf16.msra.mxu0 0
        %1606 = vmatprep.subr.bf16.mxu0 0
        %1607 = vmatpush1.bf16.msra.mxu0 %v1591
        %1608 = vmatprep.subr.bf16.mxu0 0
        %1609 = vmatpush1.bf16.msra.mxu0 %v1590
        %1610 = vmatprep.subr.bf16.mxu0 0
        %1611 = vmatpush2.bf16.msra.mxu0 0
        %1612 = vmatprep.subr.bf16.mxu0 0
        %1613 = vmatpush2.bf16.msra.mxu0 0
        %1614 = vmatprep.subr.bf16.mxu0 0
        %1615 = vmatpush2.bf16.msra.mxu0 0
        %1616 = vmatprep.subr.bf16.mxu0 0
        %1617 = vmatpush2.bf16.msra.mxu0 0
        %1618 = vmatprep.subr.bf16.mxu0 0
        %1619 = vmatpush2.bf16.msra.mxu0 0
        %1620 = vmatprep.subr.bf16.mxu0 0
        %1621 = vmatpush2.bf16.msra.mxu0 0
        %1622 = vmatprep.subr.bf16.mxu0 0
        %1623 = vmatpush2.bf16.msra.mxu0 0
        %1624 = vmatprep.subr.bf16.mxu0 0
        %1625 = vmatpush2.bf16.msra.mxu0 0
        %1626 = vmatprep.mubr.bf16.mxu0 0
        %1627 = vmatmul.mubr.bf16.gmra.mxu0 %v1224
        %v1628 = vpop.f32.mrf.mxu0
        %v1629 = vadd.f32 %v1580, %v1628
        %v1630 = vpop.f32.mrf.mxu0
        %v1631 = vpop.f32.mrf.mxu0
        %v1632 = vpop.f32.mrf.mxu0
        %1633 = vdwg.mxu0
        %s1634 = scalar_lea.vmem %s21, 16
        %v1635 = vld [vmem:[%s1634] sm:$0xf]
        %v1636 = vld [vmem:[%s1634 + $0x4] sm:$0xf]
        %v1637 = vld [vmem:[%s1634 + $0x8] sm:$0xf]
        %v1638 = vld [vmem:[%s1634 + $0xc] sm:$0xf]
        %s1639 = scalar_lea.vmem %s23, 1
        %v1640 = vld [vmem:[%s1639] sm:$0x1]
        %v1642 = vlaneseq
        %v1643 = vshrl.u32 %v1642, 7
        %v1644 = vsub.s32 0, %v1643
        %v1645 = vrot.slane %v1640, %v1644
        %v1651 = vunpack.c.l.b16 %v1635
        %v1652 = vunpack.c.l.b16 %v1636
        %v1653 = vunpack.c.l.b16 %v1637
        %v1654 = vunpack.c.l.b16 %v1638
        %v1655 = vpack.c.b16 %v1652, %v1651
        %v1656 = vpack.c.b16 %v1654, %v1653
        %1659 = vmatprep.subr.bf16.mxu0 0
        %1660 = vmatpush1.bf16.msra.mxu0 0
        %1661 = vmatprep.subr.bf16.mxu0 0
        %1662 = vmatpush1.bf16.msra.mxu0 0
        %1663 = vmatprep.subr.bf16.mxu0 0
        %1664 = vmatpush1.bf16.msra.mxu0 0
        %1665 = vmatprep.subr.bf16.mxu0 0
        %1666 = vmatpush1.bf16.msra.mxu0 0
        %1667 = vmatprep.subr.bf16.mxu0 0
        %1668 = vmatpush1.bf16.msra.mxu0 0
        %1669 = vmatprep.subr.bf16.mxu0 0
        %1670 = vmatpush1.bf16.msra.mxu0 0
        %1671 = vmatprep.subr.bf16.mxu0 0
        %1672 = vmatpush1.bf16.msra.mxu0 %v1656
        %1673 = vmatprep.subr.bf16.mxu0 0
        %1674 = vmatpush1.bf16.msra.mxu0 %v1655
        %1675 = vmatprep.subr.bf16.mxu0 0
        %1676 = vmatpush2.bf16.msra.mxu0 0
        %1677 = vmatprep.subr.bf16.mxu0 0
        %1678 = vmatpush2.bf16.msra.mxu0 0
        %1679 = vmatprep.subr.bf16.mxu0 0
        %1680 = vmatpush2.bf16.msra.mxu0 0
        %1681 = vmatprep.subr.bf16.mxu0 0
        %1682 = vmatpush2.bf16.msra.mxu0 0
        %1683 = vmatprep.subr.bf16.mxu0 0
        %1684 = vmatpush2.bf16.msra.mxu0 0
        %1685 = vmatprep.subr.bf16.mxu0 0
        %1686 = vmatpush2.bf16.msra.mxu0 0
        %1687 = vmatprep.subr.bf16.mxu0 0
        %1688 = vmatpush2.bf16.msra.mxu0 0
        %1689 = vmatprep.subr.bf16.mxu0 0
        %1690 = vmatpush2.bf16.msra.mxu0 0
        %1691 = vmatprep.mubr.bf16.mxu0 0
        %1692 = vmatmul.mubr.bf16.gmra.mxu0 %v1224
        %v1693 = vpop.f32.mrf.mxu0
        %v1694 = vadd.f32 %v1645, %v1693
        %v1695 = vpop.f32.mrf.mxu0
        %v1696 = vpop.f32.mrf.mxu0
        %v1697 = vpop.f32.mrf.mxu0
        %1698 = vdwg.mxu0
        %s1699 = scalar_lea.vmem %s25, 16
        %v1700 = vld [vmem:[%s1699] sm:$0xf]
        %v1701 = vld [vmem:[%s1699 + $0x4] sm:$0xf]
        %v1702 = vld [vmem:[%s1699 + $0x8] sm:$0xf]
        %v1703 = vld [vmem:[%s1699 + $0xc] sm:$0xf]
        %s1704 = scalar_lea.vmem %s27, 1
        %v1705 = vld [vmem:[%s1704] sm:$0x1]
        %v1707 = vlaneseq
        %v1708 = vshrl.u32 %v1707, 7
        %v1709 = vsub.s32 0, %v1708
        %v1710 = vrot.slane %v1705, %v1709
        %v1716 = vunpack.c.l.b16 %v1700
        %v1717 = vunpack.c.l.b16 %v1701
        %v1718 = vunpack.c.l.b16 %v1702
        %v1719 = vunpack.c.l.b16 %v1703
        %v1720 = vpack.c.b16 %v1717, %v1716
        %v1721 = vpack.c.b16 %v1719, %v1718
        %1724 = vmatprep.subr.bf16.mxu0 0
        %1725 = vmatpush1.bf16.msra.mxu0 0
        %1726 = vmatprep.subr.bf16.mxu0 0
        %1727 = vmatpush1.bf16.msra.mxu0 0
        %1728 = vmatprep.subr.bf16.mxu0 0
        %1729 = vmatpush1.bf16.msra.mxu0 0
        %1730 = vmatprep.subr.bf16.mxu0 0
        %1731 = vmatpush1.bf16.msra.mxu0 0
        %1732 = vmatprep.subr.bf16.mxu0 0
        %1733 = vmatpush1.bf16.msra.mxu0 0
        %1734 = vmatprep.subr.bf16.mxu0 0
        %1735 = vmatpush1.bf16.msra.mxu0 0
        %1736 = vmatprep.subr.bf16.mxu0 0
        %1737 = vmatpush1.bf16.msra.mxu0 %v1721
        %1738 = vmatprep.subr.bf16.mxu0 0
        %1739 = vmatpush1.bf16.msra.mxu0 %v1720
        %1740 = vmatprep.subr.bf16.mxu0 0
        %1741 = vmatpush2.bf16.msra.mxu0 0
        %1742 = vmatprep.subr.bf16.mxu0 0
        %1743 = vmatpush2.bf16.msra.mxu0 0
        %1744 = vmatprep.subr.bf16.mxu0 0
        %1745 = vmatpush2.bf16.msra.mxu0 0
        %1746 = vmatprep.subr.bf16.mxu0 0
        %1747 = vmatpush2.bf16.msra.mxu0 0
        %1748 = vmatprep.subr.bf16.mxu0 0
        %1749 = vmatpush2.bf16.msra.mxu0 0
        %1750 = vmatprep.subr.bf16.mxu0 0
        %1751 = vmatpush2.bf16.msra.mxu0 0
        %1752 = vmatprep.subr.bf16.mxu0 0
        %1753 = vmatpush2.bf16.msra.mxu0 0
        %1754 = vmatprep.subr.bf16.mxu0 0
        %1755 = vmatpush2.bf16.msra.mxu0 0
        %1756 = vmatprep.mubr.bf16.mxu0 0
        %1757 = vmatmul.mubr.bf16.gmra.mxu0 %v1224
        %v1758 = vpop.f32.mrf.mxu0
        %v1759 = vadd.f32 %v1710, %v1758
        %v1760 = vpop.f32.mrf.mxu0
        %v1761 = vpop.f32.mrf.mxu0
        %v1762 = vpop.f32.mrf.mxu0
        %1763 = vdwg.mxu0
        %v1764 = vpack.c.bf16 %v1629, %v1629
        %v1765 = vpack.c.bf16 %v1694, %v1694
        %v1767 = vsel %vm1394, %v1764, 0
        %v1770 = vsel %vm1394, %v1765, 0
        %1772 = vmatprep.subr.bf16.mxu0 0
        %1773 = vmatpush1.bf16.xpose.msra.mxu0 0
        %1774 = vmatprep.subr.bf16.mxu0 0
        %1775 = vmatpush1.bf16.xpose.msra.mxu0 0
        %1776 = vmatprep.subr.bf16.mxu0 0
        %1777 = vmatpush1.bf16.xpose.msra.mxu0 0
        %1778 = vmatprep.subr.bf16.mxu0 0
        %1779 = vmatpush1.bf16.xpose.msra.mxu0 0
        %1780 = vmatprep.subr.bf16.mxu0 0
        %1781 = vmatpush1.bf16.xpose.msra.mxu0 0
        %1782 = vmatprep.subr.bf16.mxu0 0
        %1783 = vmatpush1.bf16.xpose.msra.mxu0 0
        %1784 = vmatprep.subr.bf16.mxu0 0
        %1785 = vmatpush1.bf16.xpose.msra.mxu0 0
        %1786 = vmatprep.subr.bf16.mxu0 0
        %1787 = vmatpush1.bf16.xpose.msra.mxu0 %v1770
        %1788 = vmatprep.subr.bf16.mxu0 0
        %1789 = vmatpush2.bf16.xpose.msra.mxu0 0
        %1790 = vmatprep.subr.bf16.mxu0 0
        %1791 = vmatpush2.bf16.xpose.msra.mxu0 0
        %1792 = vmatprep.subr.bf16.mxu0 0
        %1793 = vmatpush2.bf16.xpose.msra.mxu0 0
        %1794 = vmatprep.subr.bf16.mxu0 0
        %1795 = vmatpush2.bf16.xpose.msra.mxu0 0
        %1796 = vmatprep.subr.bf16.mxu0 0
        %1797 = vmatpush2.bf16.xpose.msra.mxu0 0
        %1798 = vmatprep.subr.bf16.mxu0 0
        %1799 = vmatpush2.bf16.xpose.msra.mxu0 0
        %1800 = vmatprep.subr.bf16.mxu0 0
        %1801 = vmatpush2.bf16.xpose.msra.mxu0 0
        %1802 = vmatprep.subr.bf16.mxu0 0
        %1803 = vmatpush2.bf16.xpose.msra.mxu0 0
        %1804 = vmatprep.mubr.bf16.mxu0 0
        %1805 = vmatmul.mubr.bf16.gmra.mxu0 %v1767
        %v1806 = vpop.f32.mrf.mxu0
        %v1807 = vadd.f32 0.0, %v1806
        %v1808 = vpop.f32.mrf.mxu0
        %v1809 = vpop.f32.mrf.mxu0
        %v1810 = vpop.f32.mrf.mxu0
        %1811 = vdwg.mxu0
        %v1812 = vmul.f32 %v1807, 0.25
        %v1813 = vadd.f32 %v1812, %v1447
        %v1814 = vsel %vm1450, %v1813, -inf
        %1815 = vmax.xlane.f32.xlu0 %v1814
        %v1816 = vpop.xlane.xlu0 %1815
        %v1817 = vsub.f32 %v1813, %v1816
        %v1818 = vmul.f32 %v1817, 1.442695
        %v1819 = vpow.pop %v1818
        %v1820 = vsel %vm1450, %v1819, 0.0
        %1821 = vadd.xlane.f32.xlu0 %v1820
        %v1822 = vpop.xlane.xlu0 %1821
        %v1823 = vrcp.pop %v1822
        %v1824 = vmul.f32 %v1819, %v1823
        %v1825 = vpack.c.bf16 %v1824, %v1824
        %v1826 = vpack.c.bf16 %v1759, %v1759
        %v1828 = vsel %vm1450, %v1825, 0
        %v1831 = vsel %vm1140, %v1826, 0
        %1833 = vmatprep.subr.bf16.mxu0 0
        %1834 = vmatpush1.bf16.msra.mxu0 0
        %1835 = vmatprep.subr.bf16.mxu0 0
        %1836 = vmatpush1.bf16.msra.mxu0 0
        %1837 = vmatprep.subr.bf16.mxu0 0
        %1838 = vmatpush1.bf16.msra.mxu0 0
        %1839 = vmatprep.subr.bf16.mxu0 0
        %1840 = vmatpush1.bf16.msra.mxu0 0
        %1841 = vmatprep.subr.bf16.mxu0 0
        %1842 = vmatpush1.bf16.msra.mxu0 0
        %1843 = vmatprep.subr.bf16.mxu0 0
        %1844 = vmatpush1.bf16.msra.mxu0 0
        %1845 = vmatprep.subr.bf16.mxu0 0
        %1846 = vmatpush1.bf16.msra.mxu0 0
        %1847 = vmatprep.subr.bf16.mxu0 0
        %1848 = vmatpush1.bf16.msra.mxu0 %v1831
        %1849 = vmatprep.subr.bf16.mxu0 0
        %1850 = vmatpush2.bf16.msra.mxu0 0
        %1851 = vmatprep.subr.bf16.mxu0 0
        %1852 = vmatpush2.bf16.msra.mxu0 0
        %1853 = vmatprep.subr.bf16.mxu0 0
        %1854 = vmatpush2.bf16.msra.mxu0 0
        %1855 = vmatprep.subr.bf16.mxu0 0
        %1856 = vmatpush2.bf16.msra.mxu0 0
        %1857 = vmatprep.subr.bf16.mxu0 0
        %1858 = vmatpush2.bf16.msra.mxu0 0
        %1859 = vmatprep.subr.bf16.mxu0 0
        %1860 = vmatpush2.bf16.msra.mxu0 0
        %1861 = vmatprep.subr.bf16.mxu0 0
        %1862 = vmatpush2.bf16.msra.mxu0 0
        %1863 = vmatprep.subr.bf16.mxu0 0
        %1864 = vmatpush2.bf16.msra.mxu0 0
        %1865 = vmatprep.mubr.bf16.mxu0 0
        %1866 = vmatmul.mubr.bf16.gmra.mxu0 %v1828
        %v1867 = vpop.f32.mrf.mxu0
        %v1868 = vadd.f32 0.0, %v1867
        %v1869 = vpop.f32.mrf.mxu0
        %v1870 = vpop.f32.mrf.mxu0
        %v1871 = vpop.f32.mrf.mxu0
        %1872 = vdwg.mxu0
        %v1873 = vpack.c.bf16 %v1868, %v1868
        %s1874 = scalar_lea.vmem %s29, 8
        %v1875 = vld [vmem:[%s1874] sm:$0xf]
        %v1876 = vld [vmem:[%s1874 + $0x4] sm:$0xf]
        %v1879 = vunpack.c.l.b16 %v1875
        %v1880 = vunpack.c.l.b16 %v1876
        %v1881 = vpack.c.b16 %v1880, %v1879
        %v1884 = vsel %vm1394, %v1873, 0
        %1886 = vmatprep.subr.bf16.mxu0 0
        %1887 = vmatpush1.bf16.msra.mxu0 0
        %1888 = vmatprep.subr.bf16.mxu0 0
        %1889 = vmatpush1.bf16.msra.mxu0 0
        %1890 = vmatprep.subr.bf16.mxu0 0
        %1891 = vmatpush1.bf16.msra.mxu0 0
        %1892 = vmatprep.subr.bf16.mxu0 0
        %1893 = vmatpush1.bf16.msra.mxu0 0
        %1894 = vmatprep.subr.bf16.mxu0 0
        %1895 = vmatpush1.bf16.msra.mxu0 0
        %1896 = vmatprep.subr.bf16.mxu0 0
        %1897 = vmatpush1.bf16.msra.mxu0 0
        %1898 = vmatprep.subr.bf16.mxu0 0
        %1899 = vmatpush1.bf16.msra.mxu0 0
        %1900 = vmatprep.subr.bf16.mxu0 0
        %1901 = vmatpush1.bf16.msra.mxu0 %v1881
        %1902 = vmatprep.subr.bf16.mxu0 0
        %1903 = vmatpush2.bf16.msra.mxu0 0
        %1904 = vmatprep.subr.bf16.mxu0 0
        %1905 = vmatpush2.bf16.msra.mxu0 0
        %1906 = vmatprep.subr.bf16.mxu0 0
        %1907 = vmatpush2.bf16.msra.mxu0 0
        %1908 = vmatprep.subr.bf16.mxu0 0
        %1909 = vmatpush2.bf16.msra.mxu0 0
        %1910 = vmatprep.subr.bf16.mxu0 0
        %1911 = vmatpush2.bf16.msra.mxu0 0
        %1912 = vmatprep.subr.bf16.mxu0 0
        %1913 = vmatpush2.bf16.msra.mxu0 0
        %1914 = vmatprep.subr.bf16.mxu0 0
        %1915 = vmatpush2.bf16.msra.mxu0 0
        %1916 = vmatprep.subr.bf16.mxu0 0
        %1917 = vmatpush2.bf16.msra.mxu0 0
        %1918 = vmatprep.mubr.bf16.mxu0 0
        %1919 = vmatmul.mubr.bf16.gmra.mxu0 %v1884
        %v1920 = vpop.f32.mrf.mxu0
        %v1921 = vadd.f32 0.0, %v1920
        %v1922 = vpop.f32.mrf.mxu0
        %v1923 = vpop.f32.mrf.mxu0
        %v1924 = vpop.f32.mrf.mxu0
        %1925 = vdwg.mxu0
        %v1926 = vadd.f32 %v1568, %v1921
        %v1927 = vadd.f32 %v1196, %v1926
        %v1928 = vld [vmem:[%s41] sm:$0x1]
        %v1929 = vld [vmem:[%s43] sm:$0x1]
        %v1930 = vsel %vm1074, %v1927, 0.0
        %1931 = vadd.xlane.f32.xlu0 %v1930
        %v1932 = vpop.xlane.xlu0 %1931
        %v1933 = vrcp.pop 32.0
        %v1934 = vmul.f32 %v1932, %v1933
        %v1935 = vsub.f32 %v1927, %v1934
        %v1936 = vmul.f32 %v1935, %v1935
        %v1937 = vsel %vm1074, %v1936, 0.0
        %1938 = vadd.xlane.f32.xlu0 %v1937
        %v1939 = vpop.xlane.xlu0 %1938
        %v1940 = vmul.f32 %v1939, %v1933
        %v1941 = vadd.f32 %v1940, 1e-05
        %v1942 = vrsqrt.pop %v1941
        %v1943 = vmul.f32 %v1935, %v1942
        %v1945 = vlaneseq
        %v1946 = vshrl.u32 %v1945, 7
        %v1947 = vsub.s32 0, %v1946
        %v1948 = vrot.slane %v1928, %v1947
        %v1950 = vmul.f32 %v1943, %v1948
        %v1952 = vlaneseq
        %v1953 = vshrl.u32 %v1952, 7
        %v1954 = vsub.s32 0, %v1953
        %v1955 = vrot.slane %v1929, %v1954
        %v1957 = vadd.f32 %v1950, %v1955
        %v1958 = vld [vmem:[%s33] sm:$0xf]
        %v1959 = vld [vmem:[%s33 + $0x4] sm:$0xf]
        %v1960 = vld [vmem:[%s33 + $0x8] sm:$0xf]
        %v1961 = vld [vmem:[%s33 + $0xc] sm:$0xf]
        %v1962 = vpack.c.bf16 %v1957, %v1957
        %v1963 = vld [vmem:[%s35] sm:$0x1]
        %v1965 = vlaneseq
        %v1966 = vshrl.u32 %v1965, 7
        %v1967 = vsub.s32 0, %v1966
        %v1968 = vrot.slane %v1963, %v1967
        %v1974 = vunpack.c.l.b16 %v1958
        %v1975 = vunpack.c.l.b16 %v1959
        %v1976 = vunpack.c.l.b16 %v1960
        %v1977 = vunpack.c.l.b16 %v1961
        %v1978 = vpack.c.b16 %v1975, %v1974
        %v1979 = vpack.c.b16 %v1977, %v1976
        %v1983 = vsel %vm1074, %v1962, 0
        %1985 = vmatprep.subr.bf16.mxu0 0
        %1986 = vmatpush1.bf16.msra.mxu0 0
        %1987 = vmatprep.subr.bf16.mxu0 0
        %1988 = vmatpush1.bf16.msra.mxu0 0
        %1989 = vmatprep.subr.bf16.mxu0 0
        %1990 = vmatpush1.bf16.msra.mxu0 0
        %1991 = vmatprep.subr.bf16.mxu0 0
        %1992 = vmatpush1.bf16.msra.mxu0 0
        %1993 = vmatprep.subr.bf16.mxu0 0
        %1994 = vmatpush1.bf16.msra.mxu0 0
        %1995 = vmatprep.subr.bf16.mxu0 0
        %1996 = vmatpush1.bf16.msra.mxu0 0
        %1997 = vmatprep.subr.bf16.mxu0 0
        %1998 = vmatpush1.bf16.msra.mxu0 %v1979
        %1999 = vmatprep.subr.bf16.mxu0 0
        %2000 = vmatpush1.bf16.msra.mxu0 %v1978
        %2001 = vmatprep.subr.bf16.mxu0 0
        %2002 = vmatpush2.bf16.msra.mxu0 0
        %2003 = vmatprep.subr.bf16.mxu0 0
        %2004 = vmatpush2.bf16.msra.mxu0 0
        %2005 = vmatprep.subr.bf16.mxu0 0
        %2006 = vmatpush2.bf16.msra.mxu0 0
        %2007 = vmatprep.subr.bf16.mxu0 0
        %2008 = vmatpush2.bf16.msra.mxu0 0
        %2009 = vmatprep.subr.bf16.mxu0 0
        %2010 = vmatpush2.bf16.msra.mxu0 0
        %2011 = vmatprep.subr.bf16.mxu0 0
        %2012 = vmatpush2.bf16.msra.mxu0 0
        %2013 = vmatprep.subr.bf16.mxu0 0
        %2014 = vmatpush2.bf16.msra.mxu0 0
        %2015 = vmatprep.subr.bf16.mxu0 0
        %2016 = vmatpush2.bf16.msra.mxu0 0
        %2017 = vmatprep.mubr.bf16.mxu0 0
        %2018 = vmatmul.mubr.bf16.gmra.mxu0 %v1983
        %v2019 = vpop.f32.mrf.mxu0
        %v2020 = vadd.f32 %v1968, %v2019
        %v2021 = vpop.f32.mrf.mxu0
        %v2022 = vpop.f32.mrf.mxu0
        %v2023 = vpop.f32.mrf.mxu0
        %2024 = vdwg.mxu0
        %v2025 = vmax.f32 %v2020, 0.0
        %v2026 = vld [vmem:[%s37] sm:$0xf]
        %v2027 = vld [vmem:[%s37 + $0x4] sm:$0xf]
        %v2028 = vld [vmem:[%s37 + $0x8] sm:$0xf]
        %v2029 = vld [vmem:[%s37 + $0xc] sm:$0xf]
        %v2030 = vld [vmem:[%s37 + $0x10] sm:$0xf]
        %v2031 = vld [vmem:[%s37 + $0x14] sm:$0xf]
        %v2032 = vld [vmem:[%s37 + $0x18] sm:$0xf]
        %v2033 = vld [vmem:[%s37 + $0x1c] sm:$0xf]
        %v2034 = vpack.c.bf16 %v2025, %v2025
        %v2035 = vld [vmem:[%s39] sm:$0x1]
        %v2037 = vlaneseq
        %v2038 = vshrl.u32 %v2037, 7
        %v2039 = vsub.s32 0, %v2038
        %v2040 = vrot.slane %v2035, %v2039
        %v2050 = vunpack.c.l.b16 %v2026
        %v2051 = vunpack.c.l.b16 %v2027
        %v2052 = vunpack.c.l.b16 %v2028
        %v2053 = vunpack.c.l.b16 %v2029
        %v2054 = vunpack.c.l.b16 %v2030
        %v2055 = vunpack.c.l.b16 %v2031
        %v2056 = vunpack.c.l.b16 %v2032
        %v2057 = vunpack.c.l.b16 %v2033
        %v2058 = vpack.c.b16 %v2051, %v2050
        %v2059 = vpack.c.b16 %v2053, %v2052
        %v2060 = vpack.c.b16 %v2055, %v2054
        %v2061 = vpack.c.b16 %v2057, %v2056
        %vm2066 = vcmask 523264
        %v2068 = vsel %vm2066, %v2034, 0
        %2070 = vmatprep.subr.bf16.mxu0 0
        %2071 = vmatpush1.bf16.msra.mxu0 0
        %2072 = vmatprep.subr.bf16.mxu0 0
        %2073 = vmatpush1.bf16.msra.mxu0 0
        %2074 = vmatprep.subr.bf16.mxu0 0
        %2075 = vmatpush1.bf16.msra.mxu0 0
        %2076 = vmatprep.subr.bf16.mxu0 0
        %2077 = vmatpush1.bf16.msra.mxu0 0
        %2078 = vmatprep.subr.bf16.mxu0 0
        %2079 = vmatpush1.bf16.msra.mxu0 %v2061
        %2080 = vmatprep.subr.bf16.mxu0 0
        %2081 = vmatpush1.bf16.msra.mxu0 %v2060
        %2082 = vmatprep.subr.bf16.mxu0 0
        %2083 = vmatpush1.bf16.msra.mxu0 %v2059
        %2084 = vmatprep.subr.bf16.mxu0 0
        %2085 = vmatpush1.bf16.msra.mxu0 %v2058
        %2086 = vmatprep.subr.bf16.mxu0 0
        %2087 = vmatpush2.bf16.msra.mxu0 0
        %2088 = vmatprep.subr.bf16.mxu0 0
        %2089 = vmatpush2.bf16.msra.mxu0 0
        %2090 = vmatprep.subr.bf16.mxu0 0
        %2091 = vmatpush2.bf16.msra.mxu0 0
        %2092 = vmatprep.subr.bf16.mxu0 0
        %2093 = vmatpush2.bf16.msra.mxu0 0
        %2094 = vmatprep.subr.bf16.mxu0 0
        %2095 = vmatpush2.bf16.msra.mxu0 0
        %2096 = vmatprep.subr.bf16.mxu0 0
        %2097 = vmatpush2.bf16.msra.mxu0 0
        %2098 = vmatprep.subr.bf16.mxu0 0
        %2099 = vmatpush2.bf16.msra.mxu0 0
        %2100 = vmatprep.subr.bf16.mxu0 0
        %2101 = vmatpush2.bf16.msra.mxu0 0
        %2102 = vmatprep.mubr.bf16.mxu0 0
        %2103 = vmatmul.mubr.bf16.gmra.mxu0 %v2068
        %v2104 = vpop.f32.mrf.mxu0
        %v2105 = vadd.f32 %v2040, %v2104
        %v2106 = vpop.f32.mrf.mxu0
        %v2107 = vpop.f32.mrf.mxu0
        %v2108 = vpop.f32.mrf.mxu0
        %2109 = vdwg.mxu0
        %v2110 = vadd.f32 %v1957, %v2105
        %v2111 = vld [vmem:[%s45] sm:$0x1]
        %v2112 = vld [vmem:[%s47] sm:$0x1]
        %v2113 = vsel %vm1074, %v2110, 0.0
        %2114 = vadd.xlane.f32.xlu0 %v2113
        %v2115 = vpop.xlane.xlu0 %2114
        %v2116 = vmul.f32 %v2115, %v1933
        %v2117 = vsub.f32 %v2110, %v2116
        %v2118 = vmul.f32 %v2117, %v2117
        %v2119 = vsel %vm1074, %v2118, 0.0
        %2120 = vadd.xlane.f32.xlu0 %v2119
        %v2121 = vpop.xlane.xlu0 %2120
        %v2122 = vmul.f32 %v2121, %v1933
        %v2123 = vadd.f32 %v2122, 1e-05
        %v2124 = vrsqrt.pop %v2123
        %v2125 = vmul.f32 %v2117, %v2124
        %v2127 = vlaneseq
        %v2128 = vshrl.u32 %v2127, 7
        %v2129 = vsub.s32 0, %v2128
        %v2130 = vrot.slane %v2111, %v2129
        %v2132 = vmul.f32 %v2125, %v2130
        %v2134 = vlaneseq
        %v2135 = vshrl.u32 %v2134, 7
        %v2136 = vsub.s32 0, %v2135
        %v2137 = vrot.slane %v2112, %v2136
        %v2139 = vadd.f32 %v2132, %v2137
        %v2140 = vpack.c.bf16 %v2139, %v2139
        %s2141 = scalar_lea.vmem %s31, 1
        %v2142 = vld [vmem:[%s2141] sm:$0x1]
        %s2143 = scalar_lea.vmem %s17, 32
        %v2144 = vld [vmem:[%s2143] sm:$0xf]
        %v2145 = vld [vmem:[%s2143 + $0x4] sm:$0xf]
        %v2146 = vld [vmem:[%s2143 + $0x8] sm:$0xf]
        %v2147 = vld [vmem:[%s2143 + $0xc] sm:$0xf]
        %s2148 = scalar_lea.vmem %s19, 2
        %v2149 = vld [vmem:[%s2148] sm:$0x1]
        %v2151 = vlaneseq
        %v2152 = vshrl.u32 %v2151, 7
        %v2153 = vsub.s32 0, %v2152
        %v2154 = vrot.slane %v2149, %v2153
        %v2160 = vunpack.c.l.b16 %v2144
        %v2161 = vunpack.c.l.b16 %v2145
        %v2162 = vunpack.c.l.b16 %v2146
        %v2163 = vunpack.c.l.b16 %v2147
        %v2164 = vpack.c.b16 %v2161, %v2160
        %v2165 = vpack.c.b16 %v2163, %v2162
        %v2169 = vsel %vm1074, %v2140, 0
        %2171 = vmatprep.subr.bf16.mxu0 0
        %2172 = vmatpush1.bf16.msra.mxu0 0
        %2173 = vmatprep.subr.bf16.mxu0 0
        %2174 = vmatpush1.bf16.msra.mxu0 0
        %2175 = vmatprep.subr.bf16.mxu0 0
        %2176 = vmatpush1.bf16.msra.mxu0 0
        %2177 = vmatprep.subr.bf16.mxu0 0
        %2178 = vmatpush1.bf16.msra.mxu0 0
        %2179 = vmatprep.subr.bf16.mxu0 0
        %2180 = vmatpush1.bf16.msra.mxu0 0
        %2181 = vmatprep.subr.bf16.mxu0 0
        %2182 = vmatpush1.bf16.msra.mxu0 0
        %2183 = vmatprep.subr.bf16.mxu0 0
        %2184 = vmatpush1.bf16.msra.mxu0 %v2165
        %2185 = vmatprep.subr.bf16.mxu0 0
        %2186 = vmatpush1.bf16.msra.mxu0 %v2164
        %2187 = vmatprep.subr.bf16.mxu0 0
        %2188 = vmatpush2.bf16.msra.mxu0 0
        %2189 = vmatprep.subr.bf16.mxu0 0
        %2190 = vmatpush2.bf16.msra.mxu0 0
        %2191 = vmatprep.subr.bf16.mxu0 0
        %2192 = vmatpush2.bf16.msra.mxu0 0
        %2193 = vmatprep.subr.bf16.mxu0 0
        %2194 = vmatpush2.bf16.msra.mxu0 0
        %2195 = vmatprep.subr.bf16.mxu0 0
        %2196 = vmatpush2.bf16.msra.mxu0 0
        %2197 = vmatprep.subr.bf16.mxu0 0
        %2198 = vmatpush2.bf16.msra.mxu0 0
        %2199 = vmatprep.subr.bf16.mxu0 0
        %2200 = vmatpush2.bf16.msra.mxu0 0
        %2201 = vmatprep.subr.bf16.mxu0 0
        %2202 = vmatpush2.bf16.msra.mxu0 0
        %2203 = vmatprep.mubr.bf16.mxu0 0
        %2204 = vmatmul.mubr.bf16.gmra.mxu0 %v2169
        %v2205 = vpop.f32.mrf.mxu0
        %v2206 = vadd.f32 %v2154, %v2205
        %v2207 = vpop.f32.mrf.mxu0
        %v2208 = vpop.f32.mrf.mxu0
        %v2209 = vpop.f32.mrf.mxu0
        %2210 = vdwg.mxu0
        %s2211 = scalar_lea.vmem %s21, 32
        %v2212 = vld [vmem:[%s2211] sm:$0xf]
        %v2213 = vld [vmem:[%s2211 + $0x4] sm:$0xf]
        %v2214 = vld [vmem:[%s2211 + $0x8] sm:$0xf]
        %v2215 = vld [vmem:[%s2211 + $0xc] sm:$0xf]
        %s2216 = scalar_lea.vmem %s23, 2
        %v2217 = vld [vmem:[%s2216] sm:$0x1]
        %v2219 = vlaneseq
        %v2220 = vshrl.u32 %v2219, 7
        %v2221 = vsub.s32 0, %v2220
        %v2222 = vrot.slane %v2217, %v2221
        %v2228 = vunpack.c.l.b16 %v2212
        %v2229 = vunpack.c.l.b16 %v2213
        %v2230 = vunpack.c.l.b16 %v2214
        %v2231 = vunpack.c.l.b16 %v2215
        %v2232 = vpack.c.b16 %v2229, %v2228
        %v2233 = vpack.c.b16 %v2231, %v2230
        %2236 = vmatprep.subr.bf16.mxu0 0
        %2237 = vmatpush1.bf16.msra.mxu0 0
        %2238 = vmatprep.subr.bf16.mxu0 0
        %2239 = vmatpush1.bf16.msra.mxu0 0
        %2240 = vmatprep.subr.bf16.mxu0 0
        %2241 = vmatpush1.bf16.msra.mxu0 0
        %2242 = vmatprep.subr.bf16.mxu0 0
        %2243 = vmatpush1.bf16.msra.mxu0 0
        %2244 = vmatprep.subr.bf16.mxu0 0
        %2245 = vmatpush1.bf16.msra.mxu0 0
        %2246 = vmatprep.subr.bf16.mxu0 0
        %2247 = vmatpush1.bf16.msra.mxu0 0
        %2248 = vmatprep.subr.bf16.mxu0 0
        %2249 = vmatpush1.bf16.msra.mxu0 %v2233
        %2250 = vmatprep.subr.bf16.mxu0 0
        %2251 = vmatpush1.bf16.msra.mxu0 %v2232
        %2252 = vmatprep.subr.bf16.mxu0 0
        %2253 = vmatpush2.bf16.msra.mxu0 0
        %2254 = vmatprep.subr.bf16.mxu0 0
        %2255 = vmatpush2.bf16.msra.mxu0 0
        %2256 = vmatprep.subr.bf16.mxu0 0
        %2257 = vmatpush2.bf16.msra.mxu0 0
        %2258 = vmatprep.subr.bf16.mxu0 0
        %2259 = vmatpush2.bf16.msra.mxu0 0
        %2260 = vmatprep.subr.bf16.mxu0 0
        %2261 = vmatpush2.bf16.msra.mxu0 0
        %2262 = vmatprep.subr.bf16.mxu0 0
        %2263 = vmatpush2.bf16.msra.mxu0 0
        %2264 = vmatprep.subr.bf16.mxu0 0
        %2265 = vmatpush2.bf16.msra.mxu0 0
        %2266 = vmatprep.subr.bf16.mxu0 0
        %2267 = vmatpush2.bf16.msra.mxu0 0
        %2268 = vmatprep.mubr.bf16.mxu0 0
        %2269 = vmatmul.mubr.bf16.gmra.mxu0 %v2169
        %v2270 = vpop.f32.mrf.mxu0
        %v2271 = vadd.f32 %v2222, %v2270
        %v2272 = vpop.f32.mrf.mxu0
        %v2273 = vpop.f32.mrf.mxu0
        %v2274 = vpop.f32.mrf.mxu0
        %2275 = vdwg.mxu0
        %s2276 = scalar_lea.vmem %s25, 32
        %v2277 = vld [vmem:[%s2276] sm:$0xf]
        %v2278 = vld [vmem:[%s2276 + $0x4] sm:$0xf]
        %v2279 = vld [vmem:[%s2276 + $0x8] sm:$0xf]
        %v2280 = vld [vmem:[%s2276 + $0xc] sm:$0xf]
        %s2281 = scalar_lea.vmem %s27, 2
        %v2282 = vld [vmem:[%s2281] sm:$0x1]
        %v2284 = vlaneseq
        %v2285 = vshrl.u32 %v2284, 7
        %v2286 = vsub.s32 0, %v2285
        %v2287 = vrot.slane %v2282, %v2286
        %v2293 = vunpack.c.l.b16 %v2277
        %v2294 = vunpack.c.l.b16 %v2278
        %v2295 = vunpack.c.l.b16 %v2279
        %v2296 = vunpack.c.l.b16 %v2280
        %v2297 = vpack.c.b16 %v2294, %v2293
        %v2298 = vpack.c.b16 %v2296, %v2295
        %2301 = vmatprep.subr.bf16.mxu0 0
        %2302 = vmatpush1.bf16.msra.mxu0 0
        %2303 = vmatprep.subr.bf16.mxu0 0
        %2304 = vmatpush1.bf16.msra.mxu0 0
        %2305 = vmatprep.subr.bf16.mxu0 0
        %2306 = vmatpush1.bf16.msra.mxu0 0
        %2307 = vmatprep.subr.bf16.mxu0 0
        %2308 = vmatpush1.bf16.msra.mxu0 0
        %2309 = vmatprep.subr.bf16.mxu0 0
        %2310 = vmatpush1.bf16.msra.mxu0 0
        %2311 = vmatprep.subr.bf16.mxu0 0
        %2312 = vmatpush1.bf16.msra.mxu0 0
        %2313 = vmatprep.subr.bf16.mxu0 0
        %2314 = vmatpush1.bf16.msra.mxu0 %v2298
        %2315 = vmatprep.subr.bf16.mxu0 0
        %2316 = vmatpush1.bf16.msra.mxu0 %v2297
        %2317 = vmatprep.subr.bf16.mxu0 0
        %2318 = vmatpush2.bf16.msra.mxu0 0
        %2319 = vmatprep.subr.bf16.mxu0 0
        %2320 = vmatpush2.bf16.msra.mxu0 0
        %2321 = vmatprep.subr.bf16.mxu0 0
        %2322 = vmatpush2.bf16.msra.mxu0 0
        %2323 = vmatprep.subr.bf16.mxu0 0
        %2324 = vmatpush2.bf16.msra.mxu0 0
        %2325 = vmatprep.subr.bf16.mxu0 0
        %2326 = vmatpush2.bf16.msra.mxu0 0
        %2327 = vmatprep.subr.bf16.mxu0 0
        %2328 = vmatpush2.bf16.msra.mxu0 0
        %2329 = vmatprep.subr.bf16.mxu0 0
        %2330 = vmatpush2.bf16.msra.mxu0 0
        %2331 = vmatprep.subr.bf16.mxu0 0
        %2332 = vmatpush2.bf16.msra.mxu0 0
        %2333 = vmatprep.mubr.bf16.mxu0 0
        %2334 = vmatmul.mubr.bf16.gmra.mxu0 %v2169
        %v2335 = vpop.f32.mrf.mxu0
        %v2336 = vadd.f32 %v2287, %v2335
        %v2337 = vpop.f32.mrf.mxu0
        %v2338 = vpop.f32.mrf.mxu0
        %v2339 = vpop.f32.mrf.mxu0
        %2340 = vdwg.mxu0
        %v2341 = vpack.c.bf16 %v2206, %v2206
        %v2342 = vpack.c.bf16 %v2271, %v2271
        %v2344 = vsel %vm1394, %v2341, 0
        %v2347 = vsel %vm1394, %v2342, 0
        %2349 = vmatprep.subr.bf16.mxu0 0
        %2350 = vmatpush1.bf16.xpose.msra.mxu0 0
        %2351 = vmatprep.subr.bf16.mxu0 0
        %2352 = vmatpush1.bf16.xpose.msra.mxu0 0
        %2353 = vmatprep.subr.bf16.mxu0 0
        %2354 = vmatpush1.bf16.xpose.msra.mxu0 0
        %2355 = vmatprep.subr.bf16.mxu0 0
        %2356 = vmatpush1.bf16.xpose.msra.mxu0 0
        %2357 = vmatprep.subr.bf16.mxu0 0
        %2358 = vmatpush1.bf16.xpose.msra.mxu0 0
        %2359 = vmatprep.subr.bf16.mxu0 0
        %2360 = vmatpush1.bf16.xpose.msra.mxu0 0
        %2361 = vmatprep.subr.bf16.mxu0 0
        %2362 = vmatpush1.bf16.xpose.msra.mxu0 0
        %2363 = vmatprep.subr.bf16.mxu0 0
        %2364 = vmatpush1.bf16.xpose.msra.mxu0 %v2347
        %2365 = vmatprep.subr.bf16.mxu0 0
        %2366 = vmatpush2.bf16.xpose.msra.mxu0 0
        %2367 = vmatprep.subr.bf16.mxu0 0
        %2368 = vmatpush2.bf16.xpose.msra.mxu0 0
        %2369 = vmatprep.subr.bf16.mxu0 0
        %2370 = vmatpush2.bf16.xpose.msra.mxu0 0
        %2371 = vmatprep.subr.bf16.mxu0 0
        %2372 = vmatpush2.bf16.xpose.msra.mxu0 0
        %2373 = vmatprep.subr.bf16.mxu0 0
        %2374 = vmatpush2.bf16.xpose.msra.mxu0 0
        %2375 = vmatprep.subr.bf16.mxu0 0
        %2376 = vmatpush2.bf16.xpose.msra.mxu0 0
        %2377 = vmatprep.subr.bf16.mxu0 0
        %2378 = vmatpush2.bf16.xpose.msra.mxu0 0
        %2379 = vmatprep.subr.bf16.mxu0 0
        %2380 = vmatpush2.bf16.xpose.msra.mxu0 0
        %2381 = vmatprep.mubr.bf16.mxu0 0
        %2382 = vmatmul.mubr.bf16.gmra.mxu0 %v2344
        %v2383 = vpop.f32.mrf.mxu0
        %v2384 = vadd.f32 0.0, %v2383
        %v2385 = vpop.f32.mrf.mxu0
        %v2386 = vpop.f32.mrf.mxu0
        %v2387 = vpop.f32.mrf.mxu0
        %2388 = vdwg.mxu0
        %v2389 = vmul.f32 %v2384, 0.25
        %v2390 = vadd.f32 %v2389, %v1447
        %v2391 = vsel %vm1450, %v2390, -inf
        %2392 = vmax.xlane.f32.xlu0 %v2391
        %v2393 = vpop.xlane.xlu0 %2392
        %v2394 = vsub.f32 %v2390, %v2393
        %v2395 = vmul.f32 %v2394, 1.442695
        %v2396 = vpow.pop %v2395
        %v2397 = vsel %vm1450, %v2396, 0.0
        %2398 = vadd.xlane.f32.xlu0 %v2397
        %v2399 = vpop.xlane.xlu0 %2398
        %v2400 = vrcp.pop %v2399
        %v2401 = vmul.f32 %v2396, %v2400
        %v2402 = vpack.c.bf16 %v2401, %v2401
        %v2403 = vpack.c.bf16 %v2336, %v2336
        %v2405 = vsel %vm1450, %v2402, 0
        %v2408 = vsel %vm1140, %v2403, 0
        %2410 = vmatprep.subr.bf16.mxu0 0
        %2411 = vmatpush1.bf16.msra.mxu0 0
        %2412 = vmatprep.subr.bf16.mxu0 0
        %2413 = vmatpush1.bf16.msra.mxu0 0
        %2414 = vmatprep.subr.bf16.mxu0 0
        %2415 = vmatpush1.bf16.msra.mxu0 0
        %2416 = vmatprep.subr.bf16.mxu0 0
        %2417 = vmatpush1.bf16.msra.mxu0 0
        %2418 = vmatprep.subr.bf16.mxu0 0
        %2419 = vmatpush1.bf16.msra.mxu0 0
        %2420 = vmatprep.subr.bf16.mxu0 0
        %2421 = vmatpush1.bf16.msra.mxu0 0
        %2422 = vmatprep.subr.bf16.mxu0 0
        %2423 = vmatpush1.bf16.msra.mxu0 0
        %2424 = vmatprep.subr.bf16.mxu0 0
        %2425 = vmatpush1.bf16.msra.mxu0 %v2408
        %2426 = vmatprep.subr.bf16.mxu0 0
        %2427 = vmatpush2.bf16.msra.mxu0 0
        %2428 = vmatprep.subr.bf16.mxu0 0
        %2429 = vmatpush2.bf16.msra.mxu0 0
        %2430 = vmatprep.subr.bf16.mxu0 0
        %2431 = vmatpush2.bf16.msra.mxu0 0
        %2432 = vmatprep.subr.bf16.mxu0 0
        %2433 = vmatpush2.bf16.msra.mxu0 0
        %2434 = vmatprep.subr.bf16.mxu0 0
        %2435 = vmatpush2.bf16.msra.mxu0 0
        %2436 = vmatprep.subr.bf16.mxu0 0
        %2437 = vmatpush2.bf16.msra.mxu0 0
        %2438 = vmatprep.subr.bf16.mxu0 0
        %2439 = vmatpush2.bf16.msra.mxu0 0
        %2440 = vmatprep.subr.bf16.mxu0 0
        %2441 = vmatpush2.bf16.msra.mxu0 0
        %2442 = vmatprep.mubr.bf16.mxu0 0
        %2443 = vmatmul.mubr.bf16.gmra.mxu0 %v2405
        %v2444 = vpop.f32.mrf.mxu0
        %v2445 = vadd.f32 0.0, %v2444
        %v2446 = vpop.f32.mrf.mxu0
        %v2447 = vpop.f32.mrf.mxu0
        %v2448 = vpop.f32.mrf.mxu0
        %2449 = vdwg.mxu0
        %v2450 = vpack.c.bf16 %v2445, %v2445
        %s2451 = scalar_lea.vmem %s29, 16
        %v2452 = vld [vmem:[%s2451] sm:$0xf]
        %v2453 = vld [vmem:[%s2451 + $0x4] sm:$0xf]
        %v2456 = vunpack.c.l.b16 %v2452
        %v2457 = vunpack.c.l.b16 %v2453
        %v2458 = vpack.c.b16 %v2457, %v2456
        %v2461 = vsel %vm1394, %v2450, 0
        %2463 = vmatprep.subr.bf16.mxu0 0
        %2464 = vmatpush1.bf16.msra.mxu0 0
        %2465 = vmatprep.subr.bf16.mxu0 0
        %2466 = vmatpush1.bf16.msra.mxu0 0
        %2467 = vmatprep.subr.bf16.mxu0 0
        %2468 = vmatpush1.bf16.msra.mxu0 0
        %2469 = vmatprep.subr.bf16.mxu0 0
        %2470 = vmatpush1.bf16.msra.mxu0 0
        %2471 = vmatprep.subr.bf16.mxu0 0
        %2472 = vmatpush1.bf16.msra.mxu0 0
        %2473 = vmatprep.subr.bf16.mxu0 0
        %2474 = vmatpush1.bf16.msra.mxu0 0
        %2475 = vmatprep.subr.bf16.mxu0 0
        %2476 = vmatpush1.bf16.msra.mxu0 0
        %2477 = vmatprep.subr.bf16.mxu0 0
        %2478 = vmatpush1.bf16.msra.mxu0 %v2458
        %2479 = vmatprep.subr.bf16.mxu0 0
        %2480 = vmatpush2.bf16.msra.mxu0 0
        %2481 = vmatprep.subr.bf16.mxu0 0
        %2482 = vmatpush2.bf16.msra.mxu0 0
        %2483 = vmatprep.subr.bf16.mxu0 0
        %2484 = vmatpush2.bf16.msra.mxu0 0
        %2485 = vmatprep.subr.bf16.mxu0 0
        %2486 = vmatpush2.bf16.msra.mxu0 0
        %2487 = vmatprep.subr.bf16.mxu0 0
        %2488 = vmatpush2.bf16.msra.mxu0 0
        %2489 = vmatprep.subr.bf16.mxu0 0
        %2490 = vmatpush2.bf16.msra.mxu0 0
        %2491 = vmatprep.subr.bf16.mxu0 0
        %2492 = vmatpush2.bf16.msra.mxu0 0
        %2493 = vmatprep.subr.bf16.mxu0 0
        %2494 = vmatpush2.bf16.msra.mxu0 0
        %2495 = vmatprep.mubr.bf16.mxu0 0
        %2496 = vmatmul.mubr.bf16.gmra.mxu0 %v2461
        %v2497 = vpop.f32.mrf.mxu0
        %v2498 = vadd.f32 0.0, %v2497
        %v2499 = vpop.f32.mrf.mxu0
        %v2500 = vpop.f32.mrf.mxu0
        %v2501 = vpop.f32.mrf.mxu0
        %2502 = vdwg.mxu0
        %v2504 = vlaneseq
        %v2505 = vshrl.u32 %v2504, 7
        %v2506 = vsub.s32 0, %v2505
        %v2507 = vrot.slane %v2142, %v2506
        %v2509 = vadd.f32 %v2507, %v2498
        %s2510 = scalar_lea.vmem %s17, 48
        %v2511 = vld [vmem:[%s2510] sm:$0xf]
        %v2512 = vld [vmem:[%s2510 + $0x4] sm:$0xf]
        %v2513 = vld [vmem:[%s2510 + $0x8] sm:$0xf]
        %v2514 = vld [vmem:[%s2510 + $0xc] sm:$0xf]
        %s2515 = scalar_lea.vmem %s19, 3
        %v2516 = vld [vmem:[%s2515] sm:$0x1]
        %v2518 = vlaneseq
        %v2519 = vshrl.u32 %v2518, 7
        %v2520 = vsub.s32 0, %v2519
        %v2521 = vrot.slane %v2516, %v2520
        %v2527 = vunpack.c.l.b16 %v2511
        %v2528 = vunpack.c.l.b16 %v2512
        %v2529 = vunpack.c.l.b16 %v2513
        %v2530 = vunpack.c.l.b16 %v2514
        %v2531 = vpack.c.b16 %v2528, %v2527
        %v2532 = vpack.c.b16 %v2530, %v2529
        %2535 = vmatprep.subr.bf16.mxu0 0
        %2536 = vmatpush1.bf16.msra.mxu0 0
        %2537 = vmatprep.subr.bf16.mxu0 0
        %2538 = vmatpush1.bf16.msra.mxu0 0
        %2539 = vmatprep.subr.bf16.mxu0 0
        %2540 = vmatpush1.bf16.msra.mxu0 0
        %2541 = vmatprep.subr.bf16.mxu0 0
        %2542 = vmatpush1.bf16.msra.mxu0 0
        %2543 = vmatprep.subr.bf16.mxu0 0
        %2544 = vmatpush1.bf16.msra.mxu0 0
        %2545 = vmatprep.subr.bf16.mxu0 0
        %2546 = vmatpush1.bf16.msra.mxu0 0
        %2547 = vmatprep.subr.bf16.mxu0 0
        %2548 = vmatpush1.bf16.msra.mxu0 %v2532
        %2549 = vmatprep.subr.bf16.mxu0 0
        %2550 = vmatpush1.bf16.msra.mxu0 %v2531
        %2551 = vmatprep.subr.bf16.mxu0 0
        %2552 = vmatpush2.bf16.msra.mxu0 0
        %2553 = vmatprep.subr.bf16.mxu0 0
        %2554 = vmatpush2.bf16.msra.mxu0 0
        %2555 = vmatprep.subr.bf16.mxu0 0
        %2556 = vmatpush2.bf16.msra.mxu0 0
        %2557 = vmatprep.subr.bf16.mxu0 0
        %2558 = vmatpush2.bf16.msra.mxu0 0
        %2559 = vmatprep.subr.bf16.mxu0 0
        %2560 = vmatpush2.bf16.msra.mxu0 0
        %2561 = vmatprep.subr.bf16.mxu0 0
        %2562 = vmatpush2.bf16.msra.mxu0 0
        %2563 = vmatprep.subr.bf16.mxu0 0
        %2564 = vmatpush2.bf16.msra.mxu0 0
        %2565 = vmatprep.subr.bf16.mxu0 0
        %2566 = vmatpush2.bf16.msra.mxu0 0
        %2567 = vmatprep.mubr.bf16.mxu0 0
        %2568 = vmatmul.mubr.bf16.gmra.mxu0 %v2169
        %v2569 = vpop.f32.mrf.mxu0
        %v2570 = vadd.f32 %v2521, %v2569
        %v2571 = vpop.f32.mrf.mxu0
        %v2572 = vpop.f32.mrf.mxu0
        %v2573 = vpop.f32.mrf.mxu0
        %2574 = vdwg.mxu0
        %s2575 = scalar_lea.vmem %s21, 48
        %v2576 = vld [vmem:[%s2575] sm:$0xf]
        %v2577 = vld [vmem:[%s2575 + $0x4] sm:$0xf]
        %v2578 = vld [vmem:[%s2575 + $0x8] sm:$0xf]
        %v2579 = vld [vmem:[%s2575 + $0xc] sm:$0xf]
        %s2580 = scalar_lea.vmem %s23, 3
        %v2581 = vld [vmem:[%s2580] sm:$0x1]
        %v2583 = vlaneseq
        %v2584 = vshrl.u32 %v2583, 7
        %v2585 = vsub.s32 0, %v2584
        %v2586 = vrot.slane %v2581, %v2585
        %v2592 = vunpack.c.l.b16 %v2576
        %v2593 = vunpack.c.l.b16 %v2577
        %v2594 = vunpack.c.l.b16 %v2578
        %v2595 = vunpack.c.l.b16 %v2579
        %v2596 = vpack.c.b16 %v2593, %v2592
        %v2597 = vpack.c.b16 %v2595, %v2594
        %2600 = vmatprep.subr.bf16.mxu0 0
        %2601 = vmatpush1.bf16.msra.mxu0 0
        %2602 = vmatprep.subr.bf16.mxu0 0
        %2603 = vmatpush1.bf16.msra.mxu0 0
        %2604 = vmatprep.subr.bf16.mxu0 0
        %2605 = vmatpush1.bf16.msra.mxu0 0
        %2606 = vmatprep.subr.bf16.mxu0 0
        %2607 = vmatpush1.bf16.msra.mxu0 0
        %2608 = vmatprep.subr.bf16.mxu0 0
        %2609 = vmatpush1.bf16.msra.mxu0 0
        %2610 = vmatprep.subr.bf16.mxu0 0
        %2611 = vmatpush1.bf16.msra.mxu0 0
        %2612 = vmatprep.subr.bf16.mxu0 0
        %2613 = vmatpush1.bf16.msra.mxu0 %v2597
        %2614 = vmatprep.subr.bf16.mxu0 0
        %2615 = vmatpush1.bf16.msra.mxu0 %v2596
        %2616 = vmatprep.subr.bf16.mxu0 0
        %2617 = vmatpush2.bf16.msra.mxu0 0
        %2618 = vmatprep.subr.bf16.mxu0 0
        %2619 = vmatpush2.bf16.msra.mxu0 0
        %2620 = vmatprep.subr.bf16.mxu0 0
        %2621 = vmatpush2.bf16.msra.mxu0 0
        %2622 = vmatprep.subr.bf16.mxu0 0
        %2623 = vmatpush2.bf16.msra.mxu0 0
        %2624 = vmatprep.subr.bf16.mxu0 0
        %2625 = vmatpush2.bf16.msra.mxu0 0
        %2626 = vmatprep.subr.bf16.mxu0 0
        %2627 = vmatpush2.bf16.msra.mxu0 0
        %2628 = vmatprep.subr.bf16.mxu0 0
        %2629 = vmatpush2.bf16.msra.mxu0 0
        %2630 = vmatprep.subr.bf16.mxu0 0
        %2631 = vmatpush2.bf16.msra.mxu0 0
        %2632 = vmatprep.mubr.bf16.mxu0 0
        %2633 = vmatmul.mubr.bf16.gmra.mxu0 %v2169
        %v2634 = vpop.f32.mrf.mxu0
        %v2635 = vadd.f32 %v2586, %v2634
        %v2636 = vpop.f32.mrf.mxu0
        %v2637 = vpop.f32.mrf.mxu0
        %v2638 = vpop.f32.mrf.mxu0
        %2639 = vdwg.mxu0
        %s2640 = scalar_lea.vmem %s25, 48
        %v2641 = vld [vmem:[%s2640] sm:$0xf]
        %v2642 = vld [vmem:[%s2640 + $0x4] sm:$0xf]
        %v2643 = vld [vmem:[%s2640 + $0x8] sm:$0xf]
        %v2644 = vld [vmem:[%s2640 + $0xc] sm:$0xf]
        %s2645 = scalar_lea.vmem %s27, 3
        %v2646 = vld [vmem:[%s2645] sm:$0x1]
        %v2648 = vlaneseq
        %v2649 = vshrl.u32 %v2648, 7
        %v2650 = vsub.s32 0, %v2649
        %v2651 = vrot.slane %v2646, %v2650
        %v2657 = vunpack.c.l.b16 %v2641
        %v2658 = vunpack.c.l.b16 %v2642
        %v2659 = vunpack.c.l.b16 %v2643
        %v2660 = vunpack.c.l.b16 %v2644
        %v2661 = vpack.c.b16 %v2658, %v2657
        %v2662 = vpack.c.b16 %v2660, %v2659
        %2665 = vmatprep.subr.bf16.mxu0 0
        %2666 = vmatpush1.bf16.msra.mxu0 0
        %2667 = vmatprep.subr.bf16.mxu0 0
        %2668 = vmatpush1.bf16.msra.mxu0 0
        %2669 = vmatprep.subr.bf16.mxu0 0
        %2670 = vmatpush1.bf16.msra.mxu0 0
        %2671 = vmatprep.subr.bf16.mxu0 0
        %2672 = vmatpush1.bf16.msra.mxu0 0
        %2673 = vmatprep.subr.bf16.mxu0 0
        %2674 = vmatpush1.bf16.msra.mxu0 0
        %2675 = vmatprep.subr.bf16.mxu0 0
        %2676 = vmatpush1.bf16.msra.mxu0 0
        %2677 = vmatprep.subr.bf16.mxu0 0
        %2678 = vmatpush1.bf16.msra.mxu0 %v2662
        %2679 = vmatprep.subr.bf16.mxu0 0
        %2680 = vmatpush1.bf16.msra.mxu0 %v2661
        %2681 = vmatprep.subr.bf16.mxu0 0
        %2682 = vmatpush2.bf16.msra.mxu0 0
        %2683 = vmatprep.subr.bf16.mxu0 0
        %2684 = vmatpush2.bf16.msra.mxu0 0
        %2685 = vmatprep.subr.bf16.mxu0 0
        %2686 = vmatpush2.bf16.msra.mxu0 0
        %2687 = vmatprep.subr.bf16.mxu0 0
        %2688 = vmatpush2.bf16.msra.mxu0 0
        %2689 = vmatprep.subr.bf16.mxu0 0
        %2690 = vmatpush2.bf16.msra.mxu0 0
        %2691 = vmatprep.subr.bf16.mxu0 0
        %2692 = vmatpush2.bf16.msra.mxu0 0
        %2693 = vmatprep.subr.bf16.mxu0 0
        %2694 = vmatpush2.bf16.msra.mxu0 0
        %2695 = vmatprep.subr.bf16.mxu0 0
        %2696 = vmatpush2.bf16.msra.mxu0 0
        %2697 = vmatprep.mubr.bf16.mxu0 0
        %2698 = vmatmul.mubr.bf16.gmra.mxu0 %v2169
        %v2699 = vpop.f32.mrf.mxu0
        %v2700 = vadd.f32 %v2651, %v2699
        %v2701 = vpop.f32.mrf.mxu0
        %v2702 = vpop.f32.mrf.mxu0
        %v2703 = vpop.f32.mrf.mxu0
        %2704 = vdwg.mxu0
        %v2705 = vpack.c.bf16 %v2570, %v2570
        %v2706 = vpack.c.bf16 %v2635, %v2635
        %v2708 = vsel %vm1394, %v2705, 0
        %v2711 = vsel %vm1394, %v2706, 0
        %2713 = vmatprep.subr.bf16.mxu0 0
        %2714 = vmatpush1.bf16.xpose.msra.mxu0 0
        %2715 = vmatprep.subr.bf16.mxu0 0
        %2716 = vmatpush1.bf16.xpose.msra.mxu0 0
        %2717 = vmatprep.subr.bf16.mxu0 0
        %2718 = vmatpush1.bf16.xpose.msra.mxu0 0
        %2719 = vmatprep.subr.bf16.mxu0 0
        %2720 = vmatpush1.bf16.xpose.msra.mxu0 0
        %2721 = vmatprep.subr.bf16.mxu0 0
        %2722 = vmatpush1.bf16.xpose.msra.mxu0 0
        %2723 = vmatprep.subr.bf16.mxu0 0
        %2724 = vmatpush1.bf16.xpose.msra.mxu0 0
        %2725 = vmatprep.subr.bf16.mxu0 0
        %2726 = vmatpush1.bf16.xpose.msra.mxu0 0
        %2727 = vmatprep.subr.bf16.mxu0 0
        %2728 = vmatpush1.bf16.xpose.msra.mxu0 %v2711
        %2729 = vmatprep.subr.bf16.mxu0 0
        %2730 = vmatpush2.bf16.xpose.msra.mxu0 0
        %2731 = vmatprep.subr.bf16.mxu0 0
        %2732 = vmatpush2.bf16.xpose.msra.mxu0 0
        %2733 = vmatprep.subr.bf16.mxu0 0
        %2734 = vmatpush2.bf16.xpose.msra.mxu0 0
        %2735 = vmatprep.subr.bf16.mxu0 0
        %2736 = vmatpush2.bf16.xpose.msra.mxu0 0
        %2737 = vmatprep.subr.bf16.mxu0 0
        %2738 = vmatpush2.bf16.xpose.msra.mxu0 0
        %2739 = vmatprep.subr.bf16.mxu0 0
        %2740 = vmatpush2.bf16.xpose.msra.mxu0 0
        %2741 = vmatprep.subr.bf16.mxu0 0
        %2742 = vmatpush2.bf16.xpose.msra.mxu0 0
        %2743 = vmatprep.subr.bf16.mxu0 0
        %2744 = vmatpush2.bf16.xpose.msra.mxu0 0
        %2745 = vmatprep.mubr.bf16.mxu0 0
        %2746 = vmatmul.mubr.bf16.gmra.mxu0 %v2708
        %v2747 = vpop.f32.mrf.mxu0
        %v2748 = vadd.f32 0.0, %v2747
        %v2749 = vpop.f32.mrf.mxu0
        %v2750 = vpop.f32.mrf.mxu0
        %v2751 = vpop.f32.mrf.mxu0
        %2752 = vdwg.mxu0
        %v2753 = vmul.f32 %v2748, 0.25
        %v2754 = vadd.f32 %v2753, %v1447
        %v2755 = vsel %vm1450, %v2754, -inf
        %2756 = vmax.xlane.f32.xlu0 %v2755
        %v2757 = vpop.xlane.xlu0 %2756
        %v2758 = vsub.f32 %v2754, %v2757
        %v2759 = vmul.f32 %v2758, 1.442695
        %v2760 = vpow.pop %v2759
        %v2761 = vsel %vm1450, %v2760, 0.0
        %2762 = vadd.xlane.f32.xlu0 %v2761
        %v2763 = vpop.xlane.xlu0 %2762
        %v2764 = vrcp.pop %v2763
        %v2765 = vmul.f32 %v2760, %v2764
        %v2766 = vpack.c.bf16 %v2765, %v2765
        %v2767 = vpack.c.bf16 %v2700, %v2700
        %v2769 = vsel %vm1450, %v2766, 0
        %v2772 = vsel %vm1140, %v2767, 0
        %2774 = vmatprep.subr.bf16.mxu0 0
        %2775 = vmatpush1.bf16.msra.mxu0 0
        %2776 = vmatprep.subr.bf16.mxu0 0
        %2777 = vmatpush1.bf16.msra.mxu0 0
        %2778 = vmatprep.subr.bf16.mxu0 0
        %2779 = vmatpush1.bf16.msra.mxu0 0
        %2780 = vmatprep.subr.bf16.mxu0 0
        %2781 = vmatpush1.bf16.msra.mxu0 0
        %2782 = vmatprep.subr.bf16.mxu0 0
        %2783 = vmatpush1.bf16.msra.mxu0 0
        %2784 = vmatprep.subr.bf16.mxu0 0
        %2785 = vmatpush1.bf16.msra.mxu0 0
        %2786 = vmatprep.subr.bf16.mxu0 0
        %2787 = vmatpush1.bf16.msra.mxu0 0
        %2788 = vmatprep.subr.bf16.mxu0 0
        %2789 = vmatpush1.bf16.msra.mxu0 %v2772
        %2790 = vmatprep.subr.bf16.mxu0 0
        %2791 = vmatpush2.bf16.msra.mxu0 0
        %2792 = vmatprep.subr.bf16.mxu0 0
        %2793 = vmatpush2.bf16.msra.mxu0 0
        %2794 = vmatprep.subr.bf16.mxu0 0
        %2795 = vmatpush2.bf16.msra.mxu0 0
        %2796 = vmatprep.subr.bf16.mxu0 0
        %2797 = vmatpush2.bf16.msra.mxu0 0
        %2798 = vmatprep.subr.bf16.mxu0 0
        %2799 = vmatpush2.bf16.msra.mxu0 0
        %2800 = vmatprep.subr.bf16.mxu0 0
        %2801 = vmatpush2.bf16.msra.mxu0 0
        %2802 = vmatprep.subr.bf16.mxu0 0
        %2803 = vmatpush2.bf16.msra.mxu0 0
        %2804 = vmatprep.subr.bf16.mxu0 0
        %2805 = vmatpush2.bf16.msra.mxu0 0
        %2806 = vmatprep.mubr.bf16.mxu0 0
        %2807 = vmatmul.mubr.bf16.gmra.mxu0 %v2769
        %v2808 = vpop.f32.mrf.mxu0
        %v2809 = vadd.f32 0.0, %v2808
        %v2810 = vpop.f32.mrf.mxu0
        %v2811 = vpop.f32.mrf.mxu0
        %v2812 = vpop.f32.mrf.mxu0
        %2813 = vdwg.mxu0
        %v2814 = vpack.c.bf16 %v2809, %v2809
        %s2815 = scalar_lea.vmem %s29, 24
        %v2816 = vld [vmem:[%s2815] sm:$0xf]
        %v2817 = vld [vmem:[%s2815 + $0x4] sm:$0xf]
        %v2820 = vunpack.c.l.b16 %v2816
        %v2821 = vunpack.c.l.b16 %v2817
        %v2822 = vpack.c.b16 %v2821, %v2820
        %v2825 = vsel %vm1394, %v2814, 0
        %2827 = vmatprep.subr.bf16.mxu0 0
        %2828 = vmatpush1.bf16.msra.mxu0 0
        %2829 = vmatprep.subr.bf16.mxu0 0
        %2830 = vmatpush1.bf16.msra.mxu0 0
        %2831 = vmatprep.subr.bf16.mxu0 0
        %2832 = vmatpush1.bf16.msra.mxu0 0
        %2833 = vmatprep.subr.bf16.mxu0 0
        %2834 = vmatpush1.bf16.msra.mxu0 0
        %2835 = vmatprep.subr.bf16.mxu0 0
        %2836 = vmatpush1.bf16.msra.mxu0 0
        %2837 = vmatprep.subr.bf16.mxu0 0
        %2838 = vmatpush1.bf16.msra.mxu0 0
        %2839 = vmatprep.subr.bf16.mxu0 0
        %2840 = vmatpush1.bf16.msra.mxu0 0
        %2841 = vmatprep.subr.bf16.mxu0 0
        %2842 = vmatpush1.bf16.msra.mxu0 %v2822
        %2843 = vmatprep.subr.bf16.mxu0 0
        %2844 = vmatpush2.bf16.msra.mxu0 0
        %2845 = vmatprep.subr.bf16.mxu0 0
        %2846 = vmatpush2.bf16.msra.mxu0 0
        %2847 = vmatprep.subr.bf16.mxu0 0
        %2848 = vmatpush2.bf16.msra.mxu0 0
        %2849 = vmatprep.subr.bf16.mxu0 0
        %2850 = vmatpush2.bf16.msra.mxu0 0
        %2851 = vmatprep.subr.bf16.mxu0 0
        %2852 = vmatpush2.bf16.msra.mxu0 0
        %2853 = vmatprep.subr.bf16.mxu0 0
        %2854 = vmatpush2.bf16.msra.mxu0 0
        %2855 = vmatprep.subr.bf16.mxu0 0
        %2856 = vmatpush2.bf16.msra.mxu0 0
        %2857 = vmatprep.subr.bf16.mxu0 0
        %2858 = vmatpush2.bf16.msra.mxu0 0
        %2859 = vmatprep.mubr.bf16.mxu0 0
        %2860 = vmatmul.mubr.bf16.gmra.mxu0 %v2825
        %v2861 = vpop.f32.mrf.mxu0
        %v2862 = vadd.f32 0.0, %v2861
        %v2863 = vpop.f32.mrf.mxu0
        %v2864 = vpop.f32.mrf.mxu0
        %v2865 = vpop.f32.mrf.mxu0
        %2866 = vdwg.mxu0
        %v2867 = vadd.f32 %v2509, %v2862
        %v2868 = vadd.f32 %v2139, %v2867
        %s2869 = scalar_lea.vmem %s41, 1
        %v2870 = vld [vmem:[%s2869] sm:$0x1]
        %s2871 = scalar_lea.vmem %s43, 1
        %v2872 = vld [vmem:[%s2871] sm:$0x1]
        %v2873 = vsel %vm1074, %v2868, 0.0
        %2874 = vadd.xlane.f32.xlu0 %v2873
        %v2875 = vpop.xlane.xlu0 %2874
        %v2876 = vmul.f32 %v2875, %v1933
        %v2877 = vsub.f32 %v2868, %v2876
        %v2878 = vmul.f32 %v2877, %v2877
        %v2879 = vsel %vm1074, %v2878, 0.0
        %2880 = vadd.xlane.f32.xlu0 %v2879
        %v2881 = vpop.xlane.xlu0 %2880
        %v2882 = vmul.f32 %v2881, %v1933
        %v2883 = vadd.f32 %v2882, 1e-05
        %v2884 = vrsqrt.pop %v2883
        %v2885 = vmul.f32 %v2877, %v2884
        %v2887 = vlaneseq
        %v2888 = vshrl.u32 %v2887, 7
        %v2889 = vsub.s32 0, %v2888
        %v2890 = vrot.slane %v2870, %v2889
        %v2892 = vmul.f32 %v2885, %v2890
        %v2894 = vlaneseq
        %v2895 = vshrl.u32 %v2894, 7
        %v2896 = vsub.s32 0, %v2895
        %v2897 = vrot.slane %v2872, %v2896
        %v2899 = vadd.f32 %v2892, %v2897
        %s2900 = scalar_lea.vmem %s33, 16
        %v2901 = vld [vmem:[%s2900] sm:$0xf]
        %v2902 = vld [vmem:[%s2900 + $0x4] sm:$0xf]
        %v2903 = vld [vmem:[%s2900 + $0x8] sm:$0xf]
        %v2904 = vld [vmem:[%s2900 + $0xc] sm:$0xf]
        %v2905 = vpack.c.bf16 %v2899, %v2899
        %s2906 = scalar_lea.vmem %s35, 1
        %v2907 = vld [vmem:[%s2906] sm:$0x1]
        %v2909 = vlaneseq
        %v2910 = vshrl.u32 %v2909, 7
        %v2911 = vsub.s32 0, %v2910
        %v2912 = vrot.slane %v2907, %v2911
        %v2918 = vunpack.c.l.b16 %v2901
        %v2919 = vunpack.c.l.b16 %v2902
        %v2920 = vunpack.c.l.b16 %v2903
        %v2921 = vunpack.c.l.b16 %v2904
        %v2922 = vpack.c.b16 %v2919, %v2918
        %v2923 = vpack.c.b16 %v2921, %v2920
        %v2927 = vsel %vm1074, %v2905, 0
        %2929 = vmatprep.subr.bf16.mxu0 0
        %2930 = vmatpush1.bf16.msra.mxu0 0
        %2931 = vmatprep.subr.bf16.mxu0 0
        %2932 = vmatpush1.bf16.msra.mxu0 0
        %2933 = vmatprep.subr.bf16.mxu0 0
        %2934 = vmatpush1.bf16.msra.mxu0 0
        %2935 = vmatprep.subr.bf16.mxu0 0
        %2936 = vmatpush1.bf16.msra.mxu0 0
        %2937 = vmatprep.subr.bf16.mxu0 0
        %2938 = vmatpush1.bf16.msra.mxu0 0
        %2939 = vmatprep.subr.bf16.mxu0 0
        %2940 = vmatpush1.bf16.msra.mxu0 0
        %2941 = vmatprep.subr.bf16.mxu0 0
        %2942 = vmatpush1.bf16.msra.mxu0 %v2923
        %2943 = vmatprep.subr.bf16.mxu0 0
        %2944 = vmatpush1.bf16.msra.mxu0 %v2922
        %2945 = vmatprep.subr.bf16.mxu0 0
        %2946 = vmatpush2.bf16.msra.mxu0 0
        %2947 = vmatprep.subr.bf16.mxu0 0
        %2948 = vmatpush2.bf16.msra.mxu0 0
        %2949 = vmatprep.subr.bf16.mxu0 0
        %2950 = vmatpush2.bf16.msra.mxu0 0
        %2951 = vmatprep.subr.bf16.mxu0 0
        %2952 = vmatpush2.bf16.msra.mxu0 0
        %2953 = vmatprep.subr.bf16.mxu0 0
        %2954 = vmatpush2.bf16.msra.mxu0 0
        %2955 = vmatprep.subr.bf16.mxu0 0
        %2956 = vmatpush2.bf16.msra.mxu0 0
        %2957 = vmatprep.subr.bf16.mxu0 0
        %2958 = vmatpush2.bf16.msra.mxu0 0
        %2959 = vmatprep.subr.bf16.mxu0 0
        %2960 = vmatpush2.bf16.msra.mxu0 0
        %2961 = vmatprep.mubr.bf16.mxu0 0
        %2962 = vmatmul.mubr.bf16.gmra.mxu0 %v2927
        %v2963 = vpop.f32.mrf.mxu0
        %v2964 = vadd.f32 %v2912, %v2963
        %v2965 = vpop.f32.mrf.mxu0
        %v2966 = vpop.f32.mrf.mxu0
        %v2967 = vpop.f32.mrf.mxu0
        %2968 = vdwg.mxu0
        %v2969 = vmax.f32 %v2964, 0.0
        %s2970 = scalar_lea.vmem %s37, 32
        %v2971 = vld [vmem:[%s2970] sm:$0xf]
        %v2972 = vld [vmem:[%s2970 + $0x4] sm:$0xf]
        %v2973 = vld [vmem:[%s2970 + $0x8] sm:$0xf]
        %v2974 = vld [vmem:[%s2970 + $0xc] sm:$0xf]
        %v2975 = vld [vmem:[%s2970 + $0x10] sm:$0xf]
        %v2976 = vld [vmem:[%s2970 + $0x14] sm:$0xf]
        %v2977 = vld [vmem:[%s2970 + $0x18] sm:$0xf]
        %v2978 = vld [vmem:[%s2970 + $0x1c] sm:$0xf]
        %v2979 = vpack.c.bf16 %v2969, %v2969
        %s2980 = scalar_lea.vmem %s39, 1
        %v2981 = vld [vmem:[%s2980] sm:$0x1]
        %v2983 = vlaneseq
        %v2984 = vshrl.u32 %v2983, 7
        %v2985 = vsub.s32 0, %v2984
        %v2986 = vrot.slane %v2981, %v2985
        %v2996 = vunpack.c.l.b16 %v2971
        %v2997 = vunpack.c.l.b16 %v2972
        %v2998 = vunpack.c.l.b16 %v2973
        %v2999 = vunpack.c.l.b16 %v2974
        %v3000 = vunpack.c.l.b16 %v2975
        %v3001 = vunpack.c.l.b16 %v2976
        %v3002 = vunpack.c.l.b16 %v2977
        %v3003 = vunpack.c.l.b16 %v2978
        %v3004 = vpack.c.b16 %v2997, %v2996
        %v3005 = vpack.c.b16 %v2999, %v2998
        %v3006 = vpack.c.b16 %v3001, %v3000
        %v3007 = vpack.c.b16 %v3003, %v3002
        %v3013 = vsel %vm2066, %v2979, 0
        %3015 = vmatprep.subr.bf16.mxu0 0
        %3016 = vmatpush1.bf16.msra.mxu0 0
        %3017 = vmatprep.subr.bf16.mxu0 0
        %3018 = vmatpush1.bf16.msra.mxu0 0
        %3019 = vmatprep.subr.bf16.mxu0 0
        %3020 = vmatpush1.bf16.msra.mxu0 0
        %3021 = vmatprep.subr.bf16.mxu0 0
        %3022 = vmatpush1.bf16.msra.mxu0 0
        %3023 = vmatprep.subr.bf16.mxu0 0
        %3024 = vmatpush1.bf16.msra.mxu0 %v3007
        %3025 = vmatprep.subr.bf16.mxu0 0
        %3026 = vmatpush1.bf16.msra.mxu0 %v3006
        %3027 = vmatprep.subr.bf16.mxu0 0
        %3028 = vmatpush1.bf16.msra.mxu0 %v3005
        %3029 = vmatprep.subr.bf16.mxu0 0
        %3030 = vmatpush1.bf16.msra.mxu0 %v3004
        %3031 = vmatprep.subr.bf16.mxu0 0
        %3032 = vmatpush2.bf16.msra.mxu0 0
        %3033 = vmatprep.subr.bf16.mxu0 0
        %3034 = vmatpush2.bf16.msra.mxu0 0
        %3035 = vmatprep.subr.bf16.mxu0 0
        %3036 = vmatpush2.bf16.msra.mxu0 0
        %3037 = vmatprep.subr.bf16.mxu0 0
        %3038 = vmatpush2.bf16.msra.mxu0 0
        %3039 = vmatprep.subr.bf16.mxu0 0
        %3040 = vmatpush2.bf16.msra.mxu0 0
        %3041 = vmatprep.subr.bf16.mxu0 0
        %3042 = vmatpush2.bf16.msra.mxu0 0
        %3043 = vmatprep.subr.bf16.mxu0 0
        %3044 = vmatpush2.bf16.msra.mxu0 0
        %3045 = vmatprep.subr.bf16.mxu0 0
        %3046 = vmatpush2.bf16.msra.mxu0 0
        %3047 = vmatprep.mubr.bf16.mxu0 0
        %3048 = vmatmul.mubr.bf16.gmra.mxu0 %v3013
        %v3049 = vpop.f32.mrf.mxu0
        %v3050 = vadd.f32 %v2986, %v3049
        %v3051 = vpop.f32.mrf.mxu0
        %v3052 = vpop.f32.mrf.mxu0
        %v3053 = vpop.f32.mrf.mxu0
        %3054 = vdwg.mxu0
        %v3055 = vadd.f32 %v2899, %v3050
        %s3056 = scalar_lea.vmem %s45, 1
        %v3057 = vld [vmem:[%s3056] sm:$0x1]
        %s3058 = scalar_lea.vmem %s47, 1
        %v3059 = vld [vmem:[%s3058] sm:$0x1]
        %v3060 = vsel %vm1074, %v3055, 0.0
        %3061 = vadd.xlane.f32.xlu0 %v3060
        %v3062 = vpop.xlane.xlu0 %3061
        %v3063 = vmul.f32 %v3062, %v1933
        %v3064 = vsub.f32 %v3055, %v3063
        %v3065 = vmul.f32 %v3064, %v3064
        %v3066 = vsel %vm1074, %v3065, 0.0
        %3067 = vadd.xlane.f32.xlu0 %v3066
        %v3068 = vpop.xlane.xlu0 %3067
        %v3069 = vmul.f32 %v3068, %v1933
        %v3070 = vadd.f32 %v3069, 1e-05
        %v3071 = vrsqrt.pop %v3070
        %v3072 = vmul.f32 %v3064, %v3071
        %v3074 = vlaneseq
        %v3075 = vshrl.u32 %v3074, 7
        %v3076 = vsub.s32 0, %v3075
        %v3077 = vrot.slane %v3057, %v3076
        %v3079 = vmul.f32 %v3072, %v3077
        %v3081 = vlaneseq
        %v3082 = vshrl.u32 %v3081, 7
        %v3083 = vsub.s32 0, %v3082
        %v3084 = vrot.slane %v3059, %v3083
        %v3086 = vadd.f32 %v3079, %v3084
        %v3087 = vld [vmem:[%s49] sm:$0x1]
        %v3088 = vld [vmem:[%s51] sm:$0x1]
        %v3089 = vsel %vm1074, %v3086, 0.0
        %3090 = vadd.xlane.f32.xlu0 %v3089
        %v3091 = vpop.xlane.xlu0 %3090
        %v3092 = vmul.f32 %v3091, %v1933
        %v3093 = vsub.f32 %v3086, %v3092
        %v3094 = vmul.f32 %v3093, %v3093
        %v3095 = vsel %vm1074, %v3094, 0.0
        %3096 = vadd.xlane.f32.xlu0 %v3095
        %v3097 = vpop.xlane.xlu0 %3096
        %v3098 = vmul.f32 %v3097, %v1933
        %v3099 = vadd.f32 %v3098, 1e-05
        %v3100 = vrsqrt.pop %v3099
        %v3101 = vmul.f32 %v3093, %v3100
        %v3103 = vlaneseq
        %v3104 = vshrl.u32 %v3103, 7
        %v3105 = vsub.s32 0, %v3104
        %v3106 = vrot.slane %v3087, %v3105
        %v3108 = vmul.f32 %v3101, %v3106
        %v3110 = vlaneseq
        %v3111 = vshrl.u32 %v3110, 7
        %v3112 = vsub.s32 0, %v3111
        %v3113 = vrot.slane %v3088, %v3112
        %v3115 = vadd.f32 %v3108, %v3113
        %v3116 = vld [vmem:[%s53] sm:$0xf]
        %v3117 = vld [vmem:[%s53 + $0x4] sm:$0xf]
        %v3118 = vld [vmem:[%s53 + $0x8] sm:$0xf]
        %v3119 = vld [vmem:[%s53 + $0xc] sm:$0xf]
        %v3120 = vpack.c.bf16 %v3115, %v3115
        %v3121 = vld [vmem:[%s55] sm:$0x1]
        %v3126 = vunpack.c.l.b16 %v3116
        %v3127 = vunpack.c.l.b16 %v3117
        %v3128 = vunpack.c.l.b16 %v3118
        %v3129 = vunpack.c.l.b16 %v3119
        %v3130 = vpack.c.b16 %v3127, %v3126
        %v3131 = vpack.c.b16 %v3129, %v3128
        %v3135 = vsel %vm1074, %v3120, 0
        %3137 = vmatprep.subr.bf16.mxu0 0
        %3138 = vmatpush1.bf16.msra.mxu0 0
        %3139 = vmatprep.subr.bf16.mxu0 0
        %3140 = vmatpush1.bf16.msra.mxu0 0
        %3141 = vmatprep.subr.bf16.mxu0 0
        %3142 = vmatpush1.bf16.msra.mxu0 0
        %3143 = vmatprep.subr.bf16.mxu0 0
        %3144 = vmatpush1.bf16.msra.mxu0 0
        %3145 = vmatprep.subr.bf16.mxu0 0
        %3146 = vmatpush1.bf16.msra.mxu0 0
        %3147 = vmatprep.subr.bf16.mxu0 0
        %3148 = vmatpush1.bf16.msra.mxu0 0
        %3149 = vmatprep.subr.bf16.mxu0 0
        %3150 = vmatpush1.bf16.msra.mxu0 %v3131
        %3151 = vmatprep.subr.bf16.mxu0 0
        %3152 = vmatpush1.bf16.msra.mxu0 %v3130
        %3153 = vmatprep.subr.bf16.mxu0 0
        %3154 = vmatpush2.bf16.msra.mxu0 0
        %3155 = vmatprep.subr.bf16.mxu0 0
        %3156 = vmatpush2.bf16.msra.mxu0 0
        %3157 = vmatprep.subr.bf16.mxu0 0
        %3158 = vmatpush2.bf16.msra.mxu0 0
        %3159 = vmatprep.subr.bf16.mxu0 0
        %3160 = vmatpush2.bf16.msra.mxu0 0
        %3161 = vmatprep.subr.bf16.mxu0 0
        %3162 = vmatpush2.bf16.msra.mxu0 0
        %3163 = vmatprep.subr.bf16.mxu0 0
        %3164 = vmatpush2.bf16.msra.mxu0 0
        %3165 = vmatprep.subr.bf16.mxu0 0
        %3166 = vmatpush2.bf16.msra.mxu0 0
        %3167 = vmatprep.subr.bf16.mxu0 0
        %3168 = vmatpush2.bf16.msra.mxu0 0
        %3169 = vmatprep.mubr.bf16.mxu0 0
        %3170 = vmatmul.mubr.bf16.gmra.mxu0 %v3135
        %v3171 = vpop.f32.mrf.mxu0
        %v3172 = vadd.f32 %v3121, %v3171
        %v3173 = vpop.f32.mrf.mxu0
        %v3174 = vpop.f32.mrf.mxu0
        %v3175 = vpop.f32.mrf.mxu0
        %3176 = vdwg.mxu0
        %vm3177 = vcmask 49152
        %v3178 = vsel %vm3177, %v3172, -inf
        %3179 = vmax.xlane.f32.xlu0 %v3178
        %v3180 = vpop.xlane.xlu0 %3179
        %v3181 = vsub.f32 %v3172, %v3180
        %v3182 = vmul.f32 %v3181, 1.442695
        %v3183 = vpow.pop %v3182
        %v3184 = vsel %vm3177, %v3183, 0.0
        %3185 = vadd.xlane.f32.xlu0 %v3184
        %v3186 = vpop.xlane.xlu0 %3185
        %v3187 = vrcp.pop %v3186
        %v3188 = vmul.f32 %v3183, %v3187
        %3189 = vst.msk [vmem:[%s1027] sm:$0x1] %vm3177, %v3188
        %v3190 = vld [vmem:[%s57] sm:$0xf]
        %v3191 = vld [vmem:[%s57 + $0x4] sm:$0xf]
        %v3192 = vld [vmem:[%s57 + $0x8] sm:$0xf]
        %v3193 = vld [vmem:[%s57 + $0xc] sm:$0xf]
        %v3194 = vld [vmem:[%s59] sm:$0x1]
        %v3196 = vlaneseq
        %v3197 = vshrl.u32 %v3196, 7
        %v3198 = vsub.s32 0, %v3197
        %v3199 = vrot.slane %v3194, %v3198
        %v3205 = vunpack.c.l.b16 %v3190
        %v3206 = vunpack.c.l.b16 %v3191
        %v3207 = vunpack.c.l.b16 %v3192
        %v3208 = vunpack.c.l.b16 %v3193
        %v3209 = vpack.c.b16 %v3206, %v3205
        %v3210 = vpack.c.b16 %v3208, %v3207
        %3213 = vmatprep.subr.bf16.mxu0 0
        %3214 = vmatpush1.bf16.msra.mxu0 0
        %3215 = vmatprep.subr.bf16.mxu0 0
        %3216 = vmatpush1.bf16.msra.mxu0 0
        %3217 = vmatprep.subr.bf16.mxu0 0
        %3218 = vmatpush1.bf16.msra.mxu0 0
        %3219 = vmatprep.subr.bf16.mxu0 0
        %3220 = vmatpush1.bf16.msra.mxu0 0
        %3221 = vmatprep.subr.bf16.mxu0 0
        %3222 = vmatpush1.bf16.msra.mxu0 0
        %3223 = vmatprep.subr.bf16.mxu0 0
        %3224 = vmatpush1.bf16.msra.mxu0 0
        %3225 = vmatprep.subr.bf16.mxu0 0
        %3226 = vmatpush1.bf16.msra.mxu0 %v3210
        %3227 = vmatprep.subr.bf16.mxu0 0
        %3228 = vmatpush1.bf16.msra.mxu0 %v3209
        %3229 = vmatprep.subr.bf16.mxu0 0
        %3230 = vmatpush2.bf16.msra.mxu0 0
        %3231 = vmatprep.subr.bf16.mxu0 0
        %3232 = vmatpush2.bf16.msra.mxu0 0
        %3233 = vmatprep.subr.bf16.mxu0 0
        %3234 = vmatpush2.bf16.msra.mxu0 0
        %3235 = vmatprep.subr.bf16.mxu0 0
        %3236 = vmatpush2.bf16.msra.mxu0 0
        %3237 = vmatprep.subr.bf16.mxu0 0
        %3238 = vmatpush2.bf16.msra.mxu0 0
        %3239 = vmatprep.subr.bf16.mxu0 0
        %3240 = vmatpush2.bf16.msra.mxu0 0
        %3241 = vmatprep.subr.bf16.mxu0 0
        %3242 = vmatpush2.bf16.msra.mxu0 0
        %3243 = vmatprep.subr.bf16.mxu0 0
        %3244 = vmatpush2.bf16.msra.mxu0 0
        %3245 = vmatprep.mubr.bf16.mxu0 0
        %3246 = vmatmul.mubr.bf16.gmra.mxu0 %v3135
        %v3247 = vpop.f32.mrf.mxu0
        %v3248 = vadd.f32 %v3199, %v3247
        %v3249 = vpop.f32.mrf.mxu0
        %v3250 = vpop.f32.mrf.mxu0
        %v3251 = vpop.f32.mrf.mxu0
        %3252 = vdwg.mxu0
        %vm3253 = vcmp.ge.f32.partialorder %v3248, 0.0
        %v3254 = vmul.f32 %v3248, 0.1
        %v3255 = vsel %vm3253, %v3248, %v3254
        %v3256 = vld [vmem:[%s61] sm:$0xf]
        %v3257 = vld [vmem:[%s61 + $0x4] sm:$0xf]
        %v3258 = vpack.c.bf16 %v3255, %v3255
        %v3259 = vld [vmem:[%s63] sm:$0x1]
        %v3261 = vlaneseq
        %v3262 = vshrl.u32 %v3261, 7
        %v3263 = vsub.s32 0, %v3262
        %v3264 = vrot.slane %v3259, %v3263
        %v3268 = vunpack.c.l.b16 %v3256
        %v3269 = vunpack.c.l.b16 %v3257
        %v3270 = vpack.c.b16 %v3269, %v3268
        %v3273 = vsel %vm1394, %v3258, 0
        %3275 = vmatprep.subr.bf16.mxu0 0
        %3276 = vmatpush1.bf16.msra.mxu0 0
        %3277 = vmatprep.subr.bf16.mxu0 0
        %3278 = vmatpush1.bf16.msra.mxu0 0
        %3279 = vmatprep.subr.bf16.mxu0 0
        %3280 = vmatpush1.bf16.msra.mxu0 0
        %3281 = vmatprep.subr.bf16.mxu0 0
        %3282 = vmatpush1.bf16.msra.mxu0 0
        %3283 = vmatprep.subr.bf16.mxu0 0
        %3284 = vmatpush1.bf16.msra.mxu0 0
        %3285 = vmatprep.subr.bf16.mxu0 0
        %3286 = vmatpush1.bf16.msra.mxu0 0
        %3287 = vmatprep.subr.bf16.mxu0 0
        %3288 = vmatpush1.bf16.msra.mxu0 0
        %3289 = vmatprep.subr.bf16.mxu0 0
        %3290 = vmatpush1.bf16.msra.mxu0 %v3270
        %3291 = vmatprep.subr.bf16.mxu0 0
        %3292 = vmatpush2.bf16.msra.mxu0 0
        %3293 = vmatprep.subr.bf16.mxu0 0
        %3294 = vmatpush2.bf16.msra.mxu0 0
        %3295 = vmatprep.subr.bf16.mxu0 0
        %3296 = vmatpush2.bf16.msra.mxu0 0
        %3297 = vmatprep.subr.bf16.mxu0 0
        %3298 = vmatpush2.bf16.msra.mxu0 0
        %3299 = vmatprep.subr.bf16.mxu0 0
        %3300 = vmatpush2.bf16.msra.mxu0 0
        %3301 = vmatprep.subr.bf16.mxu0 0
        %3302 = vmatpush2.bf16.msra.mxu0 0
        %3303 = vmatprep.subr.bf16.mxu0 0
        %3304 = vmatpush2.bf16.msra.mxu0 0
        %3305 = vmatprep.subr.bf16.mxu0 0
        %3306 = vmatpush2.bf16.msra.mxu0 0
        %3307 = vmatprep.mubr.bf16.mxu0 0
        %3308 = vmatmul.mubr.bf16.gmra.mxu0 %v3273
        %v3309 = vpop.f32.mrf.mxu0
        %v3310 = vadd.f32 %v3264, %v3309
        %v3311 = vpop.f32.mrf.mxu0
        %v3312 = vpop.f32.mrf.mxu0
        %v3313 = vpop.f32.mrf.mxu0
        %3314 = vdwg.mxu0
        %vm3315 = vcmp.ge.f32.partialorder %v3310, 0.0
        %v3316 = vmul.f32 %v3310, 0.1
        %v3317 = vsel %vm3315, %v3310, %v3316
        %vm3318 = vcmask 39936
        %3319 = vst.msk [vmem:[%s1047] sm:$0xff] %vm3318, %v3317
        %s3320 = sand.u32 %s777, 1
        %s3321 = scalar_lea.sflag [#allocation3], %s3320
        %s3322 = sand.u32 %s777, 1
        %s3323 = scalar_lea.vmem [#allocation2], %s3322
        %p3324 = scmp.lt.s32.totalorder %s82, 1
        %s3325 = scalar_select %p3324, %s82, 1
        %s3326 = smul.addr %s3325, 8
        %s3327 = scalar_lea.vmem %s67, %s3326
        // Predicated region
        $region149: #{diet_forward.1} parent=147 // pred_check
          %p3328 = pneg %p787
        $region150: #{diet_forward.1} parent=147 // pred_check_branch
          %3330 = sbr.rel (%p3328) target = $region152
        $region151: #{diet_forward.1} parent=147 // pred_region
          %s3332 = ssub.s32 16, 16
          %3333 = vsyncadd %s3321, %s3332
          %s3334 = smul.addr %s82, 16
          %s3335 = scalar_lea.hbm %s65, %s3334
          %s3337 = sshll.u32 %s3323, 4
          %s3338 = int_to_ptr.vmem [resolvable:$true] %s3337
          %3340 = dma.vmem_to_hbm [thread:$0]  %s3338, 16, %s3335, %s3321
        $region152: #{diet_forward.1} parent=147 // pred_fallthru
          _
        // Predicated region
        $region153: #{diet_forward.1} parent=147 // pred_check
          %p3341 = pneg %p813
        $region154: #{diet_forward.1} parent=147 // pred_check_branch
          %3343 = sbr.rel (%p3341) target = $region156
        $region155: #{diet_forward.1} parent=147 // pred_region
          _
        $region156: #{diet_forward.1} parent=147 // pred_fallthru
          _
      $region148: #{diet_forward.1} parent=5 // pred_fallthru
        _
      %p3344 = scmp.le.s32.totalorder 2, %s77
      // Predicated region
      $region157: #{diet_forward.1} parent=5 // pred_check
        %p3345 = pneg %p3344
      $region158: #{diet_forward.1} parent=5 // pred_check_branch
        %3347 = sbr.rel (%p3345) target = $region160
      $region159: #{diet_forward.1} parent=5 // pred_region
        %s3348 = ssub.s32 %s77, 2
        // Predicated region
        $region161: #{diet_forward.1} parent=159 // pred_check
          %p3349 = pneg %p793
        $region162: #{diet_forward.1} parent=159 // pred_check_branch
          %3351 = sbr.rel (%p3349) target = $region164
        $region163: #{diet_forward.1} parent=159 // pred_region
          %s3352 = sand.u32 %s778, 1
          %s3353 = scalar_lea.sflag [#allocation3], %s3352
          %s3354 = sand.u32 %s778, 1
          %s3355 = scalar_lea.vmem [#allocation2], %s3354
          %3356 = dma.done %s3353, 16
        $region164: #{diet_forward.1} parent=159 // pred_fallthru
          _
        // Predicated region
        $region165: #{diet_forward.1} parent=159 // pred_check
          %p3357 = pneg %p819
        $region166: #{diet_forward.1} parent=159 // pred_check_branch
          %3359 = sbr.rel (%p3357) target = $region168
        $region167: #{diet_forward.1} parent=159 // pred_region
          %p3360 = scmp.lt.s32.totalorder %s83, 1
          %s3361 = scalar_select %p3360, %s83, 1
          %s3362 = smul.addr %s3361, 8
          %s3363 = scalar_lea.vmem %s67, %s3362
        $region168: #{diet_forward.1} parent=159 // pred_fallthru
          _
      $region160: #{diet_forward.1} parent=5 // pred_fallthru
        _
    $region6: #{diet_forward.1} parent=1 // loop_footer
      %s81 = sadd.s32 1, %s77
    $region7: #{diet_forward.1} parent=1 // loop_footer_branch
      %76 = sbr.rel target = $region3
    $region8: #{diet_forward.1} parent=1 // loop_exit
      _
    %3364 = vsyncpa [#allocation3], 1
    %s3365 = scalar_lea.sflag [#allocation3], 1
    %3366 = vsyncpa %s3365, 1

</llo_original>
